<compile_context>
chip_gen: v5e
topology: v5e:2x2
jax: 0.10.0
libtpu: 0.0.40
codegen_flags: <defaults>
</compile_context>

<pallas_src>
import functools

import jax
import jax.numpy as jnp
from jax.experimental import pallas as pl
from jax.experimental.pallas import tpu as pltpu


def _round_up(a, m):
    return (a + m - 1) // m * m


# ----------------------------------------------------------------------------
# Pallas kernels
# ----------------------------------------------------------------------------
def _conv3x3_wide_kernel(x_ref, scale_ref, shift_ref, w_ref,
                         y_ref, sum_ref, ssq_ref, *scratch,
                         W, Wv_out, M_out, relu_prologue):
    """3x3 valid conv on the wide-flat layout, one batch element per grid step.

    x_ref:     (1, Hf_in, Cin)   flat input (index = h*W + w, zero pad rows)
    scale_ref: (1, Cin)          BN scale for the fused prologue (unused if off)
    shift_ref: (1, Cin)          BN shift for the fused prologue
    w_ref:     (9, Cin, Cout)    conv taps, tap index = ky*3 + kx
    y_ref:     (1, Hf_out, Cout) flat output (garbage cols + pad rows zeroed)
    sum_ref:   (1, 1, Cout)      per-image channel sum over valid positions
    ssq_ref:   (1, 1, Cout)      per-image channel sum of squares
    """
    Cout = y_ref.shape[-1]
    Hf_out = y_ref.shape[1]

    if relu_prologue:
        # Fused BN-apply + ReLU of the previous conv's output while loading it.
        xs = scratch[0]
        xs[...] = jnp.maximum(x_ref[0] * scale_ref[...] + shift_ref[...], 0.0)

        def tap(off):
            return xs[off:off + M_out, :]
    else:
        def tap(off):
            return x_ref[0, off:off + M_out, :]

    # One large-M MXU matmul per filter tap: (M_out, Cin) @ (Cin, Cout).
    acc = jnp.zeros((M_out, Cout), jnp.float32)
    for ky in range(3):
        for kx in range(3):
            acc = acc + jnp.dot(tap(ky * W + kx), w_ref[ky * 3 + kx],
                                preferred_element_type=jnp.float32)

    # Mask the garbage columns (w >= Wv_out) of the wide layout.
    col = jax.lax.broadcasted_iota(jnp.int32, (M_out, 1), 0) % W
    acc = jnp.where(col < Wv_out, acc, 0.0)

    y_ref[0, :M_out, :] = acc.astype(y_ref.dtype)
    if Hf_out > M_out:  # zero the pad rows that the next conv's slices touch
        y_ref[0, M_out:, :] = jnp.zeros((Hf_out - M_out, Cout), y_ref.dtype)

    # BN batch-stat partials (per image); finished by a tiny reduction in JAX.
    sum_ref[0] = jnp.sum(acc, axis=0, keepdims=True)
    ssq_ref[0] = jnp.sum(acc * acc, axis=0, keepdims=True)


def _scale_shift_relu_kernel(x_ref, scale_ref, shift_ref, o_ref):
    """Elementwise y = max(x*scale + shift, 0) with broadcast scale/shift."""
    y = x_ref[...] * scale_ref[...] + shift_ref[...]
    o_ref[...] = jnp.maximum(y, 0.0).astype(o_ref.dtype)


# ----------------------------------------------------------------------------
# pallas_call wrappers
# ----------------------------------------------------------------------------
def _conv3x3_wide(x_flat, w9, scale, shift, *, W, Wv_out, M_out, Hf_out,
                  relu_prologue):
    N, Hf_in, Cin = x_flat.shape
    Cout = w9.shape[-1]
    kernel = functools.partial(
        _conv3x3_wide_kernel, W=W, Wv_out=Wv_out, M_out=M_out,
        relu_prologue=relu_prologue)
    scratch = ([pltpu.VMEM((Hf_in, Cin), jnp.float32)]
               if relu_prologue else [])
    return pl.pallas_call(
        kernel,
        out_shape=(
            jax.ShapeDtypeStruct((N, Hf_out, Cout), jnp.float32),
            jax.ShapeDtypeStruct((N, 1, Cout), jnp.float32),
            jax.ShapeDtypeStruct((N, 1, Cout), jnp.float32),
        ),
        grid=(N,),
        in_specs=[
            pl.BlockSpec((1, Hf_in, Cin), lambda n: (n, 0, 0)),
            pl.BlockSpec((1, Cin), lambda n: (0, 0)),
            pl.BlockSpec((1, Cin), lambda n: (0, 0)),
            pl.BlockSpec((9, Cin, Cout), lambda n: (0, 0, 0)),
        ],
        out_specs=(
            pl.BlockSpec((1, Hf_out, Cout), lambda n: (n, 0, 0)),
            pl.BlockSpec((1, 1, Cout), lambda n: (n, 0, 0)),
            pl.BlockSpec((1, 1, Cout), lambda n: (n, 0, 0)),
        ),
        scratch_shapes=scratch,
        compiler_params=pltpu.CompilerParams(
            dimension_semantics=("parallel",)),
    )(x_flat, scale, shift, w9)


def _bn_relu_apply(y_flat, scale, shift):
    """BN-apply + ReLU on (N, Hf, C); lane-dense (last dim 128) when possible."""
    N, Hf, C = y_flat.shape
    cparams = pltpu.CompilerParams(dimension_semantics=("parallel",))
    if (Hf * C) % 128 == 0 and 128 % C == 0:
        # Lane-dense path: reshape so the stored last dim is exactly 128 lanes.
        L = (Hf * C) // 128
        rep = 128 // C
        x = y_flat.reshape(N, L, 128)
        sc = jnp.tile(scale, rep).reshape(1, 1, 128)
        sh = jnp.tile(shift, rep).reshape(1, 1, 128)
        out = pl.pallas_call(
            _scale_shift_relu_kernel,
            out_shape=jax.ShapeDtypeStruct((N, L, 128), y_flat.dtype),
            grid=(N,),
            in_specs=[
                pl.BlockSpec((1, L, 128), lambda n: (n, 0, 0)),
                pl.BlockSpec((1, 1, 128), lambda n: (0, 0, 0)),
                pl.BlockSpec((1, 1, 128), lambda n: (0, 0, 0)),
            ],
            out_specs=pl.BlockSpec((1, L, 128), lambda n: (n, 0, 0)),
            compiler_params=cparams,
        )(x, sc, sh)
        return out.reshape(N, Hf, C)
    # Fallback: channels-last (lane-sparse) layout.
    sc = scale.reshape(1, 1, C)
    sh = shift.reshape(1, 1, C)
    return pl.pallas_call(
        _scale_shift_relu_kernel,
        out_shape=jax.ShapeDtypeStruct((N, Hf, C), y_flat.dtype),
        grid=(N,),
        in_specs=[
            pl.BlockSpec((1, Hf, C), lambda n: (n, 0, 0)),
            pl.BlockSpec((1, 1, C), lambda n: (0, 0, 0)),
            pl.BlockSpec((1, 1, C), lambda n: (0, 0, 0)),
        ],
        out_specs=pl.BlockSpec((1, Hf, C), lambda n: (n, 0, 0)),
        compiler_params=cparams,
    )(y_flat, sc, sh)


def _bn_scale_shift(sum_n1c, ssq_n1c, count, gamma, beta, eps):
    """Finish training-mode BN stats from per-image partial sums (tiny, f32)."""
    total = jnp.sum(sum_n1c, axis=(0, 1))
    total_sq = jnp.sum(ssq_n1c, axis=(0, 1))
    mean = total / count
    var = jnp.maximum(total_sq / count - mean * mean, 0.0)  # biased variance
    scale = gamma * jax.lax.rsqrt(var + eps)
    shift = beta - mean * scale
    return scale.astype(jnp.float32), shift.astype(jnp.float32)


def double_conv(x_nchw, params, eps=1e-5):
    """DoubleConv forward: NCHW in -> NCHW out (training-mode BatchNorm)."""
    (w1, g1, b1), (w2, g2, b2) = params
    N, Cin, H, W = x_nchw.shape
    C1 = w1.shape[-1]
    C2 = w2.shape[-1]
    Ho1, Wo1 = H - 2, W - 2
    Ho2, Wo2 = H - 4, W - 4
    M1, M2 = Ho1 * W, Ho2 * W

    # NCHW -> NHWC -> wide-flat (index = h*W + w), zero-padded so every tap
    # slice of the first conv stays in bounds.
    x = jnp.transpose(x_nchw, (0, 2, 3, 1)).reshape(N, H * W, Cin)
    Hf0 = _round_up(H * W + 2, 8)
    x = jnp.pad(x, ((0, 0), (0, Hf0 - H * W), (0, 0)))

    ones = jnp.ones((1, Cin), jnp.float32)
    zeros = jnp.zeros((1, Cin), jnp.float32)
    w1_9 = w1.reshape(9, Cin, C1)
    w2_9 = w2.reshape(9, C1, C2)

    # Pass 1: conv1 + per-image BN1 stat partials.
    Hf1 = _round_up(M1 + 2, 8)              # pad rows for conv2's tap slices
    y1, s1, q1 = _conv3x3_wide(x, w1_9, ones, zeros, W=W, Wv_out=Wo1,
                               M_out=M1, Hf_out=Hf1, relu_prologue=False)
    scale1, shift1 = _bn_scale_shift(s1, q1, N * Ho1 * Wo1, g1, b1, eps)

    # Pass 2: fused BN1-apply + ReLU prologue, conv2, BN2 stat partials.
    Hf2 = _round_up(M2, 8)
    y2, s2, q2 = _conv3x3_wide(y1, w2_9, scale1.reshape(1, C1),
                               shift1.reshape(1, C1), W=W, Wv_out=Wo2,
                               M_out=M2, Hf_out=Hf2, relu_prologue=True)
    scale2, shift2 = _bn_scale_shift(s2, q2, N * Ho2 * Wo2, g2, b2, eps)

    # Pass 3: BN2-apply + ReLU on a lane-dense view of the activation.
    y2 = _bn_relu_apply(y2, scale2, shift2)

    # Crop the wide-flat layout back to the true spatial extent, NHWC -> NCHW.
    out = y2[:, :M2, :].reshape(N, Ho2, W, C2)[:, :, :Wo2, :]
    return jnp.transpose(out, (0, 3, 1, 2))


# ----------------------------------------------------------------------------
# Pure-JAX reference (for correctness check)
# ----------------------------------------------------------------------------
def _ref_conv(x, w):
    return jax.lax.conv_general_dilated(
        x, w, window_strides=(1, 1), padding="VALID",
        dimension_numbers=("NHWC", "HWIO", "NHWC"),
        precision=jax.lax.Precision.HIGHEST)


def _ref_bn_relu(y, gamma, beta, eps=1e-5):
    mean = jnp.mean(y, axis=(0, 1, 2))
    var = jnp.var(y, axis=(0, 1, 2))            # biased, matches PyTorch norm
    return jnp.maximum((y - mean) / jnp.sqrt(var + eps) * gamma + beta, 0.0)


def ref_double_conv(x_nchw, params, eps=1e-5):
    (w1, g1, b1), (w2, g2, b2) = params
    x = jnp.transpose(x_nchw, (0, 2, 3, 1))
    y = _ref_bn_relu(_ref_conv(x, w1), g1, b1, eps)
    y = _ref_bn_relu(_ref_conv(y, w2), g2, b2, eps)
    return jnp.transpose(y, (0, 3, 1, 2))


# ----------------------------------------------------------------------------
# Demo
# ----------------------------------------------------------------------------
if __name__ == "__main__":
    key = jax.random.PRNGKey(0)
    N, Cin, H, W = 2, 4, 16, 16
    Cout = 8

    k_x, k_w1, k_w2 = jax.random.split(key, 3)
    x = jax.random.normal(k_x, (N, Cin, H, W), jnp.float32)
    # Conv weights stored HWIO (= PyTorch (Cout, Cin, 3, 3) permuted).
    w1 = 0.1 * jax.random.normal(k_w1, (3, 3, Cin, Cout), jnp.float32)
    w2 = 0.1 * jax.random.normal(k_w2, (3, 3, Cout, Cout), jnp.float32)
    g1 = jnp.ones((Cout,), jnp.float32)   # BatchNorm2d default init: weight=1
    b1 = jnp.zeros((Cout,), jnp.float32)  # bias=0
    g2 = jnp.ones((Cout,), jnp.float32)
    b2 = jnp.zeros((Cout,), jnp.float32)
    params = ((w1, g1, b1), (w2, g2, b2))

    out = jax.block_until_ready(jax.jit(double_conv)(x, params))
    ref = jax.block_until_ready(ref_double_conv(x, params))

    assert out.shape == ref.shape == (N, Cout, H - 4, W - 4), (out.shape, ref.shape)
    max_err = float(jnp.max(jnp.abs(out - ref)))
    assert jnp.allclose(out, ref, atol=2e-3, rtol=2e-3), max_err
    print("KERNEL_OK")
</pallas_src>

<mosaic_0001>
module attributes {stable_mosaic.version = 11 : i64} {
  func.func @_conv3x3_wide_kernel(%arg0: i32, %arg1: memref<1x264x4xf32, #tpu.memory_space<vmem>>, %arg2: memref<1x4xf32, #tpu.memory_space<vmem>>, %arg3: memref<1x4xf32, #tpu.memory_space<vmem>>, %arg4: memref<9x4x8xf32, #tpu.memory_space<vmem>>, %arg5: memref<1x232x8xf32, #tpu.memory_space<vmem>>, %arg6: memref<1x1x8xf32, #tpu.memory_space<vmem>>, %arg7: memref<1x1x8xf32, #tpu.memory_space<vmem>>) attributes {dimension_semantics = [#tpu.dimension_semantics<parallel>], iteration_bounds = array<i64: 2>, scalar_prefetch = 0 : i64, scratch_operands = 0 : i64, tpu.core_type = #tpu.core_type<tc>, window_params = [{transform_indices = @transform_0, window_bounds = array<i64: 1, 264, 4>}, {pipeline_mode = #tpu.pipeline_mode<synchronous>, transform_indices = @transform_1, window_bounds = array<i64: 1, 4>}, {pipeline_mode = #tpu.pipeline_mode<synchronous>, transform_indices = @transform_2, window_bounds = array<i64: 1, 4>}, {pipeline_mode = #tpu.pipeline_mode<synchronous>, transform_indices = @transform_3, window_bounds = array<i64: 9, 4, 8>}, {transform_indices = @transform_4, window_bounds = array<i64: 1, 232, 8>}, {transform_indices = @transform_5, window_bounds = array<i64: 1, 1, 8>}, {transform_indices = @transform_6, window_bounds = array<i64: 1, 1, 8>}]} {
    %cst = arith.constant 0.000000e+00 : f32
    %0 = vector.broadcast %cst : f32 to vector<224x8xf32>
    %c0 = arith.constant 0 : index
    %c0_0 = arith.constant 0 : index
    %c0_1 = arith.constant 0 : index
    %1 = vector.load %arg1[%c0, %c0_0, %c0_1] : memref<1x264x4xf32, #tpu.memory_space<vmem>>, vector<1x224x4xf32>
    %2 = vector.shape_cast %1 : vector<1x224x4xf32> to vector<224x4xf32>
    %c0_2 = arith.constant 0 : index
    %c0_3 = arith.constant 0 : index
    %c0_4 = arith.constant 0 : index
    %3 = vector.load %arg4[%c0_2, %c0_3, %c0_4] : memref<9x4x8xf32, #tpu.memory_space<vmem>>, vector<1x4x8xf32>
    %4 = vector.shape_cast %3 : vector<1x4x8xf32> to vector<4x8xf32>
    %cst_5 = arith.constant dense<0.000000e+00> : vector<224x8xf32>
    %5 = tpu.matmul %2, %4, %cst_5 {dimension_numbers = #tpu.dot_dimension_numbers<[1], [0], [0], [1], [0, 0, 1, 1], [], []>} : vector<224x4xf32>, vector<4x8xf32>, vector<224x8xf32> -> vector<224x8xf32>
    %6 = arith.addf %0, %5 : vector<224x8xf32>
    %c0_6 = arith.constant 0 : index
    %c1 = arith.constant 1 : index
    %c0_7 = arith.constant 0 : index
    %7 = vector.load %arg1[%c0_6, %c1, %c0_7] : memref<1x264x4xf32, #tpu.memory_space<vmem>>, vector<1x224x4xf32>
    %8 = vector.shape_cast %7 : vector<1x224x4xf32> to vector<224x4xf32>
    %c1_8 = arith.constant 1 : index
    %c0_9 = arith.constant 0 : index
    %c0_10 = arith.constant 0 : index
    %9 = vector.load %arg4[%c1_8, %c0_9, %c0_10] : memref<9x4x8xf32, #tpu.memory_space<vmem>>, vector<1x4x8xf32>
    %10 = vector.shape_cast %9 : vector<1x4x8xf32> to vector<4x8xf32>
    %cst_11 = arith.constant dense<0.000000e+00> : vector<224x8xf32>
    %11 = tpu.matmul %8, %10, %cst_11 {dimension_numbers = #tpu.dot_dimension_numbers<[1], [0], [0], [1], [0, 0, 1, 1], [], []>} : vector<224x4xf32>, vector<4x8xf32>, vector<224x8xf32> -> vector<224x8xf32>
    %12 = arith.addf %6, %11 : vector<224x8xf32>
    %c0_12 = arith.constant 0 : index
    %c2 = arith.constant 2 : index
    %c0_13 = arith.constant 0 : index
    %13 = vector.load %arg1[%c0_12, %c2, %c0_13] : memref<1x264x4xf32, #tpu.memory_space<vmem>>, vector<1x224x4xf32>
    %14 = vector.shape_cast %13 : vector<1x224x4xf32> to vector<224x4xf32>
    %c2_14 = arith.constant 2 : index
    %c0_15 = arith.constant 0 : index
    %c0_16 = arith.constant 0 : index
    %15 = vector.load %arg4[%c2_14, %c0_15, %c0_16] : memref<9x4x8xf32, #tpu.memory_space<vmem>>, vector<1x4x8xf32>
    %16 = vector.shape_cast %15 : vector<1x4x8xf32> to vector<4x8xf32>
    %cst_17 = arith.constant dense<0.000000e+00> : vector<224x8xf32>
    %17 = tpu.matmul %14, %16, %cst_17 {dimension_numbers = #tpu.dot_dimension_numbers<[1], [0], [0], [1], [0, 0, 1, 1], [], []>} : vector<224x4xf32>, vector<4x8xf32>, vector<224x8xf32> -> vector<224x8xf32>
    %18 = arith.addf %12, %17 : vector<224x8xf32>
    %c0_18 = arith.constant 0 : index
    %c16 = arith.constant 16 : index
    %c0_19 = arith.constant 0 : index
    %19 = vector.load %arg1[%c0_18, %c16, %c0_19] : memref<1x264x4xf32, #tpu.memory_space<vmem>>, vector<1x224x4xf32>
    %20 = vector.shape_cast %19 : vector<1x224x4xf32> to vector<224x4xf32>
    %c3 = arith.constant 3 : index
    %c0_20 = arith.constant 0 : index
    %c0_21 = arith.constant 0 : index
    %21 = vector.load %arg4[%c3, %c0_20, %c0_21] : memref<9x4x8xf32, #tpu.memory_space<vmem>>, vector<1x4x8xf32>
    %22 = vector.shape_cast %21 : vector<1x4x8xf32> to vector<4x8xf32>
    %cst_22 = arith.constant dense<0.000000e+00> : vector<224x8xf32>
    %23 = tpu.matmul %20, %22, %cst_22 {dimension_numbers = #tpu.dot_dimension_numbers<[1], [0], [0], [1], [0, 0, 1, 1], [], []>} : vector<224x4xf32>, vector<4x8xf32>, vector<224x8xf32> -> vector<224x8xf32>
    %24 = arith.addf %18, %23 : vector<224x8xf32>
    %c0_23 = arith.constant 0 : index
    %c17 = arith.constant 17 : index
    %c0_24 = arith.constant 0 : index
    %25 = vector.load %arg1[%c0_23, %c17, %c0_24] : memref<1x264x4xf32, #tpu.memory_space<vmem>>, vector<1x224x4xf32>
    %26 = vector.shape_cast %25 : vector<1x224x4xf32> to vector<224x4xf32>
    %c4 = arith.constant 4 : index
    %c0_25 = arith.constant 0 : index
    %c0_26 = arith.constant 0 : index
    %27 = vector.load %arg4[%c4, %c0_25, %c0_26] : memref<9x4x8xf32, #tpu.memory_space<vmem>>, vector<1x4x8xf32>
    %28 = vector.shape_cast %27 : vector<1x4x8xf32> to vector<4x8xf32>
    %cst_27 = arith.constant dense<0.000000e+00> : vector<224x8xf32>
    %29 = tpu.matmul %26, %28, %cst_27 {dimension_numbers = #tpu.dot_dimension_numbers<[1], [0], [0], [1], [0, 0, 1, 1], [], []>} : vector<224x4xf32>, vector<4x8xf32>, vector<224x8xf32> -> vector<224x8xf32>
    %30 = arith.addf %24, %29 : vector<224x8xf32>
    %c0_28 = arith.constant 0 : index
    %c18 = arith.constant 18 : index
    %c0_29 = arith.constant 0 : index
    %31 = vector.load %arg1[%c0_28, %c18, %c0_29] : memref<1x264x4xf32, #tpu.memory_space<vmem>>, vector<1x224x4xf32>
    %32 = vector.shape_cast %31 : vector<1x224x4xf32> to vector<224x4xf32>
    %c5 = arith.constant 5 : index
    %c0_30 = arith.constant 0 : index
    %c0_31 = arith.constant 0 : index
    %33 = vector.load %arg4[%c5, %c0_30, %c0_31] : memref<9x4x8xf32, #tpu.memory_space<vmem>>, vector<1x4x8xf32>
    %34 = vector.shape_cast %33 : vector<1x4x8xf32> to vector<4x8xf32>
    %cst_32 = arith.constant dense<0.000000e+00> : vector<224x8xf32>
    %35 = tpu.matmul %32, %34, %cst_32 {dimension_numbers = #tpu.dot_dimension_numbers<[1], [0], [0], [1], [0, 0, 1, 1], [], []>} : vector<224x4xf32>, vector<4x8xf32>, vector<224x8xf32> -> vector<224x8xf32>
    %36 = arith.addf %30, %35 : vector<224x8xf32>
    %c0_33 = arith.constant 0 : index
    %c32 = arith.constant 32 : index
    %c0_34 = arith.constant 0 : index
    %37 = vector.load %arg1[%c0_33, %c32, %c0_34] : memref<1x264x4xf32, #tpu.memory_space<vmem>>, vector<1x224x4xf32>
    %38 = vector.shape_cast %37 : vector<1x224x4xf32> to vector<224x4xf32>
    %c6 = arith.constant 6 : index
    %c0_35 = arith.constant 0 : index
    %c0_36 = arith.constant 0 : index
    %39 = vector.load %arg4[%c6, %c0_35, %c0_36] : memref<9x4x8xf32, #tpu.memory_space<vmem>>, vector<1x4x8xf32>
    %40 = vector.shape_cast %39 : vector<1x4x8xf32> to vector<4x8xf32>
    %cst_37 = arith.constant dense<0.000000e+00> : vector<224x8xf32>
    %41 = tpu.matmul %38, %40, %cst_37 {dimension_numbers = #tpu.dot_dimension_numbers<[1], [0], [0], [1], [0, 0, 1, 1], [], []>} : vector<224x4xf32>, vector<4x8xf32>, vector<224x8xf32> -> vector<224x8xf32>
    %42 = arith.addf %36, %41 : vector<224x8xf32>
    %c0_38 = arith.constant 0 : index
    %c33 = arith.constant 33 : index
    %c0_39 = arith.constant 0 : index
    %43 = vector.load %arg1[%c0_38, %c33, %c0_39] : memref<1x264x4xf32, #tpu.memory_space<vmem>>, vector<1x224x4xf32>
    %44 = vector.shape_cast %43 : vector<1x224x4xf32> to vector<224x4xf32>
    %c7 = arith.constant 7 : index
    %c0_40 = arith.constant 0 : index
    %c0_41 = arith.constant 0 : index
    %45 = vector.load %arg4[%c7, %c0_40, %c0_41] : memref<9x4x8xf32, #tpu.memory_space<vmem>>, vector<1x4x8xf32>
    %46 = vector.shape_cast %45 : vector<1x4x8xf32> to vector<4x8xf32>
    %cst_42 = arith.constant dense<0.000000e+00> : vector<224x8xf32>
    %47 = tpu.matmul %44, %46, %cst_42 {dimension_numbers = #tpu.dot_dimension_numbers<[1], [0], [0], [1], [0, 0, 1, 1], [], []>} : vector<224x4xf32>, vector<4x8xf32>, vector<224x8xf32> -> vector<224x8xf32>
    %48 = arith.addf %42, %47 : vector<224x8xf32>
    %c0_43 = arith.constant 0 : index
    %c34 = arith.constant 34 : index
    %c0_44 = arith.constant 0 : index
    %49 = vector.load %arg1[%c0_43, %c34, %c0_44] : memref<1x264x4xf32, #tpu.memory_space<vmem>>, vector<1x224x4xf32>
    %50 = vector.shape_cast %49 : vector<1x224x4xf32> to vector<224x4xf32>
    %c8 = arith.constant 8 : index
    %c0_45 = arith.constant 0 : index
    %c0_46 = arith.constant 0 : index
    %51 = vector.load %arg4[%c8, %c0_45, %c0_46] : memref<9x4x8xf32, #tpu.memory_space<vmem>>, vector<1x4x8xf32>
    %52 = vector.shape_cast %51 : vector<1x4x8xf32> to vector<4x8xf32>
    %cst_47 = arith.constant dense<0.000000e+00> : vector<224x8xf32>
    %53 = tpu.matmul %50, %52, %cst_47 {dimension_numbers = #tpu.dot_dimension_numbers<[1], [0], [0], [1], [0, 0, 1, 1], [], []>} : vector<224x4xf32>, vector<4x8xf32>, vector<224x8xf32> -> vector<224x8xf32>
    %54 = arith.addf %48, %53 : vector<224x8xf32>
    %55 = tpu.iota {dimensions = array<i32: 0>} : vector<224x1xi32>
    %c16_i32 = arith.constant 16 : i32
    %c0_i32 = arith.constant 0 : i32
    %56 = arith.cmpi eq, %c16_i32, %c0_i32 : i32
    %c1_i32 = arith.constant 1 : i32
    %57 = arith.select %56, %c1_i32, %c16_i32 : i32
    %58 = vector.broadcast %57 : i32 to vector<224x1xi32>
    %59 = arith.remsi %55, %58 : vector<224x1xi32>
    %c0_i32_48 = arith.constant 0 : i32
    %60 = vector.broadcast %c0_i32_48 : i32 to vector<224x1xi32>
    %61 = arith.cmpi ne, %59, %60 : vector<224x1xi32>
    %c0_i32_49 = arith.constant 0 : i32
    %62 = vector.broadcast %c0_i32_49 : i32 to vector<224x1xi32>
    %63 = arith.cmpi slt, %59, %62 : vector<224x1xi32>
    %c0_i32_50 = arith.constant 0 : i32
    %64 = arith.cmpi slt, %57, %c0_i32_50 : i32
    %65 = vector.broadcast %64 : i1 to vector<224x1xi1>
    %66 = vector.broadcast %65 : vector<224x1xi1> to vector<224x1xi1>
    %67 = arith.xori %63, %66 : vector<224x1xi1>
    %68 = arith.andi %67, %61 : vector<224x1xi1>
    %69 = vector.broadcast %57 : i32 to vector<224x1xi32>
    %70 = arith.addi %59, %69 : vector<224x1xi32>
    %71 = arith.select %68, %70, %59 : vector<224x1xi1>, vector<224x1xi32>
    %c14_i32 = arith.constant 14 : i32
    %72 = vector.broadcast %c14_i32 : i32 to vector<224x1xi32>
    %73 = arith.cmpi slt, %71, %72 : vector<224x1xi32>
    %cst_51 = arith.constant 0.000000e+00 : f32
    %74 = vector.shape_cast %73 : vector<224x1xi1> to vector<224x1xi1>
    %75 = vector.broadcast %74 : vector<224x1xi1> to vector<224x8xi1>
    %76 = vector.broadcast %cst_51 : f32 to vector<224x8xf32>
    %77 = arith.select %75, %54, %76 : vector<224x8xi1>, vector<224x8xf32>
    %c0_52 = arith.constant 0 : index
    %c0_53 = arith.constant 0 : index
    %c0_54 = arith.constant 0 : index
    %78 = vector.load %arg5[%c0_52, %c0_53, %c0_54] : memref<1x232x8xf32, #tpu.memory_space<vmem>>, vector<1x224x8xf32>
    %79 = vector.shape_cast %78 : vector<1x224x8xf32> to vector<224x8xf32>
    %80 = vector.shape_cast %77 : vector<224x8xf32> to vector<1x224x8xf32>
    tpu.vector_store %arg5[%c0_52, %c0_53, %c0_54], %80 {strides = array<i32>} : memref<1x232x8xf32, #tpu.memory_space<vmem>>, vector<1x224x8xf32>,
    %cst_55 = arith.constant 0.000000e+00 : f32
    %81 = vector.broadcast %cst_55 : f32 to vector<8x8xf32>
    %c0_56 = arith.constant 0 : index
    %c224 = arith.constant 224 : index
    %c0_57 = arith.constant 0 : index
    %82 = vector.load %arg5[%c0_56, %c224, %c0_57] : memref<1x232x8xf32, #tpu.memory_space<vmem>>, vector<1x8x8xf32>
    %83 = vector.shape_cast %82 : vector<1x8x8xf32> to vector<8x8xf32>
    %84 = vector.shape_cast %81 : vector<8x8xf32> to vector<1x8x8xf32>
    tpu.vector_store %arg5[%c0_56, %c224, %c0_57], %84 {strides = array<i32>} : memref<1x232x8xf32, #tpu.memory_space<vmem>>, vector<1x8x8xf32>,
    %cst_58 = arith.constant dense<0.000000e+00> : vector<8xf32>
    %85 = vector.multi_reduction <add>, %77, %cst_58 [0] : vector<224x8xf32> to vector<8xf32>
    %86 = vector.shape_cast %85 : vector<8xf32> to vector<1x8xf32>
    %c0_59 = arith.constant 0 : index
    %c0_60 = arith.constant 0 : index
    %c0_61 = arith.constant 0 : index
    %87 = vector.load %arg6[%c0_59, %c0_60, %c0_61] : memref<1x1x8xf32, #tpu.memory_space<vmem>>, vector<1x1x8xf32>
    %88 = vector.shape_cast %87 : vector<1x1x8xf32> to vector<1x8xf32>
    %89 = vector.shape_cast %86 : vector<1x8xf32> to vector<1x1x8xf32>
    tpu.vector_store %arg6[%c0_59, %c0_60, %c0_61], %89 {strides = array<i32>} : memref<1x1x8xf32, #tpu.memory_space<vmem>>, vector<1x1x8xf32>,
    %90 = arith.mulf %77, %77 : vector<224x8xf32>
    %cst_62 = arith.constant dense<0.000000e+00> : vector<8xf32>
    %91 = vector.multi_reduction <add>, %90, %cst_62 [0] : vector<224x8xf32> to vector<8xf32>
    %92 = vector.shape_cast %91 : vector<8xf32> to vector<1x8xf32>
    %c0_63 = arith.constant 0 : index
    %c0_64 = arith.constant 0 : index
    %c0_65 = arith.constant 0 : index
    %93 = vector.load %arg7[%c0_63, %c0_64, %c0_65] : memref<1x1x8xf32, #tpu.memory_space<vmem>>, vector<1x1x8xf32>
    %94 = vector.shape_cast %93 : vector<1x1x8xf32> to vector<1x8xf32>
    %95 = vector.shape_cast %92 : vector<1x8xf32> to vector<1x1x8xf32>
    tpu.vector_store %arg7[%c0_63, %c0_64, %c0_65], %95 {strides = array<i32>} : memref<1x1x8xf32, #tpu.memory_space<vmem>>, vector<1x1x8xf32>,
    return
  }
  func.func @transform_0(%arg0: i32) -> (i32, i32, i32) {
    %c0_i32 = arith.constant 0 : i32
    %c0_i32_0 = arith.constant 0 : i32
    %c0_i32_1 = arith.constant 0 : i32
    return %arg0, %c0_i32, %c0_i32_0 : i32, i32, i32
  }
  func.func @transform_1(%arg0: i32) -> (i32, i32) {
    %c0_i32 = arith.constant 0 : i32
    %c0_i32_0 = arith.constant 0 : i32
    %c0_i32_1 = arith.constant 0 : i32
    return %c0_i32, %c0_i32_0 : i32, i32
  }
  func.func @transform_2(%arg0: i32) -> (i32, i32) {
    %c0_i32 = arith.constant 0 : i32
    %c0_i32_0 = arith.constant 0 : i32
    %c0_i32_1 = arith.constant 0 : i32
    return %c0_i32, %c0_i32_0 : i32, i32
  }
  func.func @transform_3(%arg0: i32) -> (i32, i32, i32) {
    %c0_i32 = arith.constant 0 : i32
    %c0_i32_0 = arith.constant 0 : i32
    %c0_i32_1 = arith.constant 0 : i32
    %c0_i32_2 = arith.constant 0 : i32
    return %c0_i32, %c0_i32_0, %c0_i32_1 : i32, i32, i32
  }
  func.func @transform_4(%arg0: i32) -> (i32, i32, i32) {
    %c0_i32 = arith.constant 0 : i32
    %c0_i32_0 = arith.constant 0 : i32
    %c0_i32_1 = arith.constant 0 : i32
    return %arg0, %c0_i32, %c0_i32_0 : i32, i32, i32
  }
  func.func @transform_5(%arg0: i32) -> (i32, i32, i32) {
    %c0_i32 = arith.constant 0 : i32
    %c0_i32_0 = arith.constant 0 : i32
    %c0_i32_1 = arith.constant 0 : i32
    return %arg0, %c0_i32, %c0_i32_0 : i32, i32, i32
  }
  func.func @transform_6(%arg0: i32) -> (i32, i32, i32) {
    %c0_i32 = arith.constant 0 : i32
    %c0_i32_0 = arith.constant 0 : i32
    %c0_i32_1 = arith.constant 0 : i32
    return %arg0, %c0_i32, %c0_i32_0 : i32, i32, i32
  }
}

module attributes {stable_mosaic.version = 11 : i64} {
  func.func @_scale_shift_relu_kernel(%arg0: i32, %arg1: memref<1x12x128xf32, #tpu.memory_space<vmem>>, %arg2: memref<1x1x128xf32, #tpu.memory_space<vmem>>, %arg3: memref<1x1x128xf32, #tpu.memory_space<vmem>>, %arg4: memref<1x12x128xf32, #tpu.memory_space<vmem>>) attributes {dimension_semantics = [#tpu.dimension_semantics<parallel>], iteration_bounds = array<i64: 2>, scalar_prefetch = 0 : i64, scratch_operands = 0 : i64, tpu.core_type = #tpu.core_type<tc>, window_params = [{transform_indices = @transform_0, window_bounds = array<i64: 1, 12, 128>}, {pipeline_mode = #tpu.pipeline_mode<synchronous>, transform_indices = @transform_1, window_bounds = array<i64: 1, 1, 128>}, {pipeline_mode = #tpu.pipeline_mode<synchronous>, transform_indices = @transform_2, window_bounds = array<i64: 1, 1, 128>}, {transform_indices = @transform_3, window_bounds = array<i64: 1, 12, 128>}]} {
    %c0 = arith.constant 0 : index
    %c0_0 = arith.constant 0 : index
    %c0_1 = arith.constant 0 : index
    %0 = vector.load %arg1[%c0, %c0_0, %c0_1] : memref<1x12x128xf32, #tpu.memory_space<vmem>>, vector<1x12x128xf32>
    %c0_2 = arith.constant 0 : index
    %c0_3 = arith.constant 0 : index
    %c0_4 = arith.constant 0 : index
    %1 = vector.load %arg2[%c0_2, %c0_3, %c0_4] : memref<1x1x128xf32, #tpu.memory_space<vmem>>, vector<1x1x128xf32>
    %2 = vector.broadcast %1 : vector<1x1x128xf32> to vector<1x12x128xf32>
    %3 = arith.mulf %0, %2 : vector<1x12x128xf32>
    %c0_5 = arith.constant 0 : index
    %c0_6 = arith.constant 0 : index
    %c0_7 = arith.constant 0 : index
    %4 = vector.load %arg3[%c0_5, %c0_6, %c0_7] : memref<1x1x128xf32, #tpu.memory_space<vmem>>, vector<1x1x128xf32>
    %5 = vector.broadcast %4 : vector<1x1x128xf32> to vector<1x12x128xf32>
    %6 = arith.addf %3, %5 : vector<1x12x128xf32>
    %cst = arith.constant 0.000000e+00 : f32
    %7 = vector.broadcast %cst : f32 to vector<1x12x128xf32>
    %8 = arith.maximumf %6, %7 : vector<1x12x128xf32>
    %c0_8 = arith.constant 0 : index
    %c0_9 = arith.constant 0 : index
    %c0_10 = arith.constant 0 : index
    %9 = vector.load %arg4[%c0_8, %c0_9, %c0_10] : memref<1x12x128xf32, #tpu.memory_space<vmem>>, vector<1x12x128xf32>
    tpu.vector_store %arg4[%c0_8, %c0_9, %c0_10], %8 {strides = array<i32>} : memref<1x12x128xf32, #tpu.memory_space<vmem>>, vector<1x12x128xf32>,
    return
  }
  func.func @transform_0(%arg0: i32) -> (i32, i32, i32) {
    %c0_i32 = arith.constant 0 : i32
    %c0_i32_0 = arith.constant 0 : i32
    %c0_i32_1 = arith.constant 0 : i32
    return %arg0, %c0_i32, %c0_i32_0 : i32, i32, i32
  }
  func.func @transform_1(%arg0: i32) -> (i32, i32, i32) {
    %c0_i32 = arith.constant 0 : i32
    %c0_i32_0 = arith.constant 0 : i32
    %c0_i32_1 = arith.constant 0 : i32
    %c0_i32_2 = arith.constant 0 : i32
    return %c0_i32, %c0_i32_0, %c0_i32_1 : i32, i32, i32
  }
  func.func @transform_2(%arg0: i32) -> (i32, i32, i32) {
    %c0_i32 = arith.constant 0 : i32
    %c0_i32_0 = arith.constant 0 : i32
    %c0_i32_1 = arith.constant 0 : i32
    %c0_i32_2 = arith.constant 0 : i32
    return %c0_i32, %c0_i32_0, %c0_i32_1 : i32, i32, i32
  }
  func.func @transform_3(%arg0: i32) -> (i32, i32, i32) {
    %c0_i32 = arith.constant 0 : i32
    %c0_i32_0 = arith.constant 0 : i32
    %c0_i32_1 = arith.constant 0 : i32
    return %arg0, %c0_i32, %c0_i32_0 : i32, i32, i32
  }
}

module attributes {stable_mosaic.version = 11 : i64} {
  func.func @_conv3x3_wide_kernel(%arg0: i32, %arg1: memref<1x232x8xf32, #tpu.memory_space<vmem>>, %arg2: memref<1x8xf32, #tpu.memory_space<vmem>>, %arg3: memref<1x8xf32, #tpu.memory_space<vmem>>, %arg4: memref<9x8x8xf32, #tpu.memory_space<vmem>>, %arg5: memref<1x192x8xf32, #tpu.memory_space<vmem>>, %arg6: memref<1x1x8xf32, #tpu.memory_space<vmem>>, %arg7: memref<1x1x8xf32, #tpu.memory_space<vmem>>, %arg8: memref<232x8xf32, #tpu.memory_space<vmem>>) attributes {dimension_semantics = [#tpu.dimension_semantics<parallel>], iteration_bounds = array<i64: 2>, scalar_prefetch = 0 : i64, scratch_operands = 1 : i64, tpu.core_type = #tpu.core_type<tc>, window_params = [{transform_indices = @transform_0, window_bounds = array<i64: 1, 232, 8>}, {pipeline_mode = #tpu.pipeline_mode<synchronous>, transform_indices = @transform_1, window_bounds = array<i64: 1, 8>}, {pipeline_mode = #tpu.pipeline_mode<synchronous>, transform_indices = @transform_2, window_bounds = array<i64: 1, 8>}, {pipeline_mode = #tpu.pipeline_mode<synchronous>, transform_indices = @transform_3, window_bounds = array<i64: 9, 8, 8>}, {transform_indices = @transform_4, window_bounds = array<i64: 1, 192, 8>}, {transform_indices = @transform_5, window_bounds = array<i64: 1, 1, 8>}, {transform_indices = @transform_6, window_bounds = array<i64: 1, 1, 8>}]} {
    %c0 = arith.constant 0 : index
    %c0_0 = arith.constant 0 : index
    %c0_1 = arith.constant 0 : index
    %0 = vector.load %arg1[%c0, %c0_0, %c0_1] : memref<1x232x8xf32, #tpu.memory_space<vmem>>, vector<1x232x8xf32>
    %1 = vector.shape_cast %0 : vector<1x232x8xf32> to vector<232x8xf32>
    %c0_2 = arith.constant 0 : index
    %c0_3 = arith.constant 0 : index
    %2 = vector.load %arg2[%c0_2, %c0_3] : memref<1x8xf32, #tpu.memory_space<vmem>>, vector<1x8xf32>
    %3 = vector.broadcast %2 : vector<1x8xf32> to vector<232x8xf32>
    %4 = arith.mulf %1, %3 : vector<232x8xf32>
    %c0_4 = arith.constant 0 : index
    %c0_5 = arith.constant 0 : index
    %5 = vector.load %arg3[%c0_4, %c0_5] : memref<1x8xf32, #tpu.memory_space<vmem>>, vector<1x8xf32>
    %6 = vector.broadcast %5 : vector<1x8xf32> to vector<232x8xf32>
    %7 = arith.addf %4, %6 : vector<232x8xf32>
    %cst = arith.constant 0.000000e+00 : f32
    %8 = vector.broadcast %cst : f32 to vector<232x8xf32>
    %9 = arith.maximumf %7, %8 : vector<232x8xf32>
    %c0_6 = arith.constant 0 : index
    %c0_7 = arith.constant 0 : index
    %10 = vector.load %arg8[%c0_6, %c0_7] : memref<232x8xf32, #tpu.memory_space<vmem>>, vector<232x8xf32>
    tpu.vector_store %arg8[%c0_6, %c0_7], %9 {strides = array<i32>} : memref<232x8xf32, #tpu.memory_space<vmem>>, vector<232x8xf32>,
    %cst_8 = arith.constant 0.000000e+00 : f32
    %11 = vector.broadcast %cst_8 : f32 to vector<192x8xf32>
    %c0_9 = arith.constant 0 : index
    %c0_10 = arith.constant 0 : index
    %12 = vector.load %arg8[%c0_9, %c0_10] : memref<232x8xf32, #tpu.memory_space<vmem>>, vector<192x8xf32>
    %c0_11 = arith.constant 0 : index
    %c0_12 = arith.constant 0 : index
    %c0_13 = arith.constant 0 : index
    %13 = vector.load %arg4[%c0_11, %c0_12, %c0_13] : memref<9x8x8xf32, #tpu.memory_space<vmem>>, vector<1x8x8xf32>
    %14 = vector.shape_cast %13 : vector<1x8x8xf32> to vector<8x8xf32>
    %cst_14 = arith.constant dense<0.000000e+00> : vector<192x8xf32>
    %15 = tpu.matmul %12, %14, %cst_14 {dimension_numbers = #tpu.dot_dimension_numbers<[1], [0], [0], [1], [0, 0, 1, 1], [], []>} : vector<192x8xf32>, vector<8x8xf32>, vector<192x8xf32> -> vector<192x8xf32>
    %16 = arith.addf %11, %15 : vector<192x8xf32>
    %c1 = arith.constant 1 : index
    %c0_15 = arith.constant 0 : index
    %17 = vector.load %arg8[%c1, %c0_15] : memref<232x8xf32, #tpu.memory_space<vmem>>, vector<192x8xf32>
    %c1_16 = arith.constant 1 : index
    %c0_17 = arith.constant 0 : index
    %c0_18 = arith.constant 0 : index
    %18 = vector.load %arg4[%c1_16, %c0_17, %c0_18] : memref<9x8x8xf32, #tpu.memory_space<vmem>>, vector<1x8x8xf32>
    %19 = vector.shape_cast %18 : vector<1x8x8xf32> to vector<8x8xf32>
    %cst_19 = arith.constant dense<0.000000e+00> : vector<192x8xf32>
    %20 = tpu.matmul %17, %19, %cst_19 {dimension_numbers = #tpu.dot_dimension_numbers<[1], [0], [0], [1], [0, 0, 1, 1], [], []>} : vector<192x8xf32>, vector<8x8xf32>, vector<192x8xf32> -> vector<192x8xf32>
    %21 = arith.addf %16, %20 : vector<192x8xf32>
    %c2 = arith.constant 2 : index
    %c0_20 = arith.constant 0 : index
    %22 = vector.load %arg8[%c2, %c0_20] : memref<232x8xf32, #tpu.memory_space<vmem>>, vector<192x8xf32>
    %c2_21 = arith.constant 2 : index
    %c0_22 = arith.constant 0 : index
    %c0_23 = arith.constant 0 : index
    %23 = vector.load %arg4[%c2_21, %c0_22, %c0_23] : memref<9x8x8xf32, #tpu.memory_space<vmem>>, vector<1x8x8xf32>
    %24 = vector.shape_cast %23 : vector<1x8x8xf32> to vector<8x8xf32>
    %cst_24 = arith.constant dense<0.000000e+00> : vector<192x8xf32>
    %25 = tpu.matmul %22, %24, %cst_24 {dimension_numbers = #tpu.dot_dimension_numbers<[1], [0], [0], [1], [0, 0, 1, 1], [], []>} : vector<192x8xf32>, vector<8x8xf32>, vector<192x8xf32> -> vector<192x8xf32>
    %26 = arith.addf %21, %25 : vector<192x8xf32>
    %c16 = arith.constant 16 : index
    %c0_25 = arith.constant 0 : index
    %27 = vector.load %arg8[%c16, %c0_25] : memref<232x8xf32, #tpu.memory_space<vmem>>, vector<192x8xf32>
    %c3 = arith.constant 3 : index
    %c0_26 = arith.constant 0 : index
    %c0_27 = arith.constant 0 : index
    %28 = vector.load %arg4[%c3, %c0_26, %c0_27] : memref<9x8x8xf32, #tpu.memory_space<vmem>>, vector<1x8x8xf32>
    %29 = vector.shape_cast %28 : vector<1x8x8xf32> to vector<8x8xf32>
    %cst_28 = arith.constant dense<0.000000e+00> : vector<192x8xf32>
    %30 = tpu.matmul %27, %29, %cst_28 {dimension_numbers = #tpu.dot_dimension_numbers<[1], [0], [0], [1], [0, 0, 1, 1], [], []>} : vector<192x8xf32>, vector<8x8xf32>, vector<192x8xf32> -> vector<192x8xf32>
    %31 = arith.addf %26, %30 : vector<192x8xf32>
    %c17 = arith.constant 17 : index
    %c0_29 = arith.constant 0 : index
    %32 = vector.load %arg8[%c17, %c0_29] : memref<232x8xf32, #tpu.memory_space<vmem>>, vector<192x8xf32>
    %c4 = arith.constant 4 : index
    %c0_30 = arith.constant 0 : index
    %c0_31 = arith.constant 0 : index
    %33 = vector.load %arg4[%c4, %c0_30, %c0_31] : memref<9x8x8xf32, #tpu.memory_space<vmem>>, vector<1x8x8xf32>
    %34 = vector.shape_cast %33 : vector<1x8x8xf32> to vector<8x8xf32>
    %cst_32 = arith.constant dense<0.000000e+00> : vector<192x8xf32>
    %35 = tpu.matmul %32, %34, %cst_32 {dimension_numbers = #tpu.dot_dimension_numbers<[1], [0], [0], [1], [0, 0, 1, 1], [], []>} : vector<192x8xf32>, vector<8x8xf32>, vector<192x8xf32> -> vector<192x8xf32>
    %36 = arith.addf %31, %35 : vector<192x8xf32>
    %c18 = arith.constant 18 : index
    %c0_33 = arith.constant 0 : index
    %37 = vector.load %arg8[%c18, %c0_33] : memref<232x8xf32, #tpu.memory_space<vmem>>, vector<192x8xf32>
    %c5 = arith.constant 5 : index
    %c0_34 = arith.constant 0 : index
    %c0_35 = arith.constant 0 : index
    %38 = vector.load %arg4[%c5, %c0_34, %c0_35] : memref<9x8x8xf32, #tpu.memory_space<vmem>>, vector<1x8x8xf32>
    %39 = vector.shape_cast %38 : vector<1x8x8xf32> to vector<8x8xf32>
    %cst_36 = arith.constant dense<0.000000e+00> : vector<192x8xf32>
    %40 = tpu.matmul %37, %39, %cst_36 {dimension_numbers = #tpu.dot_dimension_numbers<[1], [0], [0], [1], [0, 0, 1, 1], [], []>} : vector<192x8xf32>, vector<8x8xf32>, vector<192x8xf32> -> vector<192x8xf32>
    %41 = arith.addf %36, %40 : vector<192x8xf32>
    %c32 = arith.constant 32 : index
    %c0_37 = arith.constant 0 : index
    %42 = vector.load %arg8[%c32, %c0_37] : memref<232x8xf32, #tpu.memory_space<vmem>>, vector<192x8xf32>
    %c6 = arith.constant 6 : index
    %c0_38 = arith.constant 0 : index
    %c0_39 = arith.constant 0 : index
    %43 = vector.load %arg4[%c6, %c0_38, %c0_39] : memref<9x8x8xf32, #tpu.memory_space<vmem>>, vector<1x8x8xf32>
    %44 = vector.shape_cast %43 : vector<1x8x8xf32> to vector<8x8xf32>
    %cst_40 = arith.constant dense<0.000000e+00> : vector<192x8xf32>
    %45 = tpu.matmul %42, %44, %cst_40 {dimension_numbers = #tpu.dot_dimension_numbers<[1], [0], [0], [1], [0, 0, 1, 1], [], []>} : vector<192x8xf32>, vector<8x8xf32>, vector<192x8xf32> -> vector<192x8xf32>
    %46 = arith.addf %41, %45 : vector<192x8xf32>
    %c33 = arith.constant 33 : index
    %c0_41 = arith.constant 0 : index
    %47 = vector.load %arg8[%c33, %c0_41] : memref<232x8xf32, #tpu.memory_space<vmem>>, vector<192x8xf32>
    %c7 = arith.constant 7 : index
    %c0_42 = arith.constant 0 : index
    %c0_43 = arith.constant 0 : index
    %48 = vector.load %arg4[%c7, %c0_42, %c0_43] : memref<9x8x8xf32, #tpu.memory_space<vmem>>, vector<1x8x8xf32>
    %49 = vector.shape_cast %48 : vector<1x8x8xf32> to vector<8x8xf32>
    %cst_44 = arith.constant dense<0.000000e+00> : vector<192x8xf32>
    %50 = tpu.matmul %47, %49, %cst_44 {dimension_numbers = #tpu.dot_dimension_numbers<[1], [0], [0], [1], [0, 0, 1, 1], [], []>} : vector<192x8xf32>, vector<8x8xf32>, vector<192x8xf32> -> vector<192x8xf32>
    %51 = arith.addf %46, %50 : vector<192x8xf32>
    %c34 = arith.constant 34 : index
    %c0_45 = arith.constant 0 : index
    %52 = vector.load %arg8[%c34, %c0_45] : memref<232x8xf32, #tpu.memory_space<vmem>>, vector<192x8xf32>
    %c8 = arith.constant 8 : index
    %c0_46 = arith.constant 0 : index
    %c0_47 = arith.constant 0 : index
    %53 = vector.load %arg4[%c8, %c0_46, %c0_47] : memref<9x8x8xf32, #tpu.memory_space<vmem>>, vector<1x8x8xf32>
    %54 = vector.shape_cast %53 : vector<1x8x8xf32> to vector<8x8xf32>
    %cst_48 = arith.constant dense<0.000000e+00> : vector<192x8xf32>
    %55 = tpu.matmul %52, %54, %cst_48 {dimension_numbers = #tpu.dot_dimension_numbers<[1], [0], [0], [1], [0, 0, 1, 1], [], []>} : vector<192x8xf32>, vector<8x8xf32>, vector<192x8xf32> -> vector<192x8xf32>
    %56 = arith.addf %51, %55 : vector<192x8xf32>
    %57 = tpu.iota {dimensions = array<i32: 0>} : vector<192x1xi32>
    %c16_i32 = arith.constant 16 : i32
    %c0_i32 = arith.constant 0 : i32
    %58 = arith.cmpi eq, %c16_i32, %c0_i32 : i32
    %c1_i32 = arith.constant 1 : i32
    %59 = arith.select %58, %c1_i32, %c16_i32 : i32
    %60 = vector.broadcast %59 : i32 to vector<192x1xi32>
    %61 = arith.remsi %57, %60 : vector<192x1xi32>
    %c0_i32_49 = arith.constant 0 : i32
    %62 = vector.broadcast %c0_i32_49 : i32 to vector<192x1xi32>
    %63 = arith.cmpi ne, %61, %62 : vector<192x1xi32>
    %c0_i32_50 = arith.constant 0 : i32
    %64 = vector.broadcast %c0_i32_50 : i32 to vector<192x1xi32>
    %65 = arith.cmpi slt, %61, %64 : vector<192x1xi32>
    %c0_i32_51 = arith.constant 0 : i32
    %66 = arith.cmpi slt, %59, %c0_i32_51 : i32
    %67 = vector.broadcast %66 : i1 to vector<192x1xi1>
    %68 = vector.broadcast %67 : vector<192x1xi1> to vector<192x1xi1>
    %69 = arith.xori %65, %68 : vector<192x1xi1>
    %70 = arith.andi %69, %63 : vector<192x1xi1>
    %71 = vector.broadcast %59 : i32 to vector<192x1xi32>
    %72 = arith.addi %61, %71 : vector<192x1xi32>
    %73 = arith.select %70, %72, %61 : vector<192x1xi1>, vector<192x1xi32>
    %c12_i32 = arith.constant 12 : i32
    %74 = vector.broadcast %c12_i32 : i32 to vector<192x1xi32>
    %75 = arith.cmpi slt, %73, %74 : vector<192x1xi32>
    %cst_52 = arith.constant 0.000000e+00 : f32
    %76 = vector.shape_cast %75 : vector<192x1xi1> to vector<192x1xi1>
    %77 = vector.broadcast %76 : vector<192x1xi1> to vector<192x8xi1>
    %78 = vector.broadcast %cst_52 : f32 to vector<192x8xf32>
    %79 = arith.select %77, %56, %78 : vector<192x8xi1>, vector<192x8xf32>
    %c0_53 = arith.constant 0 : index
    %c0_54 = arith.constant 0 : index
    %c0_55 = arith.constant 0 : index
    %80 = vector.load %arg5[%c0_53, %c0_54, %c0_55] : memref<1x192x8xf32, #tpu.memory_space<vmem>>, vector<1x192x8xf32>
    %81 = vector.shape_cast %80 : vector<1x192x8xf32> to vector<192x8xf32>
    %82 = vector.shape_cast %79 : vector<192x8xf32> to vector<1x192x8xf32>
    tpu.vector_store %arg5[%c0_53, %c0_54, %c0_55], %82 {strides = array<i32>} : memref<1x192x8xf32, #tpu.memory_space<vmem>>, vector<1x192x8xf32>,
    %cst_56 = arith.constant dense<0.000000e+00> : vector<8xf32>
    %83 = vector.multi_reduction <add>, %79, %cst_56 [0] : vector<192x8xf32> to vector<8xf32>
    %84 = vector.shape_cast %83 : vector<8xf32> to vector<1x8xf32>
    %c0_57 = arith.constant 0 : index
    %c0_58 = arith.constant 0 : index
    %c0_59 = arith.constant 0 : index
    %85 = vector.load %arg6[%c0_57, %c0_58, %c0_59] : memref<1x1x8xf32, #tpu.memory_space<vmem>>, vector<1x1x8xf32>
    %86 = vector.shape_cast %85 : vector<1x1x8xf32> to vector<1x8xf32>
    %87 = vector.shape_cast %84 : vector<1x8xf32> to vector<1x1x8xf32>
    tpu.vector_store %arg6[%c0_57, %c0_58, %c0_59], %87 {strides = array<i32>} : memref<1x1x8xf32, #tpu.memory_space<vmem>>, vector<1x1x8xf32>,
    %88 = arith.mulf %79, %79 : vector<192x8xf32>
    %cst_60 = arith.constant dense<0.000000e+00> : vector<8xf32>
    %89 = vector.multi_reduction <add>, %88, %cst_60 [0] : vector<192x8xf32> to vector<8xf32>
    %90 = vector.shape_cast %89 : vector<8xf32> to vector<1x8xf32>
    %c0_61 = arith.constant 0 : index
    %c0_62 = arith.constant 0 : index
    %c0_63 = arith.constant 0 : index
    %91 = vector.load %arg7[%c0_61, %c0_62, %c0_63] : memref<1x1x8xf32, #tpu.memory_space<vmem>>, vector<1x1x8xf32>
    %92 = vector.shape_cast %91 : vector<1x1x8xf32> to vector<1x8xf32>
    %93 = vector.shape_cast %90 : vector<1x8xf32> to vector<1x1x8xf32>
    tpu.vector_store %arg7[%c0_61, %c0_62, %c0_63], %93 {strides = array<i32>} : memref<1x1x8xf32, #tpu.memory_space<vmem>>, vector<1x1x8xf32>,
    return
  }
  func.func @transform_0(%arg0: i32) -> (i32, i32, i32) {
    %c0_i32 = arith.constant 0 : i32
    %c0_i32_0 = arith.constant 0 : i32
    %c0_i32_1 = arith.constant 0 : i32
    return %arg0, %c0_i32, %c0_i32_0 : i32, i32, i32
  }
  func.func @transform_1(%arg0: i32) -> (i32, i32) {
    %c0_i32 = arith.constant 0 : i32
    %c0_i32_0 = arith.constant 0 : i32
    %c0_i32_1 = arith.constant 0 : i32
    return %c0_i32, %c0_i32_0 : i32, i32
  }
  func.func @transform_2(%arg0: i32) -> (i32, i32) {
    %c0_i32 = arith.constant 0 : i32
    %c0_i32_0 = arith.constant 0 : i32
    %c0_i32_1 = arith.constant 0 : i32
    return %c0_i32, %c0_i32_0 : i32, i32
  }
  func.func @transform_3(%arg0: i32) -> (i32, i32, i32) {
    %c0_i32 = arith.constant 0 : i32
    %c0_i32_0 = arith.constant 0 : i32
    %c0_i32_1 = arith.constant 0 : i32
    %c0_i32_2 = arith.constant 0 : i32
    return %c0_i32, %c0_i32_0, %c0_i32_1 : i32, i32, i32
  }
  func.func @transform_4(%arg0: i32) -> (i32, i32, i32) {
    %c0_i32 = arith.constant 0 : i32
    %c0_i32_0 = arith.constant 0 : i32
    %c0_i32_1 = arith.constant 0 : i32
    return %arg0, %c0_i32, %c0_i32_0 : i32, i32, i32
  }
  func.func @transform_5(%arg0: i32) -> (i32, i32, i32) {
    %c0_i32 = arith.constant 0 : i32
    %c0_i32_0 = arith.constant 0 : i32
    %c0_i32_1 = arith.constant 0 : i32
    return %arg0, %c0_i32, %c0_i32_0 : i32, i32, i32
  }
  func.func @transform_6(%arg0: i32) -> (i32, i32, i32) {
    %c0_i32 = arith.constant 0 : i32
    %c0_i32_0 = arith.constant 0 : i32
    %c0_i32_1 = arith.constant 0 : i32
    return %arg0, %c0_i32, %c0_i32_0 : i32, i32, i32
  }
}

</mosaic_0001>

<llo_original>
// kernel: tile.13
$region0: #{tile.13}
  #allocation0 [shape = 's32[1]{0}', space=sflag, size = 0x4, scoped, tag = 'scoped memory for tile.13']
  %s0 = inlined_call_operand.vmem [shape: f32[8], index: 0, kind: input, shape index: {}]
  %s1 = inlined_call_operand.vmem [shape: f32[16,8], index: 1, kind: output, shape index: {}]
  // Predicated region
  $region2: #{tile.13} parent=0 // pred_check
    _
  $region3: #{tile.13} parent=0 // pred_check_branch
    %3 = sbr.rel (0) target = $region5
  $region4: #{tile.13} parent=0 // pred_region
    _
  $region5: #{tile.13} parent=0 // pred_fallthru
    _
  %v4 = vld [vmem:[%s0] ss:$0 sm:$0xff]
  %5 = vst [vmem:[%s1] sm:$0xff] %v4
  %s6 = scalar_lea.vmem %s1, 8
  %7 = vst [vmem:[%s6] sm:$0xff] %v4

// kernel: tile.14
$region0: #{tile.14}
  %s0 = inlined_call_operand.vmem [shape: f32[16,8], index: 0, kind: input, shape index: {}]
  %s1 = inlined_call_operand.vmem [shape: f32[1,1,128], index: 1, kind: output, shape index: {}]
  $region1: #{tile.14} parent=0
    #allocation0 [shape = 'u8[4096]{0}', space=vmem, size = 0x1000, scoped, tag = 'scoped mem for output reshape']
    %v2 = vld [vmem:[%s0] sm:$0x1]
    %vm3 = vcmask 64512
    %4 = vst.msk [vmem:[#allocation0] sm:$0x1] %vm3, %v2
    %s5 = scalar_lea.vmem %s0, 15
    %v6 = vld [vmem:[%s5] sm:$0x1]
    %7 = vrot.lane.b32.xlu0 %v6, 120
    %v8 = vpop.permute.xlu0 %7
    %vm9 = vcmask 1048512
    %10 = vst.msk [vmem:[#allocation0] sm:$0x1] %vm9, %v8
    %s11 = scalar_lea.vmem %s0, 14
    %v12 = vld [vmem:[%s11] sm:$0x1]
    %13 = vrot.lane.b32.xlu0 %v12, 112
    %v14 = vpop.permute.xlu0 %13
    %vm15 = vcmask 982912
    %16 = vst.msk [vmem:[#allocation0] sm:$0x1] %vm15, %v14
    %s17 = scalar_lea.vmem %s0, 13
    %v18 = vld [vmem:[%s17] sm:$0x1]
    %19 = vrot.lane.b32.xlu0 %v18, 104
    %v20 = vpop.permute.xlu0 %19
    %vm21 = vcmask 917312
    %22 = vst.msk [vmem:[#allocation0] sm:$0x1] %vm21, %v20
    %s23 = scalar_lea.vmem %s0, 12
    %v24 = vld [vmem:[%s23] sm:$0x1]
    %25 = vrot.lane.b32.xlu0 %v24, 96
    %v26 = vpop.permute.xlu0 %25
    %vm27 = vcmask 851712
    %28 = vst.msk [vmem:[#allocation0] sm:$0x1] %vm27, %v26
    %s29 = scalar_lea.vmem %s0, 11
    %v30 = vld [vmem:[%s29] sm:$0x1]
    %31 = vrot.lane.b32.xlu0 %v30, 88
    %v32 = vpop.permute.xlu0 %31
    %vm33 = vcmask 786112
    %34 = vst.msk [vmem:[#allocation0] sm:$0x1] %vm33, %v32
    %s35 = scalar_lea.vmem %s0, 10
    %v36 = vld [vmem:[%s35] sm:$0x1]
    %37 = vrot.lane.b32.xlu0 %v36, 80
    %v38 = vpop.permute.xlu0 %37
    %vm39 = vcmask 720512
    %40 = vst.msk [vmem:[#allocation0] sm:$0x1] %vm39, %v38
    %s41 = scalar_lea.vmem %s0, 9
    %v42 = vld [vmem:[%s41] sm:$0x1]
    %43 = vrot.lane.b32.xlu0 %v42, 72
    %v44 = vpop.permute.xlu0 %43
    %vm45 = vcmask 654912
    %46 = vst.msk [vmem:[#allocation0] sm:$0x1] %vm45, %v44
    %s47 = scalar_lea.vmem %s0, 8
    %v48 = vld [vmem:[%s47] sm:$0x1]
    %49 = vrot.lane.b32.xlu0 %v48, 64
    %v50 = vpop.permute.xlu0 %49
    %vm51 = vcmask 589312
    %52 = vst.msk [vmem:[#allocation0] sm:$0x1] %vm51, %v50
    %s53 = scalar_lea.vmem %s0, 7
    %v54 = vld [vmem:[%s53] sm:$0x1]
    %55 = vrot.lane.b32.xlu0 %v54, 56
    %v56 = vpop.permute.xlu0 %55
    %vm57 = vcmask 523712
    %58 = vst.msk [vmem:[#allocation0] sm:$0x1] %vm57, %v56
    %s59 = scalar_lea.vmem %s0, 6
    %v60 = vld [vmem:[%s59] sm:$0x1]
    %61 = vrot.lane.b32.xlu0 %v60, 48
    %v62 = vpop.permute.xlu0 %61
    %vm63 = vcmask 458112
    %64 = vst.msk [vmem:[#allocation0] sm:$0x1] %vm63, %v62
    %s65 = scalar_lea.vmem %s0, 5
    %v66 = vld [vmem:[%s65] sm:$0x1]
    %67 = vrot.lane.b32.xlu0 %v66, 40
    %v68 = vpop.permute.xlu0 %67
    %vm69 = vcmask 392512
    %70 = vst.msk [vmem:[#allocation0] sm:$0x1] %vm69, %v68
    %s71 = scalar_lea.vmem %s0, 4
    %v72 = vld [vmem:[%s71] sm:$0x1]
    %73 = vrot.lane.b32.xlu0 %v72, 32
    %v74 = vpop.permute.xlu0 %73
    %vm75 = vcmask 326912
    %76 = vst.msk [vmem:[#allocation0] sm:$0x1] %vm75, %v74
    %s77 = scalar_lea.vmem %s0, 3
    %v78 = vld [vmem:[%s77] sm:$0x1]
    %79 = vrot.lane.b32.xlu0 %v78, 24
    %v80 = vpop.permute.xlu0 %79
    %vm81 = vcmask 261312
    %82 = vst.msk [vmem:[#allocation0] sm:$0x1] %vm81, %v80
    %s83 = scalar_lea.vmem %s0, 2
    %v84 = vld [vmem:[%s83] sm:$0x1]
    %85 = vrot.lane.b32.xlu0 %v84, 16
    %v86 = vpop.permute.xlu0 %85
    %vm87 = vcmask 195712
    %88 = vst.msk [vmem:[#allocation0] sm:$0x1] %vm87, %v86
    %s89 = scalar_lea.vmem %s0, 1
    %v90 = vld [vmem:[%s89] sm:$0x1]
    %91 = vrot.lane.b32.xlu0 %v90, 8
    %v92 = vpop.permute.xlu0 %91
    %vm93 = vcmask 130112
    %94 = vst.msk [vmem:[#allocation0] sm:$0x1] %vm93, %v92
    %s96 = ssub.s32 2, 1
    %v97 = vld [vmem:[#allocation0] sm:%s96]
    %s99 = ssub.s32 2, 1
    %100 = vst [vmem:[%s1] sm:%s99] %v97

// kernel: double_conv.5
$region0: #{double_conv.5}
  #allocation0 [shape = 'u32[]', space=smem, size = 0x4, offset = 0x4, fixed_abs, tag = 'smem constant byte address 0x4 - core index']
  #allocation1 [shape = 'u32[72,128]{1,0:T(1,128)}', space=vmem, size = 0x9000, scoped, tag = 'internal scratch']
  %s0 = inlined_call_operand.vmem [shape: f32[2,12,128], index: 0, kind: input, shape index: {}]
  %s1 = inlined_call_operand.vmem [shape: f32[1,1,128], index: 1, kind: input, shape index: {}]
  %s2 = inlined_call_operand.vmem [shape: f32[1,1,128], index: 2, kind: input, shape index: {}]
  %s3 = inlined_call_operand.vmem [shape: f32[2,12,128], index: 3, kind: output, shape index: {}]
  %s4 = sld [smem:[#allocation0]]
  $region45: #{double_conv.5} parent=0
    _
  %s6 = ssub.s32 1, %s4
  %s7 = scalar_select 0, %s6, %s4
  loop: start=0, step=1, limit=4
  $region2: #{double_conv.5} parent=0 // loop_pre_header
    _
  $region3: #{double_conv.5} parent=0 // loop_header
    %s9 = sphi 0, %s13
    %p10 = scmp.ge.s32.totalorder %s9, 4
    %s19 = sphi 0, %s21
    %s22 = sphi 0, %s19
    %s23 = sphi 0, %s22
    %s39 = sphi 0, %s23
    %s43 = sphi 0, %s43
    %s45 = sphi 0, %s43
    %s46 = sphi 0, %s45
    %s60 = sphi 0, %s46
    %s64 = sphi 0, %s64
    %s66 = sphi 0, %s64
    %s67 = sphi 0, %s66
    %s81 = sphi 0, %s67
    %s87 = sphi 0, %s89
    %s90 = sphi 0, %s87
    %s91 = sphi 0, %s90
    %s107 = sphi 0, %s91
  $region4: #{double_conv.5} parent=0 // loop_header_branch
    %12 = sbr.rel (%p10) target = $region8
  $region5: #{double_conv.5} parent=0 // loop_body
    %s14 = ssub.s32 %s9, 1
    %s15 = ssub.s32 %s9, 2
    %s16 = sadd.s32 %s9, 1
    %s17 = ssub.s32 %s9, %s16
    %p18 = scmp.eq.s32.totalorder %s17, 0
    %s20 = sadd.s32 %s19, 1
    %s21 = scalar_select %p18, %s19, %s20
    %p24 = pneg %p18
    %p25 = scmp.eq.s32.totalorder %s9, 1
    %p26 = por %p24, %p25
    %p27 = scmp.ne.s32.totalorder %s19, %s22
    %p28 = scmp.eq.s32.totalorder %s9, 0
    %p29 = por %p27, %p28
    %p30 = scmp.ne.s32.totalorder %s19, %s22
    %p31 = scmp.eq.s32.totalorder %s14, 1
    %p32 = por %p30, %p31
    %p33 = scmp.ne.s32.totalorder %s22, %s23
    %p34 = scmp.eq.s32.totalorder %s14, 0
    %p35 = por %p33, %p34
    %p36 = scmp.ne.s32.totalorder %s22, %s23
    %p37 = scmp.eq.s32.totalorder %s15, 1
    %p38 = por %p36, %p37
    %p40 = scmp.ne.s32.totalorder %s23, %s39
    %p41 = scmp.eq.s32.totalorder %s15, 0
    %p42 = por %p40, %p41
    %s44 = sadd.s32 %s43, 1
    %p47 = scmp.eq.s32.totalorder %s9, 1
    %p48 = scmp.ne.s32.totalorder %s43, %s45
    %p49 = scmp.eq.s32.totalorder %s9, 0
    %p50 = por %p48, %p49
    %p51 = scmp.ne.s32.totalorder %s43, %s45
    %p52 = scmp.eq.s32.totalorder %s14, 1
    %p53 = por %p51, %p52
    %p54 = scmp.ne.s32.totalorder %s45, %s46
    %p55 = scmp.eq.s32.totalorder %s14, 0
    %p56 = por %p54, %p55
    %p57 = scmp.ne.s32.totalorder %s45, %s46
    %p58 = scmp.eq.s32.totalorder %s15, 1
    %p59 = por %p57, %p58
    %p61 = scmp.ne.s32.totalorder %s46, %s60
    %p62 = scmp.eq.s32.totalorder %s15, 0
    %p63 = por %p61, %p62
    %s65 = sadd.s32 %s64, 1
    %p68 = scmp.eq.s32.totalorder %s9, 1
    %p69 = scmp.ne.s32.totalorder %s64, %s66
    %p70 = scmp.eq.s32.totalorder %s9, 0
    %p71 = por %p69, %p70
    %p72 = scmp.ne.s32.totalorder %s64, %s66
    %p73 = scmp.eq.s32.totalorder %s14, 1
    %p74 = por %p72, %p73
    %p75 = scmp.ne.s32.totalorder %s66, %s67
    %p76 = scmp.eq.s32.totalorder %s14, 0
    %p77 = por %p75, %p76
    %p78 = scmp.ne.s32.totalorder %s66, %s67
    %p79 = scmp.eq.s32.totalorder %s15, 1
    %p80 = por %p78, %p79
    %p82 = scmp.ne.s32.totalorder %s67, %s81
    %p83 = scmp.eq.s32.totalorder %s15, 0
    %p84 = por %p82, %p83
    %s85 = ssub.s32 %s9, %s16
    %p86 = scmp.eq.s32.totalorder %s85, 0
    %s88 = sadd.s32 %s87, 1
    %s89 = scalar_select %p86, %s87, %s88
    %p92 = pneg %p86
    %p93 = scmp.eq.s32.totalorder %s9, 1
    %p94 = por %p92, %p93
    %p95 = scmp.ne.s32.totalorder %s87, %s90
    %p96 = scmp.eq.s32.totalorder %s9, 0
    %p97 = por %p95, %p96
    %p98 = scmp.ne.s32.totalorder %s87, %s90
    %p99 = scmp.eq.s32.totalorder %s14, 1
    %p100 = por %p98, %p99
    %p101 = scmp.ne.s32.totalorder %s90, %s91
    %p102 = scmp.eq.s32.totalorder %s14, 0
    %p103 = por %p101, %p102
    %p104 = scmp.ne.s32.totalorder %s90, %s91
    %p105 = scmp.eq.s32.totalorder %s15, 1
    %p106 = por %p104, %p105
    %p108 = scmp.ne.s32.totalorder %s91, %s107
    %p109 = scmp.eq.s32.totalorder %s15, 0
    %p110 = por %p108, %p109
    %p111 = scmp.le.s32.totalorder 1, %s9
    %p112 = scmp.lt.s32.totalorder %s9, 3
    %p113 = pnand %p111, %p112
    %p114 = pneg %p113
    // Predicated region
    $region9: #{double_conv.5} parent=5 // pred_check
      _
    $region10: #{double_conv.5} parent=5 // pred_check_branch
      %116 = sbr.rel (%p113) target = $region12
    $region11: #{double_conv.5} parent=5 // pred_region
      %s117 = ssub.s32 %s9, 1
      // Predicated region
      $region13: #{double_conv.5} parent=11 // pred_check
        %p118 = pneg %p56
      $region14: #{double_conv.5} parent=11 // pred_check_branch
        %120 = sbr.rel (%p118) target = $region16
      $region15: #{double_conv.5} parent=11 // pred_region
        _
      $region16: #{double_conv.5} parent=11 // pred_fallthru
        _
      // Predicated region
      $region17: #{double_conv.5} parent=11 // pred_check
        %p121 = pneg %p77
      $region18: #{double_conv.5} parent=11 // pred_check_branch
        %123 = sbr.rel (%p121) target = $region20
      $region19: #{double_conv.5} parent=11 // pred_region
        _
      $region20: #{double_conv.5} parent=11 // pred_fallthru
        _
    $region12: #{double_conv.5} parent=5 // pred_fallthru
      _
    %p124 = scmp.lt.s32.totalorder %s9, 2
    // Predicated region
    $region21: #{double_conv.5} parent=5 // pred_check
      %p125 = pneg %p124
    $region22: #{double_conv.5} parent=5 // pred_check_branch
      %127 = sbr.rel (%p125) target = $region24
    $region23: #{double_conv.5} parent=5 // pred_region
      // Predicated region
      $region25: #{double_conv.5} parent=23 // pred_check
        %p128 = pneg %p29
      $region26: #{double_conv.5} parent=23 // pred_check_branch
        %130 = sbr.rel (%p128) target = $region28
      $region27: #{double_conv.5} parent=23 // pred_region
        %p131 = scmp.lt.s32.totalorder %s9, 1
        %s132 = scalar_select %p131, %s9, 1
        %s133 = smul.addr %s132, 2
        %s134 = smul.addr %s133, 8
        %s135 = scalar_lea.vmem %s0, %s134
      $region28: #{double_conv.5} parent=23 // pred_fallthru
        _
    $region24: #{double_conv.5} parent=5 // pred_fallthru
      _
    %p136 = scmp.le.s32.totalorder 1, %s9
    %p137 = scmp.lt.s32.totalorder %s9, 3
    %p138 = pnand %p136, %p137
    %p139 = pneg %p138
    // Predicated region
    $region29: #{double_conv.5} parent=5 // pred_check
      _
    $region30: #{double_conv.5} parent=5 // pred_check_branch
      %141 = sbr.rel (%p138) target = $region32
    $region31: #{double_conv.5} parent=5 // pred_region
      %s142 = ssub.s32 %s9, 1
      %p143 = scmp.lt.s32.totalorder %s14, 1
      %s144 = scalar_select %p143, %s14, 1
      %s145 = smul.addr %s144, 2
      %s146 = smul.addr %s145, 8
      %s147 = scalar_lea.vmem %s0, %s146
      %p148 = pneg %p35
      %p149 = pneg %p32
      %p150 = pneg %p56
      %p151 = pneg %p53
      %p152 = pneg %p77
      %p153 = pneg %p74
      %p154 = pneg %p103
      %p155 = pneg %p100
      %p156 = scmp.lt.s32.totalorder %s14, 1
      %s157 = scalar_select %p156, %s14, 1
      %s158 = smul.addr %s157, 2
      %s159 = smul.addr %s158, 8
      %s160 = scalar_lea.vmem %s3, %s159
      %p161 = scmp.lt.s32.totalorder %s14, 1
      %s162 = scalar_select %p161, %s14, 1
      %s163 = smul.addr %s162, 2
      %s164 = smul.addr %s163, 8
      %s165 = scalar_lea.vmem %s0, %s164
      %p166 = scmp.lt.s32.totalorder %s14, 1
      %s167 = scalar_select %p166, %s14, 1
      %s168 = smul.addr %s167, 2
      %s169 = smul.addr %s168, 8
      %s170 = scalar_lea.vmem %s3, %s169
      %v171 = vld [vmem:[%s165] sm:$0xff]
      %v172 = vld [vmem:[%s165 + $0x8] sm:$0xf]
      %v173 = vld [vmem:[%s1] sm:$0x1]
      %v175 = vperm.slane %v173, 0
      %v177 = vmul.f32 %v171, %v175
      %v178 = vmul.f32 %v172, %v175
      %v179 = vld [vmem:[%s2] sm:$0x1]
      %v181 = vperm.slane %v179, 0
      %v183 = vadd.f32 %v177, %v181
      %v184 = vadd.f32 %v178, %v181
      %v185 = vmax.f32 %v183, 0.0
      %v186 = vmax.f32 %v184, 0.0
      %187 = vst [vmem:[%s170] sm:$0xff] %v185
      %188 = vst [vmem:[%s170 + $0x8] sm:$0xf] %v186
      %p189 = scmp.lt.s32.totalorder %s14, 1
      %s190 = scalar_select %p189, %s14, 1
      %s191 = smul.addr %s190, 2
      %s192 = smul.addr %s191, 8
      %s193 = scalar_lea.vmem %s3, %s192
      // Predicated region
      $region33: #{double_conv.5} parent=31 // pred_check
        %p194 = pneg %p100
      $region34: #{double_conv.5} parent=31 // pred_check_branch
        %196 = sbr.rel (%p194) target = $region36
      $region35: #{double_conv.5} parent=31 // pred_region
        _
      $region36: #{double_conv.5} parent=31 // pred_fallthru
        _
    $region32: #{double_conv.5} parent=5 // pred_fallthru
      _
    %p197 = scmp.le.s32.totalorder 2, %s9
    // Predicated region
    $region37: #{double_conv.5} parent=5 // pred_check
      %p198 = pneg %p197
    $region38: #{double_conv.5} parent=5 // pred_check_branch
      %200 = sbr.rel (%p198) target = $region40
    $region39: #{double_conv.5} parent=5 // pred_region
      %s201 = ssub.s32 %s9, 2
      // Predicated region
      $region41: #{double_conv.5} parent=39 // pred_check
        %p202 = pneg %p106
      $region42: #{double_conv.5} parent=39 // pred_check_branch
        %204 = sbr.rel (%p202) target = $region44
      $region43: #{double_conv.5} parent=39 // pred_region
        %p205 = scmp.lt.s32.totalorder %s15, 1
        %s206 = scalar_select %p205, %s15, 1
        %s207 = smul.addr %s206, 2
        %s208 = smul.addr %s207, 8
        %s209 = scalar_lea.vmem %s3, %s208
      $region44: #{double_conv.5} parent=39 // pred_fallthru
        _
    $region40: #{double_conv.5} parent=5 // pred_fallthru
      _
  $region6: #{double_conv.5} parent=0 // loop_footer
    %s13 = sadd.s32 1, %s9
  $region7: #{double_conv.5} parent=0 // loop_footer_branch
    %8 = sbr.rel target = $region3
  $region8: #{double_conv.5} parent=0 // loop_exit
    _

// kernel: double_conv.3
$region0: #{double_conv.3}
  #allocation0 [shape = 'u32[]', space=smem, size = 0x4, offset = 0x4, fixed_abs, tag = 'smem constant byte address 0x4 - core index']
  #allocation1 [shape = 'u32[72,128]{1,0:T(1,128)}', space=vmem, size = 0x9000, scoped, tag = 'internal scratch']
  %s0 = inlined_call_operand.vmem [shape: f32[2,264,4], index: 0, kind: input, shape index: {}]
  %s1 = inlined_call_operand.vmem [shape: f32[1,4], index: 1, kind: input, shape index: {}]
  %s2 = inlined_call_operand.vmem [shape: f32[1,4], index: 2, kind: input, shape index: {}]
  %s3 = inlined_call_operand.vmem [shape: f32[9,4,8], index: 3, kind: input, shape index: {}]
  %s4 = inlined_call_operand.vmem [shape: f32[2,232,8], index: 4, kind: output, shape index: {0}]
  %s5 = inlined_call_operand.vmem [shape: f32[2,1,8], index: 5, kind: output, shape index: {1}]
  %s6 = inlined_call_operand.vmem [shape: f32[2,1,8], index: 6, kind: output, shape index: {2}]
  %7 = xla_tuple %s4, %s5, %s6
  %s8 = sld [smem:[#allocation0]]
  $region65: #{double_conv.3} parent=0
    _
  %s10 = ssub.s32 1, %s8
  %s11 = scalar_select 0, %s10, %s8
  loop: start=0, step=1, limit=4
  $region2: #{double_conv.3} parent=0 // loop_pre_header
    _
  $region3: #{double_conv.3} parent=0 // loop_header
    %s13 = sphi 0, %s17
    %p14 = scmp.ge.s32.totalorder %s13, 4
    %s23 = sphi 0, %s25
    %s26 = sphi 0, %s23
    %s27 = sphi 0, %s26
    %s43 = sphi 0, %s27
    %s47 = sphi 0, %s47
    %s49 = sphi 0, %s47
    %s50 = sphi 0, %s49
    %s64 = sphi 0, %s50
    %s68 = sphi 0, %s68
    %s70 = sphi 0, %s68
    %s71 = sphi 0, %s70
    %s85 = sphi 0, %s71
    %s89 = sphi 0, %s89
    %s91 = sphi 0, %s89
    %s92 = sphi 0, %s91
    %s106 = sphi 0, %s92
    %s112 = sphi 0, %s114
    %s115 = sphi 0, %s112
    %s116 = sphi 0, %s115
    %s132 = sphi 0, %s116
    %s138 = sphi 0, %s140
    %s141 = sphi 0, %s138
    %s142 = sphi 0, %s141
    %s158 = sphi 0, %s142
    %s164 = sphi 0, %s166
    %s167 = sphi 0, %s164
    %s168 = sphi 0, %s167
    %s184 = sphi 0, %s168
  $region4: #{double_conv.3} parent=0 // loop_header_branch
    %16 = sbr.rel (%p14) target = $region8
  $region5: #{double_conv.3} parent=0 // loop_body
    %s18 = ssub.s32 %s13, 1
    %s19 = ssub.s32 %s13, 2
    %s20 = sadd.s32 %s13, 1
    %s21 = ssub.s32 %s13, %s20
    %p22 = scmp.eq.s32.totalorder %s21, 0
    %s24 = sadd.s32 %s23, 1
    %s25 = scalar_select %p22, %s23, %s24
    %p28 = pneg %p22
    %p29 = scmp.eq.s32.totalorder %s13, 1
    %p30 = por %p28, %p29
    %p31 = scmp.ne.s32.totalorder %s23, %s26
    %p32 = scmp.eq.s32.totalorder %s13, 0
    %p33 = por %p31, %p32
    %p34 = scmp.ne.s32.totalorder %s23, %s26
    %p35 = scmp.eq.s32.totalorder %s18, 1
    %p36 = por %p34, %p35
    %p37 = scmp.ne.s32.totalorder %s26, %s27
    %p38 = scmp.eq.s32.totalorder %s18, 0
    %p39 = por %p37, %p38
    %p40 = scmp.ne.s32.totalorder %s26, %s27
    %p41 = scmp.eq.s32.totalorder %s19, 1
    %p42 = por %p40, %p41
    %p44 = scmp.ne.s32.totalorder %s27, %s43
    %p45 = scmp.eq.s32.totalorder %s19, 0
    %p46 = por %p44, %p45
    %s48 = sadd.s32 %s47, 1
    %p51 = scmp.eq.s32.totalorder %s13, 1
    %p52 = scmp.ne.s32.totalorder %s47, %s49
    %p53 = scmp.eq.s32.totalorder %s13, 0
    %p54 = por %p52, %p53
    %p55 = scmp.ne.s32.totalorder %s47, %s49
    %p56 = scmp.eq.s32.totalorder %s18, 1
    %p57 = por %p55, %p56
    %p58 = scmp.ne.s32.totalorder %s49, %s50
    %p59 = scmp.eq.s32.totalorder %s18, 0
    %p60 = por %p58, %p59
    %p61 = scmp.ne.s32.totalorder %s49, %s50
    %p62 = scmp.eq.s32.totalorder %s19, 1
    %p63 = por %p61, %p62
    %p65 = scmp.ne.s32.totalorder %s50, %s64
    %p66 = scmp.eq.s32.totalorder %s19, 0
    %p67 = por %p65, %p66
    %s69 = sadd.s32 %s68, 1
    %p72 = scmp.eq.s32.totalorder %s13, 1
    %p73 = scmp.ne.s32.totalorder %s68, %s70
    %p74 = scmp.eq.s32.totalorder %s13, 0
    %p75 = por %p73, %p74
    %p76 = scmp.ne.s32.totalorder %s68, %s70
    %p77 = scmp.eq.s32.totalorder %s18, 1
    %p78 = por %p76, %p77
    %p79 = scmp.ne.s32.totalorder %s70, %s71
    %p80 = scmp.eq.s32.totalorder %s18, 0
    %p81 = por %p79, %p80
    %p82 = scmp.ne.s32.totalorder %s70, %s71
    %p83 = scmp.eq.s32.totalorder %s19, 1
    %p84 = por %p82, %p83
    %p86 = scmp.ne.s32.totalorder %s71, %s85
    %p87 = scmp.eq.s32.totalorder %s19, 0
    %p88 = por %p86, %p87
    %s90 = sadd.s32 %s89, 1
    %p93 = scmp.eq.s32.totalorder %s13, 1
    %p94 = scmp.ne.s32.totalorder %s89, %s91
    %p95 = scmp.eq.s32.totalorder %s13, 0
    %p96 = por %p94, %p95
    %p97 = scmp.ne.s32.totalorder %s89, %s91
    %p98 = scmp.eq.s32.totalorder %s18, 1
    %p99 = por %p97, %p98
    %p100 = scmp.ne.s32.totalorder %s91, %s92
    %p101 = scmp.eq.s32.totalorder %s18, 0
    %p102 = por %p100, %p101
    %p103 = scmp.ne.s32.totalorder %s91, %s92
    %p104 = scmp.eq.s32.totalorder %s19, 1
    %p105 = por %p103, %p104
    %p107 = scmp.ne.s32.totalorder %s92, %s106
    %p108 = scmp.eq.s32.totalorder %s19, 0
    %p109 = por %p107, %p108
    %s110 = ssub.s32 %s13, %s20
    %p111 = scmp.eq.s32.totalorder %s110, 0
    %s113 = sadd.s32 %s112, 1
    %s114 = scalar_select %p111, %s112, %s113
    %p117 = pneg %p111
    %p118 = scmp.eq.s32.totalorder %s13, 1
    %p119 = por %p117, %p118
    %p120 = scmp.ne.s32.totalorder %s112, %s115
    %p121 = scmp.eq.s32.totalorder %s13, 0
    %p122 = por %p120, %p121
    %p123 = scmp.ne.s32.totalorder %s112, %s115
    %p124 = scmp.eq.s32.totalorder %s18, 1
    %p125 = por %p123, %p124
    %p126 = scmp.ne.s32.totalorder %s115, %s116
    %p127 = scmp.eq.s32.totalorder %s18, 0
    %p128 = por %p126, %p127
    %p129 = scmp.ne.s32.totalorder %s115, %s116
    %p130 = scmp.eq.s32.totalorder %s19, 1
    %p131 = por %p129, %p130
    %p133 = scmp.ne.s32.totalorder %s116, %s132
    %p134 = scmp.eq.s32.totalorder %s19, 0
    %p135 = por %p133, %p134
    %s136 = ssub.s32 %s13, %s20
    %p137 = scmp.eq.s32.totalorder %s136, 0
    %s139 = sadd.s32 %s138, 1
    %s140 = scalar_select %p137, %s138, %s139
    %p143 = pneg %p137
    %p144 = scmp.eq.s32.totalorder %s13, 1
    %p145 = por %p143, %p144
    %p146 = scmp.ne.s32.totalorder %s138, %s141
    %p147 = scmp.eq.s32.totalorder %s13, 0
    %p148 = por %p146, %p147
    %p149 = scmp.ne.s32.totalorder %s138, %s141
    %p150 = scmp.eq.s32.totalorder %s18, 1
    %p151 = por %p149, %p150
    %p152 = scmp.ne.s32.totalorder %s141, %s142
    %p153 = scmp.eq.s32.totalorder %s18, 0
    %p154 = por %p152, %p153
    %p155 = scmp.ne.s32.totalorder %s141, %s142
    %p156 = scmp.eq.s32.totalorder %s19, 1
    %p157 = por %p155, %p156
    %p159 = scmp.ne.s32.totalorder %s142, %s158
    %p160 = scmp.eq.s32.totalorder %s19, 0
    %p161 = por %p159, %p160
    %s162 = ssub.s32 %s13, %s20
    %p163 = scmp.eq.s32.totalorder %s162, 0
    %s165 = sadd.s32 %s164, 1
    %s166 = scalar_select %p163, %s164, %s165
    %p169 = pneg %p163
    %p170 = scmp.eq.s32.totalorder %s13, 1
    %p171 = por %p169, %p170
    %p172 = scmp.ne.s32.totalorder %s164, %s167
    %p173 = scmp.eq.s32.totalorder %s13, 0
    %p174 = por %p172, %p173
    %p175 = scmp.ne.s32.totalorder %s164, %s167
    %p176 = scmp.eq.s32.totalorder %s18, 1
    %p177 = por %p175, %p176
    %p178 = scmp.ne.s32.totalorder %s167, %s168
    %p179 = scmp.eq.s32.totalorder %s18, 0
    %p180 = por %p178, %p179
    %p181 = scmp.ne.s32.totalorder %s167, %s168
    %p182 = scmp.eq.s32.totalorder %s19, 1
    %p183 = por %p181, %p182
    %p185 = scmp.ne.s32.totalorder %s168, %s184
    %p186 = scmp.eq.s32.totalorder %s19, 0
    %p187 = por %p185, %p186
    %p188 = scmp.le.s32.totalorder 1, %s13
    %p189 = scmp.lt.s32.totalorder %s13, 3
    %p190 = pnand %p188, %p189
    %p191 = pneg %p190
    // Predicated region
    $region9: #{double_conv.3} parent=5 // pred_check
      _
    $region10: #{double_conv.3} parent=5 // pred_check_branch
      %193 = sbr.rel (%p190) target = $region12
    $region11: #{double_conv.3} parent=5 // pred_region
      %s194 = ssub.s32 %s13, 1
      // Predicated region
      $region13: #{double_conv.3} parent=11 // pred_check
        %p195 = pneg %p60
      $region14: #{double_conv.3} parent=11 // pred_check_branch
        %197 = sbr.rel (%p195) target = $region16
      $region15: #{double_conv.3} parent=11 // pred_region
        _
      $region16: #{double_conv.3} parent=11 // pred_fallthru
        _
      // Predicated region
      $region17: #{double_conv.3} parent=11 // pred_check
        %p198 = pneg %p81
      $region18: #{double_conv.3} parent=11 // pred_check_branch
        %200 = sbr.rel (%p198) target = $region20
      $region19: #{double_conv.3} parent=11 // pred_region
        _
      $region20: #{double_conv.3} parent=11 // pred_fallthru
        _
      // Predicated region
      $region21: #{double_conv.3} parent=11 // pred_check
        %p201 = pneg %p102
      $region22: #{double_conv.3} parent=11 // pred_check_branch
        %203 = sbr.rel (%p201) target = $region24
      $region23: #{double_conv.3} parent=11 // pred_region
        _
      $region24: #{double_conv.3} parent=11 // pred_fallthru
        _
    $region12: #{double_conv.3} parent=5 // pred_fallthru
      _
    %p204 = scmp.lt.s32.totalorder %s13, 2
    // Predicated region
    $region25: #{double_conv.3} parent=5 // pred_check
      %p205 = pneg %p204
    $region26: #{double_conv.3} parent=5 // pred_check_branch
      %207 = sbr.rel (%p205) target = $region28
    $region27: #{double_conv.3} parent=5 // pred_region
      // Predicated region
      $region29: #{double_conv.3} parent=27 // pred_check
        %p208 = pneg %p33
      $region30: #{double_conv.3} parent=27 // pred_check_branch
        %210 = sbr.rel (%p208) target = $region32
      $region31: #{double_conv.3} parent=27 // pred_region
        %p211 = scmp.lt.s32.totalorder %s13, 1
        %s212 = scalar_select %p211, %s13, 1
        %s213 = smul.addr %s212, 33
        %s214 = smul.addr %s213, 8
        %s215 = scalar_lea.vmem %s0, %s214
      $region32: #{double_conv.3} parent=27 // pred_fallthru
        _
    $region28: #{double_conv.3} parent=5 // pred_fallthru
      _
    %p216 = scmp.le.s32.totalorder 1, %s13
    %p217 = scmp.lt.s32.totalorder %s13, 3
    %p218 = pnand %p216, %p217
    %p219 = pneg %p218
    // Predicated region
    $region33: #{double_conv.3} parent=5 // pred_check
      _
    $region34: #{double_conv.3} parent=5 // pred_check_branch
      %221 = sbr.rel (%p218) target = $region36
    $region35: #{double_conv.3} parent=5 // pred_region
      %s222 = ssub.s32 %s13, 1
      %p223 = scmp.lt.s32.totalorder %s18, 1
      %s224 = scalar_select %p223, %s18, 1
      %s225 = smul.addr %s224, 33
      %s226 = smul.addr %s225, 8
      %s227 = scalar_lea.vmem %s0, %s226
      %p228 = pneg %p39
      %p229 = pneg %p36
      %p230 = pneg %p60
      %p231 = pneg %p57
      %p232 = pneg %p81
      %p233 = pneg %p78
      %p234 = pneg %p102
      %p235 = pneg %p99
      %p236 = pneg %p128
      %p237 = pneg %p125
      %p238 = scmp.lt.s32.totalorder %s18, 1
      %s239 = scalar_select %p238, %s18, 1
      %s240 = smul.addr %s239, 29
      %s241 = smul.addr %s240, 8
      %s242 = scalar_lea.vmem %s4, %s241
      %p243 = pneg %p154
      %p244 = pneg %p151
      %p245 = scmp.lt.s32.totalorder %s18, 1
      %s246 = scalar_select %p245, %s18, 1
      %s247 = scalar_lea.vmem %s5, %s246
      %p248 = pneg %p180
      %p249 = pneg %p177
      %p250 = scmp.lt.s32.totalorder %s18, 1
      %s251 = scalar_select %p250, %s18, 1
      %s252 = scalar_lea.vmem %s6, %s251
      %p253 = scmp.lt.s32.totalorder %s18, 1
      %s254 = scalar_select %p253, %s18, 1
      %s255 = smul.addr %s254, 33
      %s256 = smul.addr %s255, 8
      %s257 = scalar_lea.vmem %s0, %s256
      %p258 = scmp.lt.s32.totalorder %s18, 1
      %s259 = scalar_select %p258, %s18, 1
      %s260 = smul.addr %s259, 29
      %s261 = smul.addr %s260, 8
      %s262 = scalar_lea.vmem %s4, %s261
      %p263 = scmp.lt.s32.totalorder %s18, 1
      %s264 = scalar_select %p263, %s18, 1
      %s265 = scalar_lea.vmem %s5, %s264
      %p266 = scmp.lt.s32.totalorder %s18, 1
      %s267 = scalar_select %p266, %s18, 1
      %s268 = scalar_lea.vmem %s6, %s267
      %v269 = vld [vmem:[%s257] sm:$0xff]
      %v270 = vld [vmem:[%s257 + $0x8] sm:$0xff]
      %v271 = vld [vmem:[%s257 + $0x10] sm:$0xff]
      %v272 = vld [vmem:[%s257 + $0x18] sm:$0xff]
      %v273 = vld [vmem:[%s257 + $0x20] sm:$0xff]
      %v274 = vld [vmem:[%s257 + $0x28] sm:$0xff]
      %v275 = vld [vmem:[%s257 + $0x30] sm:$0xff]
      %v276 = vld [vmem:[%s257 + $0x38] sm:$0xff]
      %v277 = vld [vmem:[%s257 + $0x40] sm:$0xff]
      %v278 = vld [vmem:[%s257 + $0x48] sm:$0xff]
      %v279 = vld [vmem:[%s257 + $0x50] sm:$0xff]
      %v280 = vld [vmem:[%s257 + $0x58] sm:$0xff]
      %v281 = vld [vmem:[%s257 + $0x60] sm:$0xff]
      %v282 = vld [vmem:[%s257 + $0x68] sm:$0xff]
      %v283 = vld [vmem:[%s257 + $0x70] sm:$0xff]
      %v284 = vld [vmem:[%s257 + $0x78] sm:$0xff]
      %v285 = vld [vmem:[%s257 + $0x80] sm:$0xff]
      %v286 = vld [vmem:[%s257 + $0x88] sm:$0xff]
      %v287 = vld [vmem:[%s257 + $0x90] sm:$0xff]
      %v288 = vld [vmem:[%s257 + $0x98] sm:$0xff]
      %v289 = vld [vmem:[%s257 + $0xa0] sm:$0xff]
      %v290 = vld [vmem:[%s257 + $0xa8] sm:$0xff]
      %v291 = vld [vmem:[%s257 + $0xb0] sm:$0xff]
      %v292 = vld [vmem:[%s257 + $0xb8] sm:$0xff]
      %v293 = vld [vmem:[%s257 + $0xc0] sm:$0xff]
      %v294 = vld [vmem:[%s257 + $0xc8] sm:$0xff]
      %v295 = vld [vmem:[%s257 + $0xd0] sm:$0xff]
      %v296 = vld [vmem:[%s257 + $0xd8] sm:$0xff]
      %v297 = vld [vmem:[%s3] sm:$0xf]
      %v298 = vld [vmem:[%s257 + $0x1] sm:$0xff]
      %v299 = vld [vmem:[%s257 + $0x9] sm:$0xff]
      %v300 = vld [vmem:[%s257 + $0x11] sm:$0xff]
      %v301 = vld [vmem:[%s257 + $0x19] sm:$0xff]
      %v302 = vld [vmem:[%s257 + $0x21] sm:$0xff]
      %v303 = vld [vmem:[%s257 + $0x29] sm:$0xff]
      %v304 = vld [vmem:[%s257 + $0x31] sm:$0xff]
      %v305 = vld [vmem:[%s257 + $0x39] sm:$0xff]
      %v306 = vld [vmem:[%s257 + $0x41] sm:$0xff]
      %v307 = vld [vmem:[%s257 + $0x49] sm:$0xff]
      %v308 = vld [vmem:[%s257 + $0x51] sm:$0xff]
      %v309 = vld [vmem:[%s257 + $0x59] sm:$0xff]
      %v310 = vld [vmem:[%s257 + $0x61] sm:$0xff]
      %v311 = vld [vmem:[%s257 + $0x69] sm:$0xff]
      %v312 = vld [vmem:[%s257 + $0x71] sm:$0xff]
      %v313 = vld [vmem:[%s257 + $0x79] sm:$0xff]
      %v314 = vld [vmem:[%s257 + $0x81] sm:$0xff]
      %v315 = vld [vmem:[%s257 + $0x89] sm:$0xff]
      %v316 = vld [vmem:[%s257 + $0x91] sm:$0xff]
      %v317 = vld [vmem:[%s257 + $0x99] sm:$0xff]
      %v318 = vld [vmem:[%s257 + $0xa1] sm:$0xff]
      %v319 = vld [vmem:[%s257 + $0xa9] sm:$0xff]
      %v320 = vld [vmem:[%s257 + $0xb1] sm:$0xff]
      %v321 = vld [vmem:[%s257 + $0xb9] sm:$0xff]
      %v322 = vld [vmem:[%s257 + $0xc1] sm:$0xff]
      %v323 = vld [vmem:[%s257 + $0xc9] sm:$0xff]
      %v324 = vld [vmem:[%s257 + $0xd1] sm:$0xff]
      %v325 = vld [vmem:[%s257 + $0xd9] sm:$0xff]
      %s326 = scalar_lea.vmem %s3, 4
      %v327 = vld [vmem:[%s326] sm:$0xf]
      %vm328 = vcmask 31744
      %v330 = vsel %vm328, %v298, 0
      %v333 = vsel %vm328, %v299, 0
      %v336 = vsel %vm328, %v300, 0
      %v339 = vsel %vm328, %v301, 0
      %v342 = vsel %vm328, %v302, 0
      %v345 = vsel %vm328, %v303, 0
      %v348 = vsel %vm328, %v304, 0
      %v351 = vsel %vm328, %v305, 0
      %v354 = vsel %vm328, %v306, 0
      %v357 = vsel %vm328, %v307, 0
      %v360 = vsel %vm328, %v308, 0
      %v363 = vsel %vm328, %v309, 0
      %v366 = vsel %vm328, %v310, 0
      %v369 = vsel %vm328, %v311, 0
      %v372 = vsel %vm328, %v312, 0
      %v375 = vsel %vm328, %v313, 0
      %v378 = vsel %vm328, %v314, 0
      %v381 = vsel %vm328, %v315, 0
      %v384 = vsel %vm328, %v316, 0
      %v387 = vsel %vm328, %v317, 0
      %v390 = vsel %vm328, %v318, 0
      %v393 = vsel %vm328, %v319, 0
      %v396 = vsel %vm328, %v320, 0
      %v399 = vsel %vm328, %v321, 0
      %v402 = vsel %vm328, %v322, 0
      %v405 = vsel %vm328, %v323, 0
      %v408 = vsel %vm328, %v324, 0
      %v411 = vsel %vm328, %v325, 0
      %vm413 = vcmask 1043456
      %v415 = vsel %vm413, %v327, 0
      %417 = vmatpush.msra.mxu0 0.0
      %418 = vmatpush.msra.mxu0 0.0
      %419 = vmatpush.msra.mxu0 0.0
      %420 = vmatpush.msra.mxu0 0.0
      %421 = vmatpush.msra.mxu0 0.0
      %422 = vmatpush.msra.mxu0 0.0
      %423 = vmatpush.msra.mxu0 0.0
      %424 = vmatpush.msra.mxu0 0.0
      %425 = vmatpush.msra.mxu0 0.0
      %426 = vmatpush.msra.mxu0 0.0
      %427 = vmatpush.msra.mxu0 0.0
      %428 = vmatpush.msra.mxu0 0.0
      %429 = vmatpush.msra.mxu0 0.0
      %430 = vmatpush.msra.mxu0 0.0
      %431 = vmatpush.msra.mxu0 0.0
      %432 = vmatpush.msra.mxu0 %v415
      %433 = vmatmul.f32.gmra.mxu0 %v330
      %v434 = vpop.f32.mrf.mxu0
      %v435 = vadd.f32 0.0, %v434
      %436 = vmatmul.f32.gmra.mxu0 %v333
      %v437 = vpop.f32.mrf.mxu0
      %v438 = vadd.f32 0.0, %v437
      %439 = vmatmul.f32.gmra.mxu0 %v336
      %v440 = vpop.f32.mrf.mxu0
      %v441 = vadd.f32 0.0, %v440
      %442 = vmatmul.f32.gmra.mxu0 %v339
      %v443 = vpop.f32.mrf.mxu0
      %v444 = vadd.f32 0.0, %v443
      %445 = vmatmul.f32.gmra.mxu0 %v342
      %v446 = vpop.f32.mrf.mxu0
      %v447 = vadd.f32 0.0, %v446
      %448 = vmatmul.f32.gmra.mxu0 %v345
      %v449 = vpop.f32.mrf.mxu0
      %v450 = vadd.f32 0.0, %v449
      %451 = vmatmul.f32.gmra.mxu0 %v348
      %v452 = vpop.f32.mrf.mxu0
      %v453 = vadd.f32 0.0, %v452
      %454 = vmatmul.f32.gmra.mxu0 %v351
      %v455 = vpop.f32.mrf.mxu0
      %v456 = vadd.f32 0.0, %v455
      %457 = vmatmul.f32.gmra.mxu0 %v354
      %v458 = vpop.f32.mrf.mxu0
      %v459 = vadd.f32 0.0, %v458
      %460 = vmatmul.f32.gmra.mxu0 %v357
      %v461 = vpop.f32.mrf.mxu0
      %v462 = vadd.f32 0.0, %v461
      %463 = vmatmul.f32.gmra.mxu0 %v360
      %v464 = vpop.f32.mrf.mxu0
      %v465 = vadd.f32 0.0, %v464
      %466 = vmatmul.f32.gmra.mxu0 %v363
      %v467 = vpop.f32.mrf.mxu0
      %v468 = vadd.f32 0.0, %v467
      %469 = vmatmul.f32.gmra.mxu0 %v366
      %v470 = vpop.f32.mrf.mxu0
      %v471 = vadd.f32 0.0, %v470
      %472 = vmatmul.f32.gmra.mxu0 %v369
      %v473 = vpop.f32.mrf.mxu0
      %v474 = vadd.f32 0.0, %v473
      %475 = vmatmul.f32.gmra.mxu0 %v372
      %v476 = vpop.f32.mrf.mxu0
      %v477 = vadd.f32 0.0, %v476
      %478 = vmatmul.f32.gmra.mxu0 %v375
      %v479 = vpop.f32.mrf.mxu0
      %v480 = vadd.f32 0.0, %v479
      %481 = vmatmul.f32.gmra.mxu0 %v378
      %v482 = vpop.f32.mrf.mxu0
      %v483 = vadd.f32 0.0, %v482
      %484 = vmatmul.f32.gmra.mxu0 %v381
      %v485 = vpop.f32.mrf.mxu0
      %v486 = vadd.f32 0.0, %v485
      %487 = vmatmul.f32.gmra.mxu0 %v384
      %v488 = vpop.f32.mrf.mxu0
      %v489 = vadd.f32 0.0, %v488
      %490 = vmatmul.f32.gmra.mxu0 %v387
      %v491 = vpop.f32.mrf.mxu0
      %v492 = vadd.f32 0.0, %v491
      %493 = vmatmul.f32.gmra.mxu0 %v390
      %v494 = vpop.f32.mrf.mxu0
      %v495 = vadd.f32 0.0, %v494
      %496 = vmatmul.f32.gmra.mxu0 %v393
      %v497 = vpop.f32.mrf.mxu0
      %v498 = vadd.f32 0.0, %v497
      %499 = vmatmul.f32.gmra.mxu0 %v396
      %v500 = vpop.f32.mrf.mxu0
      %v501 = vadd.f32 0.0, %v500
      %502 = vmatmul.f32.gmra.mxu0 %v399
      %v503 = vpop.f32.mrf.mxu0
      %v504 = vadd.f32 0.0, %v503
      %505 = vmatmul.f32.gmra.mxu0 %v402
      %v506 = vpop.f32.mrf.mxu0
      %v507 = vadd.f32 0.0, %v506
      %508 = vmatmul.f32.gmra.mxu0 %v405
      %v509 = vpop.f32.mrf.mxu0
      %v510 = vadd.f32 0.0, %v509
      %511 = vmatmul.f32.gmra.mxu0 %v408
      %v512 = vpop.f32.mrf.mxu0
      %v513 = vadd.f32 0.0, %v512
      %514 = vmatmul.f32.gmra.mxu0 %v411
      %v515 = vpop.f32.mrf.mxu0
      %v516 = vadd.f32 0.0, %v515
      %517 = vdwg.mxu0
      %v519 = vsel %vm328, %v269, 0
      %v522 = vsel %vm328, %v270, 0
      %v525 = vsel %vm328, %v271, 0
      %v528 = vsel %vm328, %v272, 0
      %v531 = vsel %vm328, %v273, 0
      %v534 = vsel %vm328, %v274, 0
      %v537 = vsel %vm328, %v275, 0
      %v540 = vsel %vm328, %v276, 0
      %v543 = vsel %vm328, %v277, 0
      %v546 = vsel %vm328, %v278, 0
      %v549 = vsel %vm328, %v279, 0
      %v552 = vsel %vm328, %v280, 0
      %v555 = vsel %vm328, %v281, 0
      %v558 = vsel %vm328, %v282, 0
      %v561 = vsel %vm328, %v283, 0
      %v564 = vsel %vm328, %v284, 0
      %v567 = vsel %vm328, %v285, 0
      %v570 = vsel %vm328, %v286, 0
      %v573 = vsel %vm328, %v287, 0
      %v576 = vsel %vm328, %v288, 0
      %v579 = vsel %vm328, %v289, 0
      %v582 = vsel %vm328, %v290, 0
      %v585 = vsel %vm328, %v291, 0
      %v588 = vsel %vm328, %v292, 0
      %v591 = vsel %vm328, %v293, 0
      %v594 = vsel %vm328, %v294, 0
      %v597 = vsel %vm328, %v295, 0
      %v600 = vsel %vm328, %v296, 0
      %v603 = vsel %vm413, %v297, 0
      %605 = vmatpush.msra.mxu0 0.0
      %606 = vmatpush.msra.mxu0 0.0
      %607 = vmatpush.msra.mxu0 0.0
      %608 = vmatpush.msra.mxu0 0.0
      %609 = vmatpush.msra.mxu0 0.0
      %610 = vmatpush.msra.mxu0 0.0
      %611 = vmatpush.msra.mxu0 0.0
      %612 = vmatpush.msra.mxu0 0.0
      %613 = vmatpush.msra.mxu0 0.0
      %614 = vmatpush.msra.mxu0 0.0
      %615 = vmatpush.msra.mxu0 0.0
      %616 = vmatpush.msra.mxu0 0.0
      %617 = vmatpush.msra.mxu0 0.0
      %618 = vmatpush.msra.mxu0 0.0
      %619 = vmatpush.msra.mxu0 0.0
      %620 = vmatpush.msra.mxu0 %v603
      %621 = vmatmul.f32.gmra.mxu0 %v519
      %v622 = vpop.f32.mrf.mxu0
      %v623 = vadd.f32 %v435, %v622
      %624 = vmatmul.f32.gmra.mxu0 %v522
      %v625 = vpop.f32.mrf.mxu0
      %v626 = vadd.f32 %v438, %v625
      %627 = vmatmul.f32.gmra.mxu0 %v525
      %v628 = vpop.f32.mrf.mxu0
      %v629 = vadd.f32 %v441, %v628
      %630 = vmatmul.f32.gmra.mxu0 %v528
      %v631 = vpop.f32.mrf.mxu0
      %v632 = vadd.f32 %v444, %v631
      %633 = vmatmul.f32.gmra.mxu0 %v531
      %v634 = vpop.f32.mrf.mxu0
      %v635 = vadd.f32 %v447, %v634
      %636 = vmatmul.f32.gmra.mxu0 %v534
      %v637 = vpop.f32.mrf.mxu0
      %v638 = vadd.f32 %v450, %v637
      %639 = vmatmul.f32.gmra.mxu0 %v537
      %v640 = vpop.f32.mrf.mxu0
      %v641 = vadd.f32 %v453, %v640
      %642 = vmatmul.f32.gmra.mxu0 %v540
      %v643 = vpop.f32.mrf.mxu0
      %v644 = vadd.f32 %v456, %v643
      %645 = vmatmul.f32.gmra.mxu0 %v543
      %v646 = vpop.f32.mrf.mxu0
      %v647 = vadd.f32 %v459, %v646
      %648 = vmatmul.f32.gmra.mxu0 %v546
      %v649 = vpop.f32.mrf.mxu0
      %v650 = vadd.f32 %v462, %v649
      %651 = vmatmul.f32.gmra.mxu0 %v549
      %v652 = vpop.f32.mrf.mxu0
      %v653 = vadd.f32 %v465, %v652
      %654 = vmatmul.f32.gmra.mxu0 %v552
      %v655 = vpop.f32.mrf.mxu0
      %v656 = vadd.f32 %v468, %v655
      %657 = vmatmul.f32.gmra.mxu0 %v555
      %v658 = vpop.f32.mrf.mxu0
      %v659 = vadd.f32 %v471, %v658
      %660 = vmatmul.f32.gmra.mxu0 %v558
      %v661 = vpop.f32.mrf.mxu0
      %v662 = vadd.f32 %v474, %v661
      %663 = vmatmul.f32.gmra.mxu0 %v561
      %v664 = vpop.f32.mrf.mxu0
      %v665 = vadd.f32 %v477, %v664
      %666 = vmatmul.f32.gmra.mxu0 %v564
      %v667 = vpop.f32.mrf.mxu0
      %v668 = vadd.f32 %v480, %v667
      %669 = vmatmul.f32.gmra.mxu0 %v567
      %v670 = vpop.f32.mrf.mxu0
      %v671 = vadd.f32 %v483, %v670
      %672 = vmatmul.f32.gmra.mxu0 %v570
      %v673 = vpop.f32.mrf.mxu0
      %v674 = vadd.f32 %v486, %v673
      %675 = vmatmul.f32.gmra.mxu0 %v573
      %v676 = vpop.f32.mrf.mxu0
      %v677 = vadd.f32 %v489, %v676
      %678 = vmatmul.f32.gmra.mxu0 %v576
      %v679 = vpop.f32.mrf.mxu0
      %v680 = vadd.f32 %v492, %v679
      %681 = vmatmul.f32.gmra.mxu0 %v579
      %v682 = vpop.f32.mrf.mxu0
      %v683 = vadd.f32 %v495, %v682
      %684 = vmatmul.f32.gmra.mxu0 %v582
      %v685 = vpop.f32.mrf.mxu0
      %v686 = vadd.f32 %v498, %v685
      %687 = vmatmul.f32.gmra.mxu0 %v585
      %v688 = vpop.f32.mrf.mxu0
      %v689 = vadd.f32 %v501, %v688
      %690 = vmatmul.f32.gmra.mxu0 %v588
      %v691 = vpop.f32.mrf.mxu0
      %v692 = vadd.f32 %v504, %v691
      %693 = vmatmul.f32.gmra.mxu0 %v591
      %v694 = vpop.f32.mrf.mxu0
      %v695 = vadd.f32 %v507, %v694
      %696 = vmatmul.f32.gmra.mxu0 %v594
      %v697 = vpop.f32.mrf.mxu0
      %v698 = vadd.f32 %v510, %v697
      %699 = vmatmul.f32.gmra.mxu0 %v597
      %v700 = vpop.f32.mrf.mxu0
      %v701 = vadd.f32 %v513, %v700
      %702 = vmatmul.f32.gmra.mxu0 %v600
      %v703 = vpop.f32.mrf.mxu0
      %v704 = vadd.f32 %v516, %v703
      %705 = vdwg.mxu0
      %v706 = vld [vmem:[%s257 + $0x2] sm:$0xff]
      %v707 = vld [vmem:[%s257 + $0xa] sm:$0xff]
      %v708 = vld [vmem:[%s257 + $0x12] sm:$0xff]
      %v709 = vld [vmem:[%s257 + $0x1a] sm:$0xff]
      %v710 = vld [vmem:[%s257 + $0x22] sm:$0xff]
      %v711 = vld [vmem:[%s257 + $0x2a] sm:$0xff]
      %v712 = vld [vmem:[%s257 + $0x32] sm:$0xff]
      %v713 = vld [vmem:[%s257 + $0x3a] sm:$0xff]
      %v714 = vld [vmem:[%s257 + $0x42] sm:$0xff]
      %v715 = vld [vmem:[%s257 + $0x4a] sm:$0xff]
      %v716 = vld [vmem:[%s257 + $0x52] sm:$0xff]
      %v717 = vld [vmem:[%s257 + $0x5a] sm:$0xff]
      %v718 = vld [vmem:[%s257 + $0x62] sm:$0xff]
      %v719 = vld [vmem:[%s257 + $0x6a] sm:$0xff]
      %v720 = vld [vmem:[%s257 + $0x72] sm:$0xff]
      %v721 = vld [vmem:[%s257 + $0x7a] sm:$0xff]
      %v722 = vld [vmem:[%s257 + $0x82] sm:$0xff]
      %v723 = vld [vmem:[%s257 + $0x8a] sm:$0xff]
      %v724 = vld [vmem:[%s257 + $0x92] sm:$0xff]
      %v725 = vld [vmem:[%s257 + $0x9a] sm:$0xff]
      %v726 = vld [vmem:[%s257 + $0xa2] sm:$0xff]
      %v727 = vld [vmem:[%s257 + $0xaa] sm:$0xff]
      %v728 = vld [vmem:[%s257 + $0xb2] sm:$0xff]
      %v729 = vld [vmem:[%s257 + $0xba] sm:$0xff]
      %v730 = vld [vmem:[%s257 + $0xc2] sm:$0xff]
      %v731 = vld [vmem:[%s257 + $0xca] sm:$0xff]
      %v732 = vld [vmem:[%s257 + $0xd2] sm:$0xff]
      %v733 = vld [vmem:[%s257 + $0xda] sm:$0xff]
      %s734 = scalar_lea.vmem %s3, 8
      %v735 = vld [vmem:[%s734] sm:$0xf]
      %v737 = vsel %vm328, %v706, 0
      %v740 = vsel %vm328, %v707, 0
      %v743 = vsel %vm328, %v708, 0
      %v746 = vsel %vm328, %v709, 0
      %v749 = vsel %vm328, %v710, 0
      %v752 = vsel %vm328, %v711, 0
      %v755 = vsel %vm328, %v712, 0
      %v758 = vsel %vm328, %v713, 0
      %v761 = vsel %vm328, %v714, 0
      %v764 = vsel %vm328, %v715, 0
      %v767 = vsel %vm328, %v716, 0
      %v770 = vsel %vm328, %v717, 0
      %v773 = vsel %vm328, %v718, 0
      %v776 = vsel %vm328, %v719, 0
      %v779 = vsel %vm328, %v720, 0
      %v782 = vsel %vm328, %v721, 0
      %v785 = vsel %vm328, %v722, 0
      %v788 = vsel %vm328, %v723, 0
      %v791 = vsel %vm328, %v724, 0
      %v794 = vsel %vm328, %v725, 0
      %v797 = vsel %vm328, %v726, 0
      %v800 = vsel %vm328, %v727, 0
      %v803 = vsel %vm328, %v728, 0
      %v806 = vsel %vm328, %v729, 0
      %v809 = vsel %vm328, %v730, 0
      %v812 = vsel %vm328, %v731, 0
      %v815 = vsel %vm328, %v732, 0
      %v818 = vsel %vm328, %v733, 0
      %v821 = vsel %vm413, %v735, 0
      %823 = vmatpush.msra.mxu0 0.0
      %824 = vmatpush.msra.mxu0 0.0
      %825 = vmatpush.msra.mxu0 0.0
      %826 = vmatpush.msra.mxu0 0.0
      %827 = vmatpush.msra.mxu0 0.0
      %828 = vmatpush.msra.mxu0 0.0
      %829 = vmatpush.msra.mxu0 0.0
      %830 = vmatpush.msra.mxu0 0.0
      %831 = vmatpush.msra.mxu0 0.0
      %832 = vmatpush.msra.mxu0 0.0
      %833 = vmatpush.msra.mxu0 0.0
      %834 = vmatpush.msra.mxu0 0.0
      %835 = vmatpush.msra.mxu0 0.0
      %836 = vmatpush.msra.mxu0 0.0
      %837 = vmatpush.msra.mxu0 0.0
      %838 = vmatpush.msra.mxu0 %v821
      %839 = vmatmul.f32.gmra.mxu0 %v737
      %v840 = vpop.f32.mrf.mxu0
      %v841 = vadd.f32 0.0, %v840
      %842 = vmatmul.f32.gmra.mxu0 %v740
      %v843 = vpop.f32.mrf.mxu0
      %v844 = vadd.f32 0.0, %v843
      %845 = vmatmul.f32.gmra.mxu0 %v743
      %v846 = vpop.f32.mrf.mxu0
      %v847 = vadd.f32 0.0, %v846
      %848 = vmatmul.f32.gmra.mxu0 %v746
      %v849 = vpop.f32.mrf.mxu0
      %v850 = vadd.f32 0.0, %v849
      %851 = vmatmul.f32.gmra.mxu0 %v749
      %v852 = vpop.f32.mrf.mxu0
      %v853 = vadd.f32 0.0, %v852
      %854 = vmatmul.f32.gmra.mxu0 %v752
      %v855 = vpop.f32.mrf.mxu0
      %v856 = vadd.f32 0.0, %v855
      %857 = vmatmul.f32.gmra.mxu0 %v755
      %v858 = vpop.f32.mrf.mxu0
      %v859 = vadd.f32 0.0, %v858
      %860 = vmatmul.f32.gmra.mxu0 %v758
      %v861 = vpop.f32.mrf.mxu0
      %v862 = vadd.f32 0.0, %v861
      %863 = vmatmul.f32.gmra.mxu0 %v761
      %v864 = vpop.f32.mrf.mxu0
      %v865 = vadd.f32 0.0, %v864
      %866 = vmatmul.f32.gmra.mxu0 %v764
      %v867 = vpop.f32.mrf.mxu0
      %v868 = vadd.f32 0.0, %v867
      %869 = vmatmul.f32.gmra.mxu0 %v767
      %v870 = vpop.f32.mrf.mxu0
      %v871 = vadd.f32 0.0, %v870
      %872 = vmatmul.f32.gmra.mxu0 %v770
      %v873 = vpop.f32.mrf.mxu0
      %v874 = vadd.f32 0.0, %v873
      %875 = vmatmul.f32.gmra.mxu0 %v773
      %v876 = vpop.f32.mrf.mxu0
      %v877 = vadd.f32 0.0, %v876
      %878 = vmatmul.f32.gmra.mxu0 %v776
      %v879 = vpop.f32.mrf.mxu0
      %v880 = vadd.f32 0.0, %v879
      %881 = vmatmul.f32.gmra.mxu0 %v779
      %v882 = vpop.f32.mrf.mxu0
      %v883 = vadd.f32 0.0, %v882
      %884 = vmatmul.f32.gmra.mxu0 %v782
      %v885 = vpop.f32.mrf.mxu0
      %v886 = vadd.f32 0.0, %v885
      %887 = vmatmul.f32.gmra.mxu0 %v785
      %v888 = vpop.f32.mrf.mxu0
      %v889 = vadd.f32 0.0, %v888
      %890 = vmatmul.f32.gmra.mxu0 %v788
      %v891 = vpop.f32.mrf.mxu0
      %v892 = vadd.f32 0.0, %v891
      %893 = vmatmul.f32.gmra.mxu0 %v791
      %v894 = vpop.f32.mrf.mxu0
      %v895 = vadd.f32 0.0, %v894
      %896 = vmatmul.f32.gmra.mxu0 %v794
      %v897 = vpop.f32.mrf.mxu0
      %v898 = vadd.f32 0.0, %v897
      %899 = vmatmul.f32.gmra.mxu0 %v797
      %v900 = vpop.f32.mrf.mxu0
      %v901 = vadd.f32 0.0, %v900
      %902 = vmatmul.f32.gmra.mxu0 %v800
      %v903 = vpop.f32.mrf.mxu0
      %v904 = vadd.f32 0.0, %v903
      %905 = vmatmul.f32.gmra.mxu0 %v803
      %v906 = vpop.f32.mrf.mxu0
      %v907 = vadd.f32 0.0, %v906
      %908 = vmatmul.f32.gmra.mxu0 %v806
      %v909 = vpop.f32.mrf.mxu0
      %v910 = vadd.f32 0.0, %v909
      %911 = vmatmul.f32.gmra.mxu0 %v809
      %v912 = vpop.f32.mrf.mxu0
      %v913 = vadd.f32 0.0, %v912
      %914 = vmatmul.f32.gmra.mxu0 %v812
      %v915 = vpop.f32.mrf.mxu0
      %v916 = vadd.f32 0.0, %v915
      %917 = vmatmul.f32.gmra.mxu0 %v815
      %v918 = vpop.f32.mrf.mxu0
      %v919 = vadd.f32 0.0, %v918
      %920 = vmatmul.f32.gmra.mxu0 %v818
      %v921 = vpop.f32.mrf.mxu0
      %v922 = vadd.f32 0.0, %v921
      %923 = vdwg.mxu0
      %v924 = vadd.f32 %v623, %v841
      %v925 = vadd.f32 %v626, %v844
      %v926 = vadd.f32 %v629, %v847
      %v927 = vadd.f32 %v632, %v850
      %v928 = vadd.f32 %v635, %v853
      %v929 = vadd.f32 %v638, %v856
      %v930 = vadd.f32 %v641, %v859
      %v931 = vadd.f32 %v644, %v862
      %v932 = vadd.f32 %v647, %v865
      %v933 = vadd.f32 %v650, %v868
      %v934 = vadd.f32 %v653, %v871
      %v935 = vadd.f32 %v656, %v874
      %v936 = vadd.f32 %v659, %v877
      %v937 = vadd.f32 %v662, %v880
      %v938 = vadd.f32 %v665, %v883
      %v939 = vadd.f32 %v668, %v886
      %v940 = vadd.f32 %v671, %v889
      %v941 = vadd.f32 %v674, %v892
      %v942 = vadd.f32 %v677, %v895
      %v943 = vadd.f32 %v680, %v898
      %v944 = vadd.f32 %v683, %v901
      %v945 = vadd.f32 %v686, %v904
      %v946 = vadd.f32 %v689, %v907
      %v947 = vadd.f32 %v692, %v910
      %v948 = vadd.f32 %v695, %v913
      %v949 = vadd.f32 %v698, %v916
      %v950 = vadd.f32 %v701, %v919
      %v951 = vadd.f32 %v704, %v922
      %v952 = vld [vmem:[%s257 + $0x10] sm:$0xff]
      %v953 = vld [vmem:[%s257 + $0x18] sm:$0xff]
      %v954 = vld [vmem:[%s257 + $0x20] sm:$0xff]
      %v955 = vld [vmem:[%s257 + $0x28] sm:$0xff]
      %v956 = vld [vmem:[%s257 + $0x30] sm:$0xff]
      %v957 = vld [vmem:[%s257 + $0x38] sm:$0xff]
      %v958 = vld [vmem:[%s257 + $0x40] sm:$0xff]
      %v959 = vld [vmem:[%s257 + $0x48] sm:$0xff]
      %v960 = vld [vmem:[%s257 + $0x50] sm:$0xff]
      %v961 = vld [vmem:[%s257 + $0x58] sm:$0xff]
      %v962 = vld [vmem:[%s257 + $0x60] sm:$0xff]
      %v963 = vld [vmem:[%s257 + $0x68] sm:$0xff]
      %v964 = vld [vmem:[%s257 + $0x70] sm:$0xff]
      %v965 = vld [vmem:[%s257 + $0x78] sm:$0xff]
      %v966 = vld [vmem:[%s257 + $0x80] sm:$0xff]
      %v967 = vld [vmem:[%s257 + $0x88] sm:$0xff]
      %v968 = vld [vmem:[%s257 + $0x90] sm:$0xff]
      %v969 = vld [vmem:[%s257 + $0x98] sm:$0xff]
      %v970 = vld [vmem:[%s257 + $0xa0] sm:$0xff]
      %v971 = vld [vmem:[%s257 + $0xa8] sm:$0xff]
      %v972 = vld [vmem:[%s257 + $0xb0] sm:$0xff]
      %v973 = vld [vmem:[%s257 + $0xb8] sm:$0xff]
      %v974 = vld [vmem:[%s257 + $0xc0] sm:$0xff]
      %v975 = vld [vmem:[%s257 + $0xc8] sm:$0xff]
      %v976 = vld [vmem:[%s257 + $0xd0] sm:$0xff]
      %v977 = vld [vmem:[%s257 + $0xd8] sm:$0xff]
      %v978 = vld [vmem:[%s257 + $0xe0] sm:$0xff]
      %v979 = vld [vmem:[%s257 + $0xe8] sm:$0xff]
      %s980 = scalar_lea.vmem %s3, 12
      %v981 = vld [vmem:[%s980] sm:$0xf]
      %v983 = vsel %vm328, %v952, 0
      %v986 = vsel %vm328, %v953, 0
      %v989 = vsel %vm328, %v954, 0
      %v992 = vsel %vm328, %v955, 0
      %v995 = vsel %vm328, %v956, 0
      %v998 = vsel %vm328, %v957, 0
      %v1001 = vsel %vm328, %v958, 0
      %v1004 = vsel %vm328, %v959, 0
      %v1007 = vsel %vm328, %v960, 0
      %v1010 = vsel %vm328, %v961, 0
      %v1013 = vsel %vm328, %v962, 0
      %v1016 = vsel %vm328, %v963, 0
      %v1019 = vsel %vm328, %v964, 0
      %v1022 = vsel %vm328, %v965, 0
      %v1025 = vsel %vm328, %v966, 0
      %v1028 = vsel %vm328, %v967, 0
      %v1031 = vsel %vm328, %v968, 0
      %v1034 = vsel %vm328, %v969, 0
      %v1037 = vsel %vm328, %v970, 0
      %v1040 = vsel %vm328, %v971, 0
      %v1043 = vsel %vm328, %v972, 0
      %v1046 = vsel %vm328, %v973, 0
      %v1049 = vsel %vm328, %v974, 0
      %v1052 = vsel %vm328, %v975, 0
      %v1055 = vsel %vm328, %v976, 0
      %v1058 = vsel %vm328, %v977, 0
      %v1061 = vsel %vm328, %v978, 0
      %v1064 = vsel %vm328, %v979, 0
      %v1067 = vsel %vm413, %v981, 0
      %1069 = vmatpush.msra.mxu0 0.0
      %1070 = vmatpush.msra.mxu0 0.0
      %1071 = vmatpush.msra.mxu0 0.0
      %1072 = vmatpush.msra.mxu0 0.0
      %1073 = vmatpush.msra.mxu0 0.0
      %1074 = vmatpush.msra.mxu0 0.0
      %1075 = vmatpush.msra.mxu0 0.0
      %1076 = vmatpush.msra.mxu0 0.0
      %1077 = vmatpush.msra.mxu0 0.0
      %1078 = vmatpush.msra.mxu0 0.0
      %1079 = vmatpush.msra.mxu0 0.0
      %1080 = vmatpush.msra.mxu0 0.0
      %1081 = vmatpush.msra.mxu0 0.0
      %1082 = vmatpush.msra.mxu0 0.0
      %1083 = vmatpush.msra.mxu0 0.0
      %1084 = vmatpush.msra.mxu0 %v1067
      %1085 = vmatmul.f32.gmra.mxu0 %v983
      %v1086 = vpop.f32.mrf.mxu0
      %v1087 = vadd.f32 0.0, %v1086
      %1088 = vmatmul.f32.gmra.mxu0 %v986
      %v1089 = vpop.f32.mrf.mxu0
      %v1090 = vadd.f32 0.0, %v1089
      %1091 = vmatmul.f32.gmra.mxu0 %v989
      %v1092 = vpop.f32.mrf.mxu0
      %v1093 = vadd.f32 0.0, %v1092
      %1094 = vmatmul.f32.gmra.mxu0 %v992
      %v1095 = vpop.f32.mrf.mxu0
      %v1096 = vadd.f32 0.0, %v1095
      %1097 = vmatmul.f32.gmra.mxu0 %v995
      %v1098 = vpop.f32.mrf.mxu0
      %v1099 = vadd.f32 0.0, %v1098
      %1100 = vmatmul.f32.gmra.mxu0 %v998
      %v1101 = vpop.f32.mrf.mxu0
      %v1102 = vadd.f32 0.0, %v1101
      %1103 = vmatmul.f32.gmra.mxu0 %v1001
      %v1104 = vpop.f32.mrf.mxu0
      %v1105 = vadd.f32 0.0, %v1104
      %1106 = vmatmul.f32.gmra.mxu0 %v1004
      %v1107 = vpop.f32.mrf.mxu0
      %v1108 = vadd.f32 0.0, %v1107
      %1109 = vmatmul.f32.gmra.mxu0 %v1007
      %v1110 = vpop.f32.mrf.mxu0
      %v1111 = vadd.f32 0.0, %v1110
      %1112 = vmatmul.f32.gmra.mxu0 %v1010
      %v1113 = vpop.f32.mrf.mxu0
      %v1114 = vadd.f32 0.0, %v1113
      %1115 = vmatmul.f32.gmra.mxu0 %v1013
      %v1116 = vpop.f32.mrf.mxu0
      %v1117 = vadd.f32 0.0, %v1116
      %1118 = vmatmul.f32.gmra.mxu0 %v1016
      %v1119 = vpop.f32.mrf.mxu0
      %v1120 = vadd.f32 0.0, %v1119
      %1121 = vmatmul.f32.gmra.mxu0 %v1019
      %v1122 = vpop.f32.mrf.mxu0
      %v1123 = vadd.f32 0.0, %v1122
      %1124 = vmatmul.f32.gmra.mxu0 %v1022
      %v1125 = vpop.f32.mrf.mxu0
      %v1126 = vadd.f32 0.0, %v1125
      %1127 = vmatmul.f32.gmra.mxu0 %v1025
      %v1128 = vpop.f32.mrf.mxu0
      %v1129 = vadd.f32 0.0, %v1128
      %1130 = vmatmul.f32.gmra.mxu0 %v1028
      %v1131 = vpop.f32.mrf.mxu0
      %v1132 = vadd.f32 0.0, %v1131
      %1133 = vmatmul.f32.gmra.mxu0 %v1031
      %v1134 = vpop.f32.mrf.mxu0
      %v1135 = vadd.f32 0.0, %v1134
      %1136 = vmatmul.f32.gmra.mxu0 %v1034
      %v1137 = vpop.f32.mrf.mxu0
      %v1138 = vadd.f32 0.0, %v1137
      %1139 = vmatmul.f32.gmra.mxu0 %v1037
      %v1140 = vpop.f32.mrf.mxu0
      %v1141 = vadd.f32 0.0, %v1140
      %1142 = vmatmul.f32.gmra.mxu0 %v1040
      %v1143 = vpop.f32.mrf.mxu0
      %v1144 = vadd.f32 0.0, %v1143
      %1145 = vmatmul.f32.gmra.mxu0 %v1043
      %v1146 = vpop.f32.mrf.mxu0
      %v1147 = vadd.f32 0.0, %v1146
      %1148 = vmatmul.f32.gmra.mxu0 %v1046
      %v1149 = vpop.f32.mrf.mxu0
      %v1150 = vadd.f32 0.0, %v1149
      %1151 = vmatmul.f32.gmra.mxu0 %v1049
      %v1152 = vpop.f32.mrf.mxu0
      %v1153 = vadd.f32 0.0, %v1152
      %1154 = vmatmul.f32.gmra.mxu0 %v1052
      %v1155 = vpop.f32.mrf.mxu0
      %v1156 = vadd.f32 0.0, %v1155
      %1157 = vmatmul.f32.gmra.mxu0 %v1055
      %v1158 = vpop.f32.mrf.mxu0
      %v1159 = vadd.f32 0.0, %v1158
      %1160 = vmatmul.f32.gmra.mxu0 %v1058
      %v1161 = vpop.f32.mrf.mxu0
      %v1162 = vadd.f32 0.0, %v1161
      %1163 = vmatmul.f32.gmra.mxu0 %v1061
      %v1164 = vpop.f32.mrf.mxu0
      %v1165 = vadd.f32 0.0, %v1164
      %1166 = vmatmul.f32.gmra.mxu0 %v1064
      %v1167 = vpop.f32.mrf.mxu0
      %v1168 = vadd.f32 0.0, %v1167
      %1169 = vdwg.mxu0
      %v1170 = vadd.f32 %v924, %v1087
      %v1171 = vadd.f32 %v925, %v1090
      %v1172 = vadd.f32 %v926, %v1093
      %v1173 = vadd.f32 %v927, %v1096
      %v1174 = vadd.f32 %v928, %v1099
      %v1175 = vadd.f32 %v929, %v1102
      %v1176 = vadd.f32 %v930, %v1105
      %v1177 = vadd.f32 %v931, %v1108
      %v1178 = vadd.f32 %v932, %v1111
      %v1179 = vadd.f32 %v933, %v1114
      %v1180 = vadd.f32 %v934, %v1117
      %v1181 = vadd.f32 %v935, %v1120
      %v1182 = vadd.f32 %v936, %v1123
      %v1183 = vadd.f32 %v937, %v1126
      %v1184 = vadd.f32 %v938, %v1129
      %v1185 = vadd.f32 %v939, %v1132
      %v1186 = vadd.f32 %v940, %v1135
      %v1187 = vadd.f32 %v941, %v1138
      %v1188 = vadd.f32 %v942, %v1141
      %v1189 = vadd.f32 %v943, %v1144
      %v1190 = vadd.f32 %v944, %v1147
      %v1191 = vadd.f32 %v945, %v1150
      %v1192 = vadd.f32 %v946, %v1153
      %v1193 = vadd.f32 %v947, %v1156
      %v1194 = vadd.f32 %v948, %v1159
      %v1195 = vadd.f32 %v949, %v1162
      %v1196 = vadd.f32 %v950, %v1165
      %v1197 = vadd.f32 %v951, %v1168
      %v1198 = vld [vmem:[%s257 + $0x11] sm:$0xff]
      %v1199 = vld [vmem:[%s257 + $0x19] sm:$0xff]
      %v1200 = vld [vmem:[%s257 + $0x21] sm:$0xff]
      %v1201 = vld [vmem:[%s257 + $0x29] sm:$0xff]
      %v1202 = vld [vmem:[%s257 + $0x31] sm:$0xff]
      %v1203 = vld [vmem:[%s257 + $0x39] sm:$0xff]
      %v1204 = vld [vmem:[%s257 + $0x41] sm:$0xff]
      %v1205 = vld [vmem:[%s257 + $0x49] sm:$0xff]
      %v1206 = vld [vmem:[%s257 + $0x51] sm:$0xff]
      %v1207 = vld [vmem:[%s257 + $0x59] sm:$0xff]
      %v1208 = vld [vmem:[%s257 + $0x61] sm:$0xff]
      %v1209 = vld [vmem:[%s257 + $0x69] sm:$0xff]
      %v1210 = vld [vmem:[%s257 + $0x71] sm:$0xff]
      %v1211 = vld [vmem:[%s257 + $0x79] sm:$0xff]
      %v1212 = vld [vmem:[%s257 + $0x81] sm:$0xff]
      %v1213 = vld [vmem:[%s257 + $0x89] sm:$0xff]
      %v1214 = vld [vmem:[%s257 + $0x91] sm:$0xff]
      %v1215 = vld [vmem:[%s257 + $0x99] sm:$0xff]
      %v1216 = vld [vmem:[%s257 + $0xa1] sm:$0xff]
      %v1217 = vld [vmem:[%s257 + $0xa9] sm:$0xff]
      %v1218 = vld [vmem:[%s257 + $0xb1] sm:$0xff]
      %v1219 = vld [vmem:[%s257 + $0xb9] sm:$0xff]
      %v1220 = vld [vmem:[%s257 + $0xc1] sm:$0xff]
      %v1221 = vld [vmem:[%s257 + $0xc9] sm:$0xff]
      %v1222 = vld [vmem:[%s257 + $0xd1] sm:$0xff]
      %v1223 = vld [vmem:[%s257 + $0xd9] sm:$0xff]
      %v1224 = vld [vmem:[%s257 + $0xe1] sm:$0xff]
      %v1225 = vld [vmem:[%s257 + $0xe9] sm:$0xff]
      %s1226 = scalar_lea.vmem %s3, 16
      %v1227 = vld [vmem:[%s1226] sm:$0xf]
      %v1229 = vsel %vm328, %v1198, 0
      %v1232 = vsel %vm328, %v1199, 0
      %v1235 = vsel %vm328, %v1200, 0
      %v1238 = vsel %vm328, %v1201, 0
      %v1241 = vsel %vm328, %v1202, 0
      %v1244 = vsel %vm328, %v1203, 0
      %v1247 = vsel %vm328, %v1204, 0
      %v1250 = vsel %vm328, %v1205, 0
      %v1253 = vsel %vm328, %v1206, 0
      %v1256 = vsel %vm328, %v1207, 0
      %v1259 = vsel %vm328, %v1208, 0
      %v1262 = vsel %vm328, %v1209, 0
      %v1265 = vsel %vm328, %v1210, 0
      %v1268 = vsel %vm328, %v1211, 0
      %v1271 = vsel %vm328, %v1212, 0
      %v1274 = vsel %vm328, %v1213, 0
      %v1277 = vsel %vm328, %v1214, 0
      %v1280 = vsel %vm328, %v1215, 0
      %v1283 = vsel %vm328, %v1216, 0
      %v1286 = vsel %vm328, %v1217, 0
      %v1289 = vsel %vm328, %v1218, 0
      %v1292 = vsel %vm328, %v1219, 0
      %v1295 = vsel %vm328, %v1220, 0
      %v1298 = vsel %vm328, %v1221, 0
      %v1301 = vsel %vm328, %v1222, 0
      %v1304 = vsel %vm328, %v1223, 0
      %v1307 = vsel %vm328, %v1224, 0
      %v1310 = vsel %vm328, %v1225, 0
      %v1313 = vsel %vm413, %v1227, 0
      %1315 = vmatpush.msra.mxu0 0.0
      %1316 = vmatpush.msra.mxu0 0.0
      %1317 = vmatpush.msra.mxu0 0.0
      %1318 = vmatpush.msra.mxu0 0.0
      %1319 = vmatpush.msra.mxu0 0.0
      %1320 = vmatpush.msra.mxu0 0.0
      %1321 = vmatpush.msra.mxu0 0.0
      %1322 = vmatpush.msra.mxu0 0.0
      %1323 = vmatpush.msra.mxu0 0.0
      %1324 = vmatpush.msra.mxu0 0.0
      %1325 = vmatpush.msra.mxu0 0.0
      %1326 = vmatpush.msra.mxu0 0.0
      %1327 = vmatpush.msra.mxu0 0.0
      %1328 = vmatpush.msra.mxu0 0.0
      %1329 = vmatpush.msra.mxu0 0.0
      %1330 = vmatpush.msra.mxu0 %v1313
      %1331 = vmatmul.f32.gmra.mxu0 %v1229
      %v1332 = vpop.f32.mrf.mxu0
      %v1333 = vadd.f32 0.0, %v1332
      %1334 = vmatmul.f32.gmra.mxu0 %v1232
      %v1335 = vpop.f32.mrf.mxu0
      %v1336 = vadd.f32 0.0, %v1335
      %1337 = vmatmul.f32.gmra.mxu0 %v1235
      %v1338 = vpop.f32.mrf.mxu0
      %v1339 = vadd.f32 0.0, %v1338
      %1340 = vmatmul.f32.gmra.mxu0 %v1238
      %v1341 = vpop.f32.mrf.mxu0
      %v1342 = vadd.f32 0.0, %v1341
      %1343 = vmatmul.f32.gmra.mxu0 %v1241
      %v1344 = vpop.f32.mrf.mxu0
      %v1345 = vadd.f32 0.0, %v1344
      %1346 = vmatmul.f32.gmra.mxu0 %v1244
      %v1347 = vpop.f32.mrf.mxu0
      %v1348 = vadd.f32 0.0, %v1347
      %1349 = vmatmul.f32.gmra.mxu0 %v1247
      %v1350 = vpop.f32.mrf.mxu0
      %v1351 = vadd.f32 0.0, %v1350
      %1352 = vmatmul.f32.gmra.mxu0 %v1250
      %v1353 = vpop.f32.mrf.mxu0
      %v1354 = vadd.f32 0.0, %v1353
      %1355 = vmatmul.f32.gmra.mxu0 %v1253
      %v1356 = vpop.f32.mrf.mxu0
      %v1357 = vadd.f32 0.0, %v1356
      %1358 = vmatmul.f32.gmra.mxu0 %v1256
      %v1359 = vpop.f32.mrf.mxu0
      %v1360 = vadd.f32 0.0, %v1359
      %1361 = vmatmul.f32.gmra.mxu0 %v1259
      %v1362 = vpop.f32.mrf.mxu0
      %v1363 = vadd.f32 0.0, %v1362
      %1364 = vmatmul.f32.gmra.mxu0 %v1262
      %v1365 = vpop.f32.mrf.mxu0
      %v1366 = vadd.f32 0.0, %v1365
      %1367 = vmatmul.f32.gmra.mxu0 %v1265
      %v1368 = vpop.f32.mrf.mxu0
      %v1369 = vadd.f32 0.0, %v1368
      %1370 = vmatmul.f32.gmra.mxu0 %v1268
      %v1371 = vpop.f32.mrf.mxu0
      %v1372 = vadd.f32 0.0, %v1371
      %1373 = vmatmul.f32.gmra.mxu0 %v1271
      %v1374 = vpop.f32.mrf.mxu0
      %v1375 = vadd.f32 0.0, %v1374
      %1376 = vmatmul.f32.gmra.mxu0 %v1274
      %v1377 = vpop.f32.mrf.mxu0
      %v1378 = vadd.f32 0.0, %v1377
      %1379 = vmatmul.f32.gmra.mxu0 %v1277
      %v1380 = vpop.f32.mrf.mxu0
      %v1381 = vadd.f32 0.0, %v1380
      %1382 = vmatmul.f32.gmra.mxu0 %v1280
      %v1383 = vpop.f32.mrf.mxu0
      %v1384 = vadd.f32 0.0, %v1383
      %1385 = vmatmul.f32.gmra.mxu0 %v1283
      %v1386 = vpop.f32.mrf.mxu0
      %v1387 = vadd.f32 0.0, %v1386
      %1388 = vmatmul.f32.gmra.mxu0 %v1286
      %v1389 = vpop.f32.mrf.mxu0
      %v1390 = vadd.f32 0.0, %v1389
      %1391 = vmatmul.f32.gmra.mxu0 %v1289
      %v1392 = vpop.f32.mrf.mxu0
      %v1393 = vadd.f32 0.0, %v1392
      %1394 = vmatmul.f32.gmra.mxu0 %v1292
      %v1395 = vpop.f32.mrf.mxu0
      %v1396 = vadd.f32 0.0, %v1395
      %1397 = vmatmul.f32.gmra.mxu0 %v1295
      %v1398 = vpop.f32.mrf.mxu0
      %v1399 = vadd.f32 0.0, %v1398
      %1400 = vmatmul.f32.gmra.mxu0 %v1298
      %v1401 = vpop.f32.mrf.mxu0
      %v1402 = vadd.f32 0.0, %v1401
      %1403 = vmatmul.f32.gmra.mxu0 %v1301
      %v1404 = vpop.f32.mrf.mxu0
      %v1405 = vadd.f32 0.0, %v1404
      %1406 = vmatmul.f32.gmra.mxu0 %v1304
      %v1407 = vpop.f32.mrf.mxu0
      %v1408 = vadd.f32 0.0, %v1407
      %1409 = vmatmul.f32.gmra.mxu0 %v1307
      %v1410 = vpop.f32.mrf.mxu0
      %v1411 = vadd.f32 0.0, %v1410
      %1412 = vmatmul.f32.gmra.mxu0 %v1310
      %v1413 = vpop.f32.mrf.mxu0
      %v1414 = vadd.f32 0.0, %v1413
      %1415 = vdwg.mxu0
      %v1416 = vadd.f32 %v1170, %v1333
      %v1417 = vadd.f32 %v1171, %v1336
      %v1418 = vadd.f32 %v1172, %v1339
      %v1419 = vadd.f32 %v1173, %v1342
      %v1420 = vadd.f32 %v1174, %v1345
      %v1421 = vadd.f32 %v1175, %v1348
      %v1422 = vadd.f32 %v1176, %v1351
      %v1423 = vadd.f32 %v1177, %v1354
      %v1424 = vadd.f32 %v1178, %v1357
      %v1425 = vadd.f32 %v1179, %v1360
      %v1426 = vadd.f32 %v1180, %v1363
      %v1427 = vadd.f32 %v1181, %v1366
      %v1428 = vadd.f32 %v1182, %v1369
      %v1429 = vadd.f32 %v1183, %v1372
      %v1430 = vadd.f32 %v1184, %v1375
      %v1431 = vadd.f32 %v1185, %v1378
      %v1432 = vadd.f32 %v1186, %v1381
      %v1433 = vadd.f32 %v1187, %v1384
      %v1434 = vadd.f32 %v1188, %v1387
      %v1435 = vadd.f32 %v1189, %v1390
      %v1436 = vadd.f32 %v1190, %v1393
      %v1437 = vadd.f32 %v1191, %v1396
      %v1438 = vadd.f32 %v1192, %v1399
      %v1439 = vadd.f32 %v1193, %v1402
      %v1440 = vadd.f32 %v1194, %v1405
      %v1441 = vadd.f32 %v1195, %v1408
      %v1442 = vadd.f32 %v1196, %v1411
      %v1443 = vadd.f32 %v1197, %v1414
      %v1444 = vld [vmem:[%s257 + $0x12] sm:$0xff]
      %v1445 = vld [vmem:[%s257 + $0x1a] sm:$0xff]
      %v1446 = vld [vmem:[%s257 + $0x22] sm:$0xff]
      %v1447 = vld [vmem:[%s257 + $0x2a] sm:$0xff]
      %v1448 = vld [vmem:[%s257 + $0x32] sm:$0xff]
      %v1449 = vld [vmem:[%s257 + $0x3a] sm:$0xff]
      %v1450 = vld [vmem:[%s257 + $0x42] sm:$0xff]
      %v1451 = vld [vmem:[%s257 + $0x4a] sm:$0xff]
      %v1452 = vld [vmem:[%s257 + $0x52] sm:$0xff]
      %v1453 = vld [vmem:[%s257 + $0x5a] sm:$0xff]
      %v1454 = vld [vmem:[%s257 + $0x62] sm:$0xff]
      %v1455 = vld [vmem:[%s257 + $0x6a] sm:$0xff]
      %v1456 = vld [vmem:[%s257 + $0x72] sm:$0xff]
      %v1457 = vld [vmem:[%s257 + $0x7a] sm:$0xff]
      %v1458 = vld [vmem:[%s257 + $0x82] sm:$0xff]
      %v1459 = vld [vmem:[%s257 + $0x8a] sm:$0xff]
      %v1460 = vld [vmem:[%s257 + $0x92] sm:$0xff]
      %v1461 = vld [vmem:[%s257 + $0x9a] sm:$0xff]
      %v1462 = vld [vmem:[%s257 + $0xa2] sm:$0xff]
      %v1463 = vld [vmem:[%s257 + $0xaa] sm:$0xff]
      %v1464 = vld [vmem:[%s257 + $0xb2] sm:$0xff]
      %v1465 = vld [vmem:[%s257 + $0xba] sm:$0xff]
      %v1466 = vld [vmem:[%s257 + $0xc2] sm:$0xff]
      %v1467 = vld [vmem:[%s257 + $0xca] sm:$0xff]
      %v1468 = vld [vmem:[%s257 + $0xd2] sm:$0xff]
      %v1469 = vld [vmem:[%s257 + $0xda] sm:$0xff]
      %v1470 = vld [vmem:[%s257 + $0xe2] sm:$0xff]
      %v1471 = vld [vmem:[%s257 + $0xea] sm:$0xff]
      %s1472 = scalar_lea.vmem %s3, 20
      %v1473 = vld [vmem:[%s1472] sm:$0xf]
      %v1475 = vsel %vm328, %v1444, 0
      %v1478 = vsel %vm328, %v1445, 0
      %v1481 = vsel %vm328, %v1446, 0
      %v1484 = vsel %vm328, %v1447, 0
      %v1487 = vsel %vm328, %v1448, 0
      %v1490 = vsel %vm328, %v1449, 0
      %v1493 = vsel %vm328, %v1450, 0
      %v1496 = vsel %vm328, %v1451, 0
      %v1499 = vsel %vm328, %v1452, 0
      %v1502 = vsel %vm328, %v1453, 0
      %v1505 = vsel %vm328, %v1454, 0
      %v1508 = vsel %vm328, %v1455, 0
      %v1511 = vsel %vm328, %v1456, 0
      %v1514 = vsel %vm328, %v1457, 0
      %v1517 = vsel %vm328, %v1458, 0
      %v1520 = vsel %vm328, %v1459, 0
      %v1523 = vsel %vm328, %v1460, 0
      %v1526 = vsel %vm328, %v1461, 0
      %v1529 = vsel %vm328, %v1462, 0
      %v1532 = vsel %vm328, %v1463, 0
      %v1535 = vsel %vm328, %v1464, 0
      %v1538 = vsel %vm328, %v1465, 0
      %v1541 = vsel %vm328, %v1466, 0
      %v1544 = vsel %vm328, %v1467, 0
      %v1547 = vsel %vm328, %v1468, 0
      %v1550 = vsel %vm328, %v1469, 0
      %v1553 = vsel %vm328, %v1470, 0
      %v1556 = vsel %vm328, %v1471, 0
      %v1559 = vsel %vm413, %v1473, 0
      %1561 = vmatpush.msra.mxu0 0.0
      %1562 = vmatpush.msra.mxu0 0.0
      %1563 = vmatpush.msra.mxu0 0.0
      %1564 = vmatpush.msra.mxu0 0.0
      %1565 = vmatpush.msra.mxu0 0.0
      %1566 = vmatpush.msra.mxu0 0.0
      %1567 = vmatpush.msra.mxu0 0.0
      %1568 = vmatpush.msra.mxu0 0.0
      %1569 = vmatpush.msra.mxu0 0.0
      %1570 = vmatpush.msra.mxu0 0.0
      %1571 = vmatpush.msra.mxu0 0.0
      %1572 = vmatpush.msra.mxu0 0.0
      %1573 = vmatpush.msra.mxu0 0.0
      %1574 = vmatpush.msra.mxu0 0.0
      %1575 = vmatpush.msra.mxu0 0.0
      %1576 = vmatpush.msra.mxu0 %v1559
      %1577 = vmatmul.f32.gmra.mxu0 %v1475
      %v1578 = vpop.f32.mrf.mxu0
      %v1579 = vadd.f32 0.0, %v1578
      %1580 = vmatmul.f32.gmra.mxu0 %v1478
      %v1581 = vpop.f32.mrf.mxu0
      %v1582 = vadd.f32 0.0, %v1581
      %1583 = vmatmul.f32.gmra.mxu0 %v1481
      %v1584 = vpop.f32.mrf.mxu0
      %v1585 = vadd.f32 0.0, %v1584
      %1586 = vmatmul.f32.gmra.mxu0 %v1484
      %v1587 = vpop.f32.mrf.mxu0
      %v1588 = vadd.f32 0.0, %v1587
      %1589 = vmatmul.f32.gmra.mxu0 %v1487
      %v1590 = vpop.f32.mrf.mxu0
      %v1591 = vadd.f32 0.0, %v1590
      %1592 = vmatmul.f32.gmra.mxu0 %v1490
      %v1593 = vpop.f32.mrf.mxu0
      %v1594 = vadd.f32 0.0, %v1593
      %1595 = vmatmul.f32.gmra.mxu0 %v1493
      %v1596 = vpop.f32.mrf.mxu0
      %v1597 = vadd.f32 0.0, %v1596
      %1598 = vmatmul.f32.gmra.mxu0 %v1496
      %v1599 = vpop.f32.mrf.mxu0
      %v1600 = vadd.f32 0.0, %v1599
      %1601 = vmatmul.f32.gmra.mxu0 %v1499
      %v1602 = vpop.f32.mrf.mxu0
      %v1603 = vadd.f32 0.0, %v1602
      %1604 = vmatmul.f32.gmra.mxu0 %v1502
      %v1605 = vpop.f32.mrf.mxu0
      %v1606 = vadd.f32 0.0, %v1605
      %1607 = vmatmul.f32.gmra.mxu0 %v1505
      %v1608 = vpop.f32.mrf.mxu0
      %v1609 = vadd.f32 0.0, %v1608
      %1610 = vmatmul.f32.gmra.mxu0 %v1508
      %v1611 = vpop.f32.mrf.mxu0
      %v1612 = vadd.f32 0.0, %v1611
      %1613 = vmatmul.f32.gmra.mxu0 %v1511
      %v1614 = vpop.f32.mrf.mxu0
      %v1615 = vadd.f32 0.0, %v1614
      %1616 = vmatmul.f32.gmra.mxu0 %v1514
      %v1617 = vpop.f32.mrf.mxu0
      %v1618 = vadd.f32 0.0, %v1617
      %1619 = vmatmul.f32.gmra.mxu0 %v1517
      %v1620 = vpop.f32.mrf.mxu0
      %v1621 = vadd.f32 0.0, %v1620
      %1622 = vmatmul.f32.gmra.mxu0 %v1520
      %v1623 = vpop.f32.mrf.mxu0
      %v1624 = vadd.f32 0.0, %v1623
      %1625 = vmatmul.f32.gmra.mxu0 %v1523
      %v1626 = vpop.f32.mrf.mxu0
      %v1627 = vadd.f32 0.0, %v1626
      %1628 = vmatmul.f32.gmra.mxu0 %v1526
      %v1629 = vpop.f32.mrf.mxu0
      %v1630 = vadd.f32 0.0, %v1629
      %1631 = vmatmul.f32.gmra.mxu0 %v1529
      %v1632 = vpop.f32.mrf.mxu0
      %v1633 = vadd.f32 0.0, %v1632
      %1634 = vmatmul.f32.gmra.mxu0 %v1532
      %v1635 = vpop.f32.mrf.mxu0
      %v1636 = vadd.f32 0.0, %v1635
      %1637 = vmatmul.f32.gmra.mxu0 %v1535
      %v1638 = vpop.f32.mrf.mxu0
      %v1639 = vadd.f32 0.0, %v1638
      %1640 = vmatmul.f32.gmra.mxu0 %v1538
      %v1641 = vpop.f32.mrf.mxu0
      %v1642 = vadd.f32 0.0, %v1641
      %1643 = vmatmul.f32.gmra.mxu0 %v1541
      %v1644 = vpop.f32.mrf.mxu0
      %v1645 = vadd.f32 0.0, %v1644
      %1646 = vmatmul.f32.gmra.mxu0 %v1544
      %v1647 = vpop.f32.mrf.mxu0
      %v1648 = vadd.f32 0.0, %v1647
      %1649 = vmatmul.f32.gmra.mxu0 %v1547
      %v1650 = vpop.f32.mrf.mxu0
      %v1651 = vadd.f32 0.0, %v1650
      %1652 = vmatmul.f32.gmra.mxu0 %v1550
      %v1653 = vpop.f32.mrf.mxu0
      %v1654 = vadd.f32 0.0, %v1653
      %1655 = vmatmul.f32.gmra.mxu0 %v1553
      %v1656 = vpop.f32.mrf.mxu0
      %v1657 = vadd.f32 0.0, %v1656
      %1658 = vmatmul.f32.gmra.mxu0 %v1556
      %v1659 = vpop.f32.mrf.mxu0
      %v1660 = vadd.f32 0.0, %v1659
      %1661 = vdwg.mxu0
      %v1662 = vadd.f32 %v1416, %v1579
      %v1663 = vadd.f32 %v1417, %v1582
      %v1664 = vadd.f32 %v1418, %v1585
      %v1665 = vadd.f32 %v1419, %v1588
      %v1666 = vadd.f32 %v1420, %v1591
      %v1667 = vadd.f32 %v1421, %v1594
      %v1668 = vadd.f32 %v1422, %v1597
      %v1669 = vadd.f32 %v1423, %v1600
      %v1670 = vadd.f32 %v1424, %v1603
      %v1671 = vadd.f32 %v1425, %v1606
      %v1672 = vadd.f32 %v1426, %v1609
      %v1673 = vadd.f32 %v1427, %v1612
      %v1674 = vadd.f32 %v1428, %v1615
      %v1675 = vadd.f32 %v1429, %v1618
      %v1676 = vadd.f32 %v1430, %v1621
      %v1677 = vadd.f32 %v1431, %v1624
      %v1678 = vadd.f32 %v1432, %v1627
      %v1679 = vadd.f32 %v1433, %v1630
      %v1680 = vadd.f32 %v1434, %v1633
      %v1681 = vadd.f32 %v1435, %v1636
      %v1682 = vadd.f32 %v1436, %v1639
      %v1683 = vadd.f32 %v1437, %v1642
      %v1684 = vadd.f32 %v1438, %v1645
      %v1685 = vadd.f32 %v1439, %v1648
      %v1686 = vadd.f32 %v1440, %v1651
      %v1687 = vadd.f32 %v1441, %v1654
      %v1688 = vadd.f32 %v1442, %v1657
      %v1689 = vadd.f32 %v1443, %v1660
      %v1690 = vld [vmem:[%s257 + $0x20] sm:$0xff]
      %v1691 = vld [vmem:[%s257 + $0x28] sm:$0xff]
      %v1692 = vld [vmem:[%s257 + $0x30] sm:$0xff]
      %v1693 = vld [vmem:[%s257 + $0x38] sm:$0xff]
      %v1694 = vld [vmem:[%s257 + $0x40] sm:$0xff]
      %v1695 = vld [vmem:[%s257 + $0x48] sm:$0xff]
      %v1696 = vld [vmem:[%s257 + $0x50] sm:$0xff]
      %v1697 = vld [vmem:[%s257 + $0x58] sm:$0xff]
      %v1698 = vld [vmem:[%s257 + $0x60] sm:$0xff]
      %v1699 = vld [vmem:[%s257 + $0x68] sm:$0xff]
      %v1700 = vld [vmem:[%s257 + $0x70] sm:$0xff]
      %v1701 = vld [vmem:[%s257 + $0x78] sm:$0xff]
      %v1702 = vld [vmem:[%s257 + $0x80] sm:$0xff]
      %v1703 = vld [vmem:[%s257 + $0x88] sm:$0xff]
      %v1704 = vld [vmem:[%s257 + $0x90] sm:$0xff]
      %v1705 = vld [vmem:[%s257 + $0x98] sm:$0xff]
      %v1706 = vld [vmem:[%s257 + $0xa0] sm:$0xff]
      %v1707 = vld [vmem:[%s257 + $0xa8] sm:$0xff]
      %v1708 = vld [vmem:[%s257 + $0xb0] sm:$0xff]
      %v1709 = vld [vmem:[%s257 + $0xb8] sm:$0xff]
      %v1710 = vld [vmem:[%s257 + $0xc0] sm:$0xff]
      %v1711 = vld [vmem:[%s257 + $0xc8] sm:$0xff]
      %v1712 = vld [vmem:[%s257 + $0xd0] sm:$0xff]
      %v1713 = vld [vmem:[%s257 + $0xd8] sm:$0xff]
      %v1714 = vld [vmem:[%s257 + $0xe0] sm:$0xff]
      %v1715 = vld [vmem:[%s257 + $0xe8] sm:$0xff]
      %v1716 = vld [vmem:[%s257 + $0xf0] sm:$0xff]
      %v1717 = vld [vmem:[%s257 + $0xf8] sm:$0xff]
      %s1718 = scalar_lea.vmem %s3, 24
      %v1719 = vld [vmem:[%s1718] sm:$0xf]
      %v1721 = vsel %vm328, %v1690, 0
      %v1724 = vsel %vm328, %v1691, 0
      %v1727 = vsel %vm328, %v1692, 0
      %v1730 = vsel %vm328, %v1693, 0
      %v1733 = vsel %vm328, %v1694, 0
      %v1736 = vsel %vm328, %v1695, 0
      %v1739 = vsel %vm328, %v1696, 0
      %v1742 = vsel %vm328, %v1697, 0
      %v1745 = vsel %vm328, %v1698, 0
      %v1748 = vsel %vm328, %v1699, 0
      %v1751 = vsel %vm328, %v1700, 0
      %v1754 = vsel %vm328, %v1701, 0
      %v1757 = vsel %vm328, %v1702, 0
      %v1760 = vsel %vm328, %v1703, 0
      %v1763 = vsel %vm328, %v1704, 0
      %v1766 = vsel %vm328, %v1705, 0
      %v1769 = vsel %vm328, %v1706, 0
      %v1772 = vsel %vm328, %v1707, 0
      %v1775 = vsel %vm328, %v1708, 0
      %v1778 = vsel %vm328, %v1709, 0
      %v1781 = vsel %vm328, %v1710, 0
      %v1784 = vsel %vm328, %v1711, 0
      %v1787 = vsel %vm328, %v1712, 0
      %v1790 = vsel %vm328, %v1713, 0
      %v1793 = vsel %vm328, %v1714, 0
      %v1796 = vsel %vm328, %v1715, 0
      %v1799 = vsel %vm328, %v1716, 0
      %v1802 = vsel %vm328, %v1717, 0
      %v1805 = vsel %vm413, %v1719, 0
      %1807 = vmatpush.msra.mxu0 0.0
      %1808 = vmatpush.msra.mxu0 0.0
      %1809 = vmatpush.msra.mxu0 0.0
      %1810 = vmatpush.msra.mxu0 0.0
      %1811 = vmatpush.msra.mxu0 0.0
      %1812 = vmatpush.msra.mxu0 0.0
      %1813 = vmatpush.msra.mxu0 0.0
      %1814 = vmatpush.msra.mxu0 0.0
      %1815 = vmatpush.msra.mxu0 0.0
      %1816 = vmatpush.msra.mxu0 0.0
      %1817 = vmatpush.msra.mxu0 0.0
      %1818 = vmatpush.msra.mxu0 0.0
      %1819 = vmatpush.msra.mxu0 0.0
      %1820 = vmatpush.msra.mxu0 0.0
      %1821 = vmatpush.msra.mxu0 0.0
      %1822 = vmatpush.msra.mxu0 %v1805
      %1823 = vmatmul.f32.gmra.mxu0 %v1721
      %v1824 = vpop.f32.mrf.mxu0
      %v1825 = vadd.f32 0.0, %v1824
      %1826 = vmatmul.f32.gmra.mxu0 %v1724
      %v1827 = vpop.f32.mrf.mxu0
      %v1828 = vadd.f32 0.0, %v1827
      %1829 = vmatmul.f32.gmra.mxu0 %v1727
      %v1830 = vpop.f32.mrf.mxu0
      %v1831 = vadd.f32 0.0, %v1830
      %1832 = vmatmul.f32.gmra.mxu0 %v1730
      %v1833 = vpop.f32.mrf.mxu0
      %v1834 = vadd.f32 0.0, %v1833
      %1835 = vmatmul.f32.gmra.mxu0 %v1733
      %v1836 = vpop.f32.mrf.mxu0
      %v1837 = vadd.f32 0.0, %v1836
      %1838 = vmatmul.f32.gmra.mxu0 %v1736
      %v1839 = vpop.f32.mrf.mxu0
      %v1840 = vadd.f32 0.0, %v1839
      %1841 = vmatmul.f32.gmra.mxu0 %v1739
      %v1842 = vpop.f32.mrf.mxu0
      %v1843 = vadd.f32 0.0, %v1842
      %1844 = vmatmul.f32.gmra.mxu0 %v1742
      %v1845 = vpop.f32.mrf.mxu0
      %v1846 = vadd.f32 0.0, %v1845
      %1847 = vmatmul.f32.gmra.mxu0 %v1745
      %v1848 = vpop.f32.mrf.mxu0
      %v1849 = vadd.f32 0.0, %v1848
      %1850 = vmatmul.f32.gmra.mxu0 %v1748
      %v1851 = vpop.f32.mrf.mxu0
      %v1852 = vadd.f32 0.0, %v1851
      %1853 = vmatmul.f32.gmra.mxu0 %v1751
      %v1854 = vpop.f32.mrf.mxu0
      %v1855 = vadd.f32 0.0, %v1854
      %1856 = vmatmul.f32.gmra.mxu0 %v1754
      %v1857 = vpop.f32.mrf.mxu0
      %v1858 = vadd.f32 0.0, %v1857
      %1859 = vmatmul.f32.gmra.mxu0 %v1757
      %v1860 = vpop.f32.mrf.mxu0
      %v1861 = vadd.f32 0.0, %v1860
      %1862 = vmatmul.f32.gmra.mxu0 %v1760
      %v1863 = vpop.f32.mrf.mxu0
      %v1864 = vadd.f32 0.0, %v1863
      %1865 = vmatmul.f32.gmra.mxu0 %v1763
      %v1866 = vpop.f32.mrf.mxu0
      %v1867 = vadd.f32 0.0, %v1866
      %1868 = vmatmul.f32.gmra.mxu0 %v1766
      %v1869 = vpop.f32.mrf.mxu0
      %v1870 = vadd.f32 0.0, %v1869
      %1871 = vmatmul.f32.gmra.mxu0 %v1769
      %v1872 = vpop.f32.mrf.mxu0
      %v1873 = vadd.f32 0.0, %v1872
      %1874 = vmatmul.f32.gmra.mxu0 %v1772
      %v1875 = vpop.f32.mrf.mxu0
      %v1876 = vadd.f32 0.0, %v1875
      %1877 = vmatmul.f32.gmra.mxu0 %v1775
      %v1878 = vpop.f32.mrf.mxu0
      %v1879 = vadd.f32 0.0, %v1878
      %1880 = vmatmul.f32.gmra.mxu0 %v1778
      %v1881 = vpop.f32.mrf.mxu0
      %v1882 = vadd.f32 0.0, %v1881
      %1883 = vmatmul.f32.gmra.mxu0 %v1781
      %v1884 = vpop.f32.mrf.mxu0
      %v1885 = vadd.f32 0.0, %v1884
      %1886 = vmatmul.f32.gmra.mxu0 %v1784
      %v1887 = vpop.f32.mrf.mxu0
      %v1888 = vadd.f32 0.0, %v1887
      %1889 = vmatmul.f32.gmra.mxu0 %v1787
      %v1890 = vpop.f32.mrf.mxu0
      %v1891 = vadd.f32 0.0, %v1890
      %1892 = vmatmul.f32.gmra.mxu0 %v1790
      %v1893 = vpop.f32.mrf.mxu0
      %v1894 = vadd.f32 0.0, %v1893
      %1895 = vmatmul.f32.gmra.mxu0 %v1793
      %v1896 = vpop.f32.mrf.mxu0
      %v1897 = vadd.f32 0.0, %v1896
      %1898 = vmatmul.f32.gmra.mxu0 %v1796
      %v1899 = vpop.f32.mrf.mxu0
      %v1900 = vadd.f32 0.0, %v1899
      %1901 = vmatmul.f32.gmra.mxu0 %v1799
      %v1902 = vpop.f32.mrf.mxu0
      %v1903 = vadd.f32 0.0, %v1902
      %1904 = vmatmul.f32.gmra.mxu0 %v1802
      %v1905 = vpop.f32.mrf.mxu0
      %v1906 = vadd.f32 0.0, %v1905
      %1907 = vdwg.mxu0
      %v1908 = vadd.f32 %v1662, %v1825
      %v1909 = vadd.f32 %v1663, %v1828
      %v1910 = vadd.f32 %v1664, %v1831
      %v1911 = vadd.f32 %v1665, %v1834
      %v1912 = vadd.f32 %v1666, %v1837
      %v1913 = vadd.f32 %v1667, %v1840
      %v1914 = vadd.f32 %v1668, %v1843
      %v1915 = vadd.f32 %v1669, %v1846
      %v1916 = vadd.f32 %v1670, %v1849
      %v1917 = vadd.f32 %v1671, %v1852
      %v1918 = vadd.f32 %v1672, %v1855
      %v1919 = vadd.f32 %v1673, %v1858
      %v1920 = vadd.f32 %v1674, %v1861
      %v1921 = vadd.f32 %v1675, %v1864
      %v1922 = vadd.f32 %v1676, %v1867
      %v1923 = vadd.f32 %v1677, %v1870
      %v1924 = vadd.f32 %v1678, %v1873
      %v1925 = vadd.f32 %v1679, %v1876
      %v1926 = vadd.f32 %v1680, %v1879
      %v1927 = vadd.f32 %v1681, %v1882
      %v1928 = vadd.f32 %v1682, %v1885
      %v1929 = vadd.f32 %v1683, %v1888
      %v1930 = vadd.f32 %v1684, %v1891
      %v1931 = vadd.f32 %v1685, %v1894
      %v1932 = vadd.f32 %v1686, %v1897
      %v1933 = vadd.f32 %v1687, %v1900
      %v1934 = vadd.f32 %v1688, %v1903
      %v1935 = vadd.f32 %v1689, %v1906
      %v1936 = vld [vmem:[%s257 + $0x21] sm:$0xff]
      %v1937 = vld [vmem:[%s257 + $0x29] sm:$0xff]
      %v1938 = vld [vmem:[%s257 + $0x31] sm:$0xff]
      %v1939 = vld [vmem:[%s257 + $0x39] sm:$0xff]
      %v1940 = vld [vmem:[%s257 + $0x41] sm:$0xff]
      %v1941 = vld [vmem:[%s257 + $0x49] sm:$0xff]
      %v1942 = vld [vmem:[%s257 + $0x51] sm:$0xff]
      %v1943 = vld [vmem:[%s257 + $0x59] sm:$0xff]
      %v1944 = vld [vmem:[%s257 + $0x61] sm:$0xff]
      %v1945 = vld [vmem:[%s257 + $0x69] sm:$0xff]
      %v1946 = vld [vmem:[%s257 + $0x71] sm:$0xff]
      %v1947 = vld [vmem:[%s257 + $0x79] sm:$0xff]
      %v1948 = vld [vmem:[%s257 + $0x81] sm:$0xff]
      %v1949 = vld [vmem:[%s257 + $0x89] sm:$0xff]
      %v1950 = vld [vmem:[%s257 + $0x91] sm:$0xff]
      %v1951 = vld [vmem:[%s257 + $0x99] sm:$0xff]
      %v1952 = vld [vmem:[%s257 + $0xa1] sm:$0xff]
      %v1953 = vld [vmem:[%s257 + $0xa9] sm:$0xff]
      %v1954 = vld [vmem:[%s257 + $0xb1] sm:$0xff]
      %v1955 = vld [vmem:[%s257 + $0xb9] sm:$0xff]
      %v1956 = vld [vmem:[%s257 + $0xc1] sm:$0xff]
      %v1957 = vld [vmem:[%s257 + $0xc9] sm:$0xff]
      %v1958 = vld [vmem:[%s257 + $0xd1] sm:$0xff]
      %v1959 = vld [vmem:[%s257 + $0xd9] sm:$0xff]
      %v1960 = vld [vmem:[%s257 + $0xe1] sm:$0xff]
      %v1961 = vld [vmem:[%s257 + $0xe9] sm:$0xff]
      %v1962 = vld [vmem:[%s257 + $0xf1] sm:$0xff]
      %v1963 = vld [vmem:[%s257 + $0xf9] sm:$0xff]
      %s1964 = scalar_lea.vmem %s3, 28
      %v1965 = vld [vmem:[%s1964] sm:$0xf]
      %v1967 = vsel %vm328, %v1936, 0
      %v1970 = vsel %vm328, %v1937, 0
      %v1973 = vsel %vm328, %v1938, 0
      %v1976 = vsel %vm328, %v1939, 0
      %v1979 = vsel %vm328, %v1940, 0
      %v1982 = vsel %vm328, %v1941, 0
      %v1985 = vsel %vm328, %v1942, 0
      %v1988 = vsel %vm328, %v1943, 0
      %v1991 = vsel %vm328, %v1944, 0
      %v1994 = vsel %vm328, %v1945, 0
      %v1997 = vsel %vm328, %v1946, 0
      %v2000 = vsel %vm328, %v1947, 0
      %v2003 = vsel %vm328, %v1948, 0
      %v2006 = vsel %vm328, %v1949, 0
      %v2009 = vsel %vm328, %v1950, 0
      %v2012 = vsel %vm328, %v1951, 0
      %v2015 = vsel %vm328, %v1952, 0
      %v2018 = vsel %vm328, %v1953, 0
      %v2021 = vsel %vm328, %v1954, 0
      %v2024 = vsel %vm328, %v1955, 0
      %v2027 = vsel %vm328, %v1956, 0
      %v2030 = vsel %vm328, %v1957, 0
      %v2033 = vsel %vm328, %v1958, 0
      %v2036 = vsel %vm328, %v1959, 0
      %v2039 = vsel %vm328, %v1960, 0
      %v2042 = vsel %vm328, %v1961, 0
      %v2045 = vsel %vm328, %v1962, 0
      %v2048 = vsel %vm328, %v1963, 0
      %v2051 = vsel %vm413, %v1965, 0
      %2053 = vmatpush.msra.mxu0 0.0
      %2054 = vmatpush.msra.mxu0 0.0
      %2055 = vmatpush.msra.mxu0 0.0
      %2056 = vmatpush.msra.mxu0 0.0
      %2057 = vmatpush.msra.mxu0 0.0
      %2058 = vmatpush.msra.mxu0 0.0
      %2059 = vmatpush.msra.mxu0 0.0
      %2060 = vmatpush.msra.mxu0 0.0
      %2061 = vmatpush.msra.mxu0 0.0
      %2062 = vmatpush.msra.mxu0 0.0
      %2063 = vmatpush.msra.mxu0 0.0
      %2064 = vmatpush.msra.mxu0 0.0
      %2065 = vmatpush.msra.mxu0 0.0
      %2066 = vmatpush.msra.mxu0 0.0
      %2067 = vmatpush.msra.mxu0 0.0
      %2068 = vmatpush.msra.mxu0 %v2051
      %2069 = vmatmul.f32.gmra.mxu0 %v1967
      %v2070 = vpop.f32.mrf.mxu0
      %v2071 = vadd.f32 0.0, %v2070
      %2072 = vmatmul.f32.gmra.mxu0 %v1970
      %v2073 = vpop.f32.mrf.mxu0
      %v2074 = vadd.f32 0.0, %v2073
      %2075 = vmatmul.f32.gmra.mxu0 %v1973
      %v2076 = vpop.f32.mrf.mxu0
      %v2077 = vadd.f32 0.0, %v2076
      %2078 = vmatmul.f32.gmra.mxu0 %v1976
      %v2079 = vpop.f32.mrf.mxu0
      %v2080 = vadd.f32 0.0, %v2079
      %2081 = vmatmul.f32.gmra.mxu0 %v1979
      %v2082 = vpop.f32.mrf.mxu0
      %v2083 = vadd.f32 0.0, %v2082
      %2084 = vmatmul.f32.gmra.mxu0 %v1982
      %v2085 = vpop.f32.mrf.mxu0
      %v2086 = vadd.f32 0.0, %v2085
      %2087 = vmatmul.f32.gmra.mxu0 %v1985
      %v2088 = vpop.f32.mrf.mxu0
      %v2089 = vadd.f32 0.0, %v2088
      %2090 = vmatmul.f32.gmra.mxu0 %v1988
      %v2091 = vpop.f32.mrf.mxu0
      %v2092 = vadd.f32 0.0, %v2091
      %2093 = vmatmul.f32.gmra.mxu0 %v1991
      %v2094 = vpop.f32.mrf.mxu0
      %v2095 = vadd.f32 0.0, %v2094
      %2096 = vmatmul.f32.gmra.mxu0 %v1994
      %v2097 = vpop.f32.mrf.mxu0
      %v2098 = vadd.f32 0.0, %v2097
      %2099 = vmatmul.f32.gmra.mxu0 %v1997
      %v2100 = vpop.f32.mrf.mxu0
      %v2101 = vadd.f32 0.0, %v2100
      %2102 = vmatmul.f32.gmra.mxu0 %v2000
      %v2103 = vpop.f32.mrf.mxu0
      %v2104 = vadd.f32 0.0, %v2103
      %2105 = vmatmul.f32.gmra.mxu0 %v2003
      %v2106 = vpop.f32.mrf.mxu0
      %v2107 = vadd.f32 0.0, %v2106
      %2108 = vmatmul.f32.gmra.mxu0 %v2006
      %v2109 = vpop.f32.mrf.mxu0
      %v2110 = vadd.f32 0.0, %v2109
      %2111 = vmatmul.f32.gmra.mxu0 %v2009
      %v2112 = vpop.f32.mrf.mxu0
      %v2113 = vadd.f32 0.0, %v2112
      %2114 = vmatmul.f32.gmra.mxu0 %v2012
      %v2115 = vpop.f32.mrf.mxu0
      %v2116 = vadd.f32 0.0, %v2115
      %2117 = vmatmul.f32.gmra.mxu0 %v2015
      %v2118 = vpop.f32.mrf.mxu0
      %v2119 = vadd.f32 0.0, %v2118
      %2120 = vmatmul.f32.gmra.mxu0 %v2018
      %v2121 = vpop.f32.mrf.mxu0
      %v2122 = vadd.f32 0.0, %v2121
      %2123 = vmatmul.f32.gmra.mxu0 %v2021
      %v2124 = vpop.f32.mrf.mxu0
      %v2125 = vadd.f32 0.0, %v2124
      %2126 = vmatmul.f32.gmra.mxu0 %v2024
      %v2127 = vpop.f32.mrf.mxu0
      %v2128 = vadd.f32 0.0, %v2127
      %2129 = vmatmul.f32.gmra.mxu0 %v2027
      %v2130 = vpop.f32.mrf.mxu0
      %v2131 = vadd.f32 0.0, %v2130
      %2132 = vmatmul.f32.gmra.mxu0 %v2030
      %v2133 = vpop.f32.mrf.mxu0
      %v2134 = vadd.f32 0.0, %v2133
      %2135 = vmatmul.f32.gmra.mxu0 %v2033
      %v2136 = vpop.f32.mrf.mxu0
      %v2137 = vadd.f32 0.0, %v2136
      %2138 = vmatmul.f32.gmra.mxu0 %v2036
      %v2139 = vpop.f32.mrf.mxu0
      %v2140 = vadd.f32 0.0, %v2139
      %2141 = vmatmul.f32.gmra.mxu0 %v2039
      %v2142 = vpop.f32.mrf.mxu0
      %v2143 = vadd.f32 0.0, %v2142
      %2144 = vmatmul.f32.gmra.mxu0 %v2042
      %v2145 = vpop.f32.mrf.mxu0
      %v2146 = vadd.f32 0.0, %v2145
      %2147 = vmatmul.f32.gmra.mxu0 %v2045
      %v2148 = vpop.f32.mrf.mxu0
      %v2149 = vadd.f32 0.0, %v2148
      %2150 = vmatmul.f32.gmra.mxu0 %v2048
      %v2151 = vpop.f32.mrf.mxu0
      %v2152 = vadd.f32 0.0, %v2151
      %2153 = vdwg.mxu0
      %v2154 = vadd.f32 %v1908, %v2071
      %v2155 = vadd.f32 %v1909, %v2074
      %v2156 = vadd.f32 %v1910, %v2077
      %v2157 = vadd.f32 %v1911, %v2080
      %v2158 = vadd.f32 %v1912, %v2083
      %v2159 = vadd.f32 %v1913, %v2086
      %v2160 = vadd.f32 %v1914, %v2089
      %v2161 = vadd.f32 %v1915, %v2092
      %v2162 = vadd.f32 %v1916, %v2095
      %v2163 = vadd.f32 %v1917, %v2098
      %v2164 = vadd.f32 %v1918, %v2101
      %v2165 = vadd.f32 %v1919, %v2104
      %v2166 = vadd.f32 %v1920, %v2107
      %v2167 = vadd.f32 %v1921, %v2110
      %v2168 = vadd.f32 %v1922, %v2113
      %v2169 = vadd.f32 %v1923, %v2116
      %v2170 = vadd.f32 %v1924, %v2119
      %v2171 = vadd.f32 %v1925, %v2122
      %v2172 = vadd.f32 %v1926, %v2125
      %v2173 = vadd.f32 %v1927, %v2128
      %v2174 = vadd.f32 %v1928, %v2131
      %v2175 = vadd.f32 %v1929, %v2134
      %v2176 = vadd.f32 %v1930, %v2137
      %v2177 = vadd.f32 %v1931, %v2140
      %v2178 = vadd.f32 %v1932, %v2143
      %v2179 = vadd.f32 %v1933, %v2146
      %v2180 = vadd.f32 %v1934, %v2149
      %v2181 = vadd.f32 %v1935, %v2152
      %v2182 = vld [vmem:[%s257 + $0x22] sm:$0xff]
      %v2183 = vld [vmem:[%s257 + $0x2a] sm:$0xff]
      %v2184 = vld [vmem:[%s257 + $0x32] sm:$0xff]
      %v2185 = vld [vmem:[%s257 + $0x3a] sm:$0xff]
      %v2186 = vld [vmem:[%s257 + $0x42] sm:$0xff]
      %v2187 = vld [vmem:[%s257 + $0x4a] sm:$0xff]
      %v2188 = vld [vmem:[%s257 + $0x52] sm:$0xff]
      %v2189 = vld [vmem:[%s257 + $0x5a] sm:$0xff]
      %v2190 = vld [vmem:[%s257 + $0x62] sm:$0xff]
      %v2191 = vld [vmem:[%s257 + $0x6a] sm:$0xff]
      %v2192 = vld [vmem:[%s257 + $0x72] sm:$0xff]
      %v2193 = vld [vmem:[%s257 + $0x7a] sm:$0xff]
      %v2194 = vld [vmem:[%s257 + $0x82] sm:$0xff]
      %v2195 = vld [vmem:[%s257 + $0x8a] sm:$0xff]
      %v2196 = vld [vmem:[%s257 + $0x92] sm:$0xff]
      %v2197 = vld [vmem:[%s257 + $0x9a] sm:$0xff]
      %v2198 = vld [vmem:[%s257 + $0xa2] sm:$0xff]
      %v2199 = vld [vmem:[%s257 + $0xaa] sm:$0xff]
      %v2200 = vld [vmem:[%s257 + $0xb2] sm:$0xff]
      %v2201 = vld [vmem:[%s257 + $0xba] sm:$0xff]
      %v2202 = vld [vmem:[%s257 + $0xc2] sm:$0xff]
      %v2203 = vld [vmem:[%s257 + $0xca] sm:$0xff]
      %v2204 = vld [vmem:[%s257 + $0xd2] sm:$0xff]
      %v2205 = vld [vmem:[%s257 + $0xda] sm:$0xff]
      %v2206 = vld [vmem:[%s257 + $0xe2] sm:$0xff]
      %v2207 = vld [vmem:[%s257 + $0xea] sm:$0xff]
      %v2208 = vld [vmem:[%s257 + $0xf2] sm:$0xff]
      %v2209 = vld [vmem:[%s257 + $0xfa] sm:$0xff]
      %s2210 = scalar_lea.vmem %s3, 32
      %v2211 = vld [vmem:[%s2210] sm:$0xf]
      %v2213 = vsel %vm328, %v2182, 0
      %v2216 = vsel %vm328, %v2183, 0
      %v2219 = vsel %vm328, %v2184, 0
      %v2222 = vsel %vm328, %v2185, 0
      %v2225 = vsel %vm328, %v2186, 0
      %v2228 = vsel %vm328, %v2187, 0
      %v2231 = vsel %vm328, %v2188, 0
      %v2234 = vsel %vm328, %v2189, 0
      %v2237 = vsel %vm328, %v2190, 0
      %v2240 = vsel %vm328, %v2191, 0
      %v2243 = vsel %vm328, %v2192, 0
      %v2246 = vsel %vm328, %v2193, 0
      %v2249 = vsel %vm328, %v2194, 0
      %v2252 = vsel %vm328, %v2195, 0
      %v2255 = vsel %vm328, %v2196, 0
      %v2258 = vsel %vm328, %v2197, 0
      %v2261 = vsel %vm328, %v2198, 0
      %v2264 = vsel %vm328, %v2199, 0
      %v2267 = vsel %vm328, %v2200, 0
      %v2270 = vsel %vm328, %v2201, 0
      %v2273 = vsel %vm328, %v2202, 0
      %v2276 = vsel %vm328, %v2203, 0
      %v2279 = vsel %vm328, %v2204, 0
      %v2282 = vsel %vm328, %v2205, 0
      %v2285 = vsel %vm328, %v2206, 0
      %v2288 = vsel %vm328, %v2207, 0
      %v2291 = vsel %vm328, %v2208, 0
      %v2294 = vsel %vm328, %v2209, 0
      %v2297 = vsel %vm413, %v2211, 0
      %2299 = vmatpush.msra.mxu0 0.0
      %2300 = vmatpush.msra.mxu0 0.0
      %2301 = vmatpush.msra.mxu0 0.0
      %2302 = vmatpush.msra.mxu0 0.0
      %2303 = vmatpush.msra.mxu0 0.0
      %2304 = vmatpush.msra.mxu0 0.0
      %2305 = vmatpush.msra.mxu0 0.0
      %2306 = vmatpush.msra.mxu0 0.0
      %2307 = vmatpush.msra.mxu0 0.0
      %2308 = vmatpush.msra.mxu0 0.0
      %2309 = vmatpush.msra.mxu0 0.0
      %2310 = vmatpush.msra.mxu0 0.0
      %2311 = vmatpush.msra.mxu0 0.0
      %2312 = vmatpush.msra.mxu0 0.0
      %2313 = vmatpush.msra.mxu0 0.0
      %2314 = vmatpush.msra.mxu0 %v2297
      %2315 = vmatmul.f32.gmra.mxu0 %v2213
      %v2316 = vpop.f32.mrf.mxu0
      %v2317 = vadd.f32 0.0, %v2316
      %2318 = vmatmul.f32.gmra.mxu0 %v2216
      %v2319 = vpop.f32.mrf.mxu0
      %v2320 = vadd.f32 0.0, %v2319
      %2321 = vmatmul.f32.gmra.mxu0 %v2219
      %v2322 = vpop.f32.mrf.mxu0
      %v2323 = vadd.f32 0.0, %v2322
      %2324 = vmatmul.f32.gmra.mxu0 %v2222
      %v2325 = vpop.f32.mrf.mxu0
      %v2326 = vadd.f32 0.0, %v2325
      %2327 = vmatmul.f32.gmra.mxu0 %v2225
      %v2328 = vpop.f32.mrf.mxu0
      %v2329 = vadd.f32 0.0, %v2328
      %2330 = vmatmul.f32.gmra.mxu0 %v2228
      %v2331 = vpop.f32.mrf.mxu0
      %v2332 = vadd.f32 0.0, %v2331
      %2333 = vmatmul.f32.gmra.mxu0 %v2231
      %v2334 = vpop.f32.mrf.mxu0
      %v2335 = vadd.f32 0.0, %v2334
      %2336 = vmatmul.f32.gmra.mxu0 %v2234
      %v2337 = vpop.f32.mrf.mxu0
      %v2338 = vadd.f32 0.0, %v2337
      %2339 = vmatmul.f32.gmra.mxu0 %v2237
      %v2340 = vpop.f32.mrf.mxu0
      %v2341 = vadd.f32 0.0, %v2340
      %2342 = vmatmul.f32.gmra.mxu0 %v2240
      %v2343 = vpop.f32.mrf.mxu0
      %v2344 = vadd.f32 0.0, %v2343
      %2345 = vmatmul.f32.gmra.mxu0 %v2243
      %v2346 = vpop.f32.mrf.mxu0
      %v2347 = vadd.f32 0.0, %v2346
      %2348 = vmatmul.f32.gmra.mxu0 %v2246
      %v2349 = vpop.f32.mrf.mxu0
      %v2350 = vadd.f32 0.0, %v2349
      %2351 = vmatmul.f32.gmra.mxu0 %v2249
      %v2352 = vpop.f32.mrf.mxu0
      %v2353 = vadd.f32 0.0, %v2352
      %2354 = vmatmul.f32.gmra.mxu0 %v2252
      %v2355 = vpop.f32.mrf.mxu0
      %v2356 = vadd.f32 0.0, %v2355
      %2357 = vmatmul.f32.gmra.mxu0 %v2255
      %v2358 = vpop.f32.mrf.mxu0
      %v2359 = vadd.f32 0.0, %v2358
      %2360 = vmatmul.f32.gmra.mxu0 %v2258
      %v2361 = vpop.f32.mrf.mxu0
      %v2362 = vadd.f32 0.0, %v2361
      %2363 = vmatmul.f32.gmra.mxu0 %v2261
      %v2364 = vpop.f32.mrf.mxu0
      %v2365 = vadd.f32 0.0, %v2364
      %2366 = vmatmul.f32.gmra.mxu0 %v2264
      %v2367 = vpop.f32.mrf.mxu0
      %v2368 = vadd.f32 0.0, %v2367
      %2369 = vmatmul.f32.gmra.mxu0 %v2267
      %v2370 = vpop.f32.mrf.mxu0
      %v2371 = vadd.f32 0.0, %v2370
      %2372 = vmatmul.f32.gmra.mxu0 %v2270
      %v2373 = vpop.f32.mrf.mxu0
      %v2374 = vadd.f32 0.0, %v2373
      %2375 = vmatmul.f32.gmra.mxu0 %v2273
      %v2376 = vpop.f32.mrf.mxu0
      %v2377 = vadd.f32 0.0, %v2376
      %2378 = vmatmul.f32.gmra.mxu0 %v2276
      %v2379 = vpop.f32.mrf.mxu0
      %v2380 = vadd.f32 0.0, %v2379
      %2381 = vmatmul.f32.gmra.mxu0 %v2279
      %v2382 = vpop.f32.mrf.mxu0
      %v2383 = vadd.f32 0.0, %v2382
      %2384 = vmatmul.f32.gmra.mxu0 %v2282
      %v2385 = vpop.f32.mrf.mxu0
      %v2386 = vadd.f32 0.0, %v2385
      %2387 = vmatmul.f32.gmra.mxu0 %v2285
      %v2388 = vpop.f32.mrf.mxu0
      %v2389 = vadd.f32 0.0, %v2388
      %2390 = vmatmul.f32.gmra.mxu0 %v2288
      %v2391 = vpop.f32.mrf.mxu0
      %v2392 = vadd.f32 0.0, %v2391
      %2393 = vmatmul.f32.gmra.mxu0 %v2291
      %v2394 = vpop.f32.mrf.mxu0
      %v2395 = vadd.f32 0.0, %v2394
      %2396 = vmatmul.f32.gmra.mxu0 %v2294
      %v2397 = vpop.f32.mrf.mxu0
      %v2398 = vadd.f32 0.0, %v2397
      %2399 = vdwg.mxu0
      %v2400 = vadd.f32 %v2154, %v2317
      %v2401 = vadd.f32 %v2155, %v2320
      %v2402 = vadd.f32 %v2156, %v2323
      %v2403 = vadd.f32 %v2157, %v2326
      %v2404 = vadd.f32 %v2158, %v2329
      %v2405 = vadd.f32 %v2159, %v2332
      %v2406 = vadd.f32 %v2160, %v2335
      %v2407 = vadd.f32 %v2161, %v2338
      %v2408 = vadd.f32 %v2162, %v2341
      %v2409 = vadd.f32 %v2163, %v2344
      %v2410 = vadd.f32 %v2164, %v2347
      %v2411 = vadd.f32 %v2165, %v2350
      %v2412 = vadd.f32 %v2166, %v2353
      %v2413 = vadd.f32 %v2167, %v2356
      %v2414 = vadd.f32 %v2168, %v2359
      %v2415 = vadd.f32 %v2169, %v2362
      %v2416 = vadd.f32 %v2170, %v2365
      %v2417 = vadd.f32 %v2171, %v2368
      %v2418 = vadd.f32 %v2172, %v2371
      %v2419 = vadd.f32 %v2173, %v2374
      %v2420 = vadd.f32 %v2174, %v2377
      %v2421 = vadd.f32 %v2175, %v2380
      %v2422 = vadd.f32 %v2176, %v2383
      %v2423 = vadd.f32 %v2177, %v2386
      %v2424 = vadd.f32 %v2178, %v2389
      %v2425 = vadd.f32 %v2179, %v2392
      %v2426 = vadd.f32 %v2180, %v2395
      %v2427 = vadd.f32 %v2181, %v2398
      %v2428 = vlaneseq
      %v2429 = vshrl.u32 %v2428, 7
      %v2430 = vadd.s32 %v2429, 8
      %v2431 = vadd.s32 %v2429, 16
      %v2432 = vadd.s32 %v2429, 24
      %v2433 = vadd.s32 %v2429, 32
      %v2434 = vadd.s32 %v2429, 40
      %v2435 = vadd.s32 %v2429, 48
      %v2436 = vadd.s32 %v2429, 56
      %v2437 = vadd.s32 %v2429, 64
      %v2438 = vadd.s32 %v2429, 72
      %v2439 = vadd.s32 %v2429, 80
      %v2440 = vadd.s32 %v2429, 88
      %v2441 = vadd.s32 %v2429, 96
      %v2442 = vadd.s32 %v2429, 104
      %v2443 = vadd.s32 %v2429, 112
      %v2444 = vadd.s32 %v2429, 120
      %v2445 = vadd.s32 %v2429, 128
      %v2446 = vadd.s32 %v2429, 136
      %v2447 = vadd.s32 %v2429, 144
      %v2448 = vadd.s32 %v2429, 152
      %v2449 = vadd.s32 %v2429, 160
      %v2450 = vadd.s32 %v2429, 168
      %v2451 = vadd.s32 %v2429, 176
      %v2452 = vadd.s32 %v2429, 184
      %v2453 = vadd.s32 %v2429, 192
      %v2454 = vadd.s32 %v2429, 200
      %v2455 = vadd.s32 %v2429, 208
      %v2456 = vadd.s32 %v2429, 216
      %vm2457 = vcmp.lt.s32.totalorder %v2429, 0
      %v2458 = vsub.s32 0, %v2429
      %v2459 = vsel %vm2457, %v2458, %v2429
      %v2460 = vshrl.u32 %v2459, 4
      %v2461 = vand.u32 %v2459, 15
      %v2462 = vsub.s32 0, %v2461
      %v2463 = vsel %vm2457, %v2462, %v2461
      %vm2464 = vcmp.lt.s32.totalorder %v2430, 0
      %v2465 = vsub.s32 0, %v2430
      %v2466 = vsel %vm2464, %v2465, %v2430
      %v2467 = vshrl.u32 %v2466, 4
      %v2468 = vand.u32 %v2466, 15
      %v2469 = vsub.s32 0, %v2468
      %v2470 = vsel %vm2464, %v2469, %v2468
      %vm2471 = vcmp.lt.s32.totalorder %v2431, 0
      %v2472 = vsub.s32 0, %v2431
      %v2473 = vsel %vm2471, %v2472, %v2431
      %v2474 = vshrl.u32 %v2473, 4
      %v2475 = vand.u32 %v2473, 15
      %v2476 = vsub.s32 0, %v2475
      %v2477 = vsel %vm2471, %v2476, %v2475
      %vm2478 = vcmp.lt.s32.totalorder %v2432, 0
      %v2479 = vsub.s32 0, %v2432
      %v2480 = vsel %vm2478, %v2479, %v2432
      %v2481 = vshrl.u32 %v2480, 4
      %v2482 = vand.u32 %v2480, 15
      %v2483 = vsub.s32 0, %v2482
      %v2484 = vsel %vm2478, %v2483, %v2482
      %vm2485 = vcmp.lt.s32.totalorder %v2433, 0
      %v2486 = vsub.s32 0, %v2433
      %v2487 = vsel %vm2485, %v2486, %v2433
      %v2488 = vshrl.u32 %v2487, 4
      %v2489 = vand.u32 %v2487, 15
      %v2490 = vsub.s32 0, %v2489
      %v2491 = vsel %vm2485, %v2490, %v2489
      %vm2492 = vcmp.lt.s32.totalorder %v2434, 0
      %v2493 = vsub.s32 0, %v2434
      %v2494 = vsel %vm2492, %v2493, %v2434
      %v2495 = vshrl.u32 %v2494, 4
      %v2496 = vand.u32 %v2494, 15
      %v2497 = vsub.s32 0, %v2496
      %v2498 = vsel %vm2492, %v2497, %v2496
      %vm2499 = vcmp.lt.s32.totalorder %v2435, 0
      %v2500 = vsub.s32 0, %v2435
      %v2501 = vsel %vm2499, %v2500, %v2435
      %v2502 = vshrl.u32 %v2501, 4
      %v2503 = vand.u32 %v2501, 15
      %v2504 = vsub.s32 0, %v2503
      %v2505 = vsel %vm2499, %v2504, %v2503
      %vm2506 = vcmp.lt.s32.totalorder %v2436, 0
      %v2507 = vsub.s32 0, %v2436
      %v2508 = vsel %vm2506, %v2507, %v2436
      %v2509 = vshrl.u32 %v2508, 4
      %v2510 = vand.u32 %v2508, 15
      %v2511 = vsub.s32 0, %v2510
      %v2512 = vsel %vm2506, %v2511, %v2510
      %vm2513 = vcmp.lt.s32.totalorder %v2437, 0
      %v2514 = vsub.s32 0, %v2437
      %v2515 = vsel %vm2513, %v2514, %v2437
      %v2516 = vshrl.u32 %v2515, 4
      %v2517 = vand.u32 %v2515, 15
      %v2518 = vsub.s32 0, %v2517
      %v2519 = vsel %vm2513, %v2518, %v2517
      %vm2520 = vcmp.lt.s32.totalorder %v2438, 0
      %v2521 = vsub.s32 0, %v2438
      %v2522 = vsel %vm2520, %v2521, %v2438
      %v2523 = vshrl.u32 %v2522, 4
      %v2524 = vand.u32 %v2522, 15
      %v2525 = vsub.s32 0, %v2524
      %v2526 = vsel %vm2520, %v2525, %v2524
      %vm2527 = vcmp.lt.s32.totalorder %v2439, 0
      %v2528 = vsub.s32 0, %v2439
      %v2529 = vsel %vm2527, %v2528, %v2439
      %v2530 = vshrl.u32 %v2529, 4
      %v2531 = vand.u32 %v2529, 15
      %v2532 = vsub.s32 0, %v2531
      %v2533 = vsel %vm2527, %v2532, %v2531
      %vm2534 = vcmp.lt.s32.totalorder %v2440, 0
      %v2535 = vsub.s32 0, %v2440
      %v2536 = vsel %vm2534, %v2535, %v2440
      %v2537 = vshrl.u32 %v2536, 4
      %v2538 = vand.u32 %v2536, 15
      %v2539 = vsub.s32 0, %v2538
      %v2540 = vsel %vm2534, %v2539, %v2538
      %vm2541 = vcmp.lt.s32.totalorder %v2441, 0
      %v2542 = vsub.s32 0, %v2441
      %v2543 = vsel %vm2541, %v2542, %v2441
      %v2544 = vshrl.u32 %v2543, 4
      %v2545 = vand.u32 %v2543, 15
      %v2546 = vsub.s32 0, %v2545
      %v2547 = vsel %vm2541, %v2546, %v2545
      %vm2548 = vcmp.lt.s32.totalorder %v2442, 0
      %v2549 = vsub.s32 0, %v2442
      %v2550 = vsel %vm2548, %v2549, %v2442
      %v2551 = vshrl.u32 %v2550, 4
      %v2552 = vand.u32 %v2550, 15
      %v2553 = vsub.s32 0, %v2552
      %v2554 = vsel %vm2548, %v2553, %v2552
      %vm2555 = vcmp.lt.s32.totalorder %v2443, 0
      %v2556 = vsub.s32 0, %v2443
      %v2557 = vsel %vm2555, %v2556, %v2443
      %v2558 = vshrl.u32 %v2557, 4
      %v2559 = vand.u32 %v2557, 15
      %v2560 = vsub.s32 0, %v2559
      %v2561 = vsel %vm2555, %v2560, %v2559
      %vm2562 = vcmp.lt.s32.totalorder %v2444, 0
      %v2563 = vsub.s32 0, %v2444
      %v2564 = vsel %vm2562, %v2563, %v2444
      %v2565 = vshrl.u32 %v2564, 4
      %v2566 = vand.u32 %v2564, 15
      %v2567 = vsub.s32 0, %v2566
      %v2568 = vsel %vm2562, %v2567, %v2566
      %vm2569 = vcmp.lt.s32.totalorder %v2445, 0
      %v2570 = vsub.s32 0, %v2445
      %v2571 = vsel %vm2569, %v2570, %v2445
      %v2572 = vshrl.u32 %v2571, 4
      %v2573 = vand.u32 %v2571, 15
      %v2574 = vsub.s32 0, %v2573
      %v2575 = vsel %vm2569, %v2574, %v2573
      %vm2576 = vcmp.lt.s32.totalorder %v2446, 0
      %v2577 = vsub.s32 0, %v2446
      %v2578 = vsel %vm2576, %v2577, %v2446
      %v2579 = vshrl.u32 %v2578, 4
      %v2580 = vand.u32 %v2578, 15
      %v2581 = vsub.s32 0, %v2580
      %v2582 = vsel %vm2576, %v2581, %v2580
      %vm2583 = vcmp.lt.s32.totalorder %v2447, 0
      %v2584 = vsub.s32 0, %v2447
      %v2585 = vsel %vm2583, %v2584, %v2447
      %v2586 = vshrl.u32 %v2585, 4
      %v2587 = vand.u32 %v2585, 15
      %v2588 = vsub.s32 0, %v2587
      %v2589 = vsel %vm2583, %v2588, %v2587
      %vm2590 = vcmp.lt.s32.totalorder %v2448, 0
      %v2591 = vsub.s32 0, %v2448
      %v2592 = vsel %vm2590, %v2591, %v2448
      %v2593 = vshrl.u32 %v2592, 4
      %v2594 = vand.u32 %v2592, 15
      %v2595 = vsub.s32 0, %v2594
      %v2596 = vsel %vm2590, %v2595, %v2594
      %vm2597 = vcmp.lt.s32.totalorder %v2449, 0
      %v2598 = vsub.s32 0, %v2449
      %v2599 = vsel %vm2597, %v2598, %v2449
      %v2600 = vshrl.u32 %v2599, 4
      %v2601 = vand.u32 %v2599, 15
      %v2602 = vsub.s32 0, %v2601
      %v2603 = vsel %vm2597, %v2602, %v2601
      %vm2604 = vcmp.lt.s32.totalorder %v2450, 0
      %v2605 = vsub.s32 0, %v2450
      %v2606 = vsel %vm2604, %v2605, %v2450
      %v2607 = vshrl.u32 %v2606, 4
      %v2608 = vand.u32 %v2606, 15
      %v2609 = vsub.s32 0, %v2608
      %v2610 = vsel %vm2604, %v2609, %v2608
      %vm2611 = vcmp.lt.s32.totalorder %v2451, 0
      %v2612 = vsub.s32 0, %v2451
      %v2613 = vsel %vm2611, %v2612, %v2451
      %v2614 = vshrl.u32 %v2613, 4
      %v2615 = vand.u32 %v2613, 15
      %v2616 = vsub.s32 0, %v2615
      %v2617 = vsel %vm2611, %v2616, %v2615
      %vm2618 = vcmp.lt.s32.totalorder %v2452, 0
      %v2619 = vsub.s32 0, %v2452
      %v2620 = vsel %vm2618, %v2619, %v2452
      %v2621 = vshrl.u32 %v2620, 4
      %v2622 = vand.u32 %v2620, 15
      %v2623 = vsub.s32 0, %v2622
      %v2624 = vsel %vm2618, %v2623, %v2622
      %vm2625 = vcmp.lt.s32.totalorder %v2453, 0
      %v2626 = vsub.s32 0, %v2453
      %v2627 = vsel %vm2625, %v2626, %v2453
      %v2628 = vshrl.u32 %v2627, 4
      %v2629 = vand.u32 %v2627, 15
      %v2630 = vsub.s32 0, %v2629
      %v2631 = vsel %vm2625, %v2630, %v2629
      %vm2632 = vcmp.lt.s32.totalorder %v2454, 0
      %v2633 = vsub.s32 0, %v2454
      %v2634 = vsel %vm2632, %v2633, %v2454
      %v2635 = vshrl.u32 %v2634, 4
      %v2636 = vand.u32 %v2634, 15
      %v2637 = vsub.s32 0, %v2636
      %v2638 = vsel %vm2632, %v2637, %v2636
      %vm2639 = vcmp.lt.s32.totalorder %v2455, 0
      %v2640 = vsub.s32 0, %v2455
      %v2641 = vsel %vm2639, %v2640, %v2455
      %v2642 = vshrl.u32 %v2641, 4
      %v2643 = vand.u32 %v2641, 15
      %v2644 = vsub.s32 0, %v2643
      %v2645 = vsel %vm2639, %v2644, %v2643
      %vm2646 = vcmp.lt.s32.totalorder %v2456, 0
      %v2647 = vsub.s32 0, %v2456
      %v2648 = vsel %vm2646, %v2647, %v2456
      %v2649 = vshrl.u32 %v2648, 4
      %v2650 = vand.u32 %v2648, 15
      %v2651 = vsub.s32 0, %v2650
      %v2652 = vsel %vm2646, %v2651, %v2650
      %vm2653 = vcmp.ne.s32.totalorder %v2463, 0
      %vm2654 = vcmp.ne.s32.totalorder %v2470, 0
      %vm2655 = vcmp.ne.s32.totalorder %v2477, 0
      %vm2656 = vcmp.ne.s32.totalorder %v2484, 0
      %vm2657 = vcmp.ne.s32.totalorder %v2491, 0
      %vm2658 = vcmp.ne.s32.totalorder %v2498, 0
      %vm2659 = vcmp.ne.s32.totalorder %v2505, 0
      %vm2660 = vcmp.ne.s32.totalorder %v2512, 0
      %vm2661 = vcmp.ne.s32.totalorder %v2519, 0
      %vm2662 = vcmp.ne.s32.totalorder %v2526, 0
      %vm2663 = vcmp.ne.s32.totalorder %v2533, 0
      %vm2664 = vcmp.ne.s32.totalorder %v2540, 0
      %vm2665 = vcmp.ne.s32.totalorder %v2547, 0
      %vm2666 = vcmp.ne.s32.totalorder %v2554, 0
      %vm2667 = vcmp.ne.s32.totalorder %v2561, 0
      %vm2668 = vcmp.ne.s32.totalorder %v2568, 0
      %vm2669 = vcmp.ne.s32.totalorder %v2575, 0
      %vm2670 = vcmp.ne.s32.totalorder %v2582, 0
      %vm2671 = vcmp.ne.s32.totalorder %v2589, 0
      %vm2672 = vcmp.ne.s32.totalorder %v2596, 0
      %vm2673 = vcmp.ne.s32.totalorder %v2603, 0
      %vm2674 = vcmp.ne.s32.totalorder %v2610, 0
      %vm2675 = vcmp.ne.s32.totalorder %v2617, 0
      %vm2676 = vcmp.ne.s32.totalorder %v2624, 0
      %vm2677 = vcmp.ne.s32.totalorder %v2631, 0
      %vm2678 = vcmp.ne.s32.totalorder %v2638, 0
      %vm2679 = vcmp.ne.s32.totalorder %v2645, 0
      %vm2680 = vcmp.ne.s32.totalorder %v2652, 0
      %vm2681 = vcmp.lt.s32.totalorder %v2463, 0
      %vm2682 = vcmp.lt.s32.totalorder %v2470, 0
      %vm2683 = vcmp.lt.s32.totalorder %v2477, 0
      %vm2684 = vcmp.lt.s32.totalorder %v2484, 0
      %vm2685 = vcmp.lt.s32.totalorder %v2491, 0
      %vm2686 = vcmp.lt.s32.totalorder %v2498, 0
      %vm2687 = vcmp.lt.s32.totalorder %v2505, 0
      %vm2688 = vcmp.lt.s32.totalorder %v2512, 0
      %vm2689 = vcmp.lt.s32.totalorder %v2519, 0
      %vm2690 = vcmp.lt.s32.totalorder %v2526, 0
      %vm2691 = vcmp.lt.s32.totalorder %v2533, 0
      %vm2692 = vcmp.lt.s32.totalorder %v2540, 0
      %vm2693 = vcmp.lt.s32.totalorder %v2547, 0
      %vm2694 = vcmp.lt.s32.totalorder %v2554, 0
      %vm2695 = vcmp.lt.s32.totalorder %v2561, 0
      %vm2696 = vcmp.lt.s32.totalorder %v2568, 0
      %vm2697 = vcmp.lt.s32.totalorder %v2575, 0
      %vm2698 = vcmp.lt.s32.totalorder %v2582, 0
      %vm2699 = vcmp.lt.s32.totalorder %v2589, 0
      %vm2700 = vcmp.lt.s32.totalorder %v2596, 0
      %vm2701 = vcmp.lt.s32.totalorder %v2603, 0
      %vm2702 = vcmp.lt.s32.totalorder %v2610, 0
      %vm2703 = vcmp.lt.s32.totalorder %v2617, 0
      %vm2704 = vcmp.lt.s32.totalorder %v2624, 0
      %vm2705 = vcmp.lt.s32.totalorder %v2631, 0
      %vm2706 = vcmp.lt.s32.totalorder %v2638, 0
      %vm2707 = vcmp.lt.s32.totalorder %v2645, 0
      %vm2708 = vcmp.lt.s32.totalorder %v2652, 0
      %vm2709 = vmand %vm2681, %vm2653
      %vm2710 = vmand %vm2682, %vm2654
      %vm2711 = vmand %vm2683, %vm2655
      %vm2712 = vmand %vm2684, %vm2656
      %vm2713 = vmand %vm2685, %vm2657
      %vm2714 = vmand %vm2686, %vm2658
      %vm2715 = vmand %vm2687, %vm2659
      %vm2716 = vmand %vm2688, %vm2660
      %vm2717 = vmand %vm2689, %vm2661
      %vm2718 = vmand %vm2690, %vm2662
      %vm2719 = vmand %vm2691, %vm2663
      %vm2720 = vmand %vm2692, %vm2664
      %vm2721 = vmand %vm2693, %vm2665
      %vm2722 = vmand %vm2694, %vm2666
      %vm2723 = vmand %vm2695, %vm2667
      %vm2724 = vmand %vm2696, %vm2668
      %vm2725 = vmand %vm2697, %vm2669
      %vm2726 = vmand %vm2698, %vm2670
      %vm2727 = vmand %vm2699, %vm2671
      %vm2728 = vmand %vm2700, %vm2672
      %vm2729 = vmand %vm2701, %vm2673
      %vm2730 = vmand %vm2702, %vm2674
      %vm2731 = vmand %vm2703, %vm2675
      %vm2732 = vmand %vm2704, %vm2676
      %vm2733 = vmand %vm2705, %vm2677
      %vm2734 = vmand %vm2706, %vm2678
      %vm2735 = vmand %vm2707, %vm2679
      %vm2736 = vmand %vm2708, %vm2680
      %v2737 = vadd.s32 %v2463, 16
      %v2738 = vadd.s32 %v2470, 16
      %v2739 = vadd.s32 %v2477, 16
      %v2740 = vadd.s32 %v2484, 16
      %v2741 = vadd.s32 %v2491, 16
      %v2742 = vadd.s32 %v2498, 16
      %v2743 = vadd.s32 %v2505, 16
      %v2744 = vadd.s32 %v2512, 16
      %v2745 = vadd.s32 %v2519, 16
      %v2746 = vadd.s32 %v2526, 16
      %v2747 = vadd.s32 %v2533, 16
      %v2748 = vadd.s32 %v2540, 16
      %v2749 = vadd.s32 %v2547, 16
      %v2750 = vadd.s32 %v2554, 16
      %v2751 = vadd.s32 %v2561, 16
      %v2752 = vadd.s32 %v2568, 16
      %v2753 = vadd.s32 %v2575, 16
      %v2754 = vadd.s32 %v2582, 16
      %v2755 = vadd.s32 %v2589, 16
      %v2756 = vadd.s32 %v2596, 16
      %v2757 = vadd.s32 %v2603, 16
      %v2758 = vadd.s32 %v2610, 16
      %v2759 = vadd.s32 %v2617, 16
      %v2760 = vadd.s32 %v2624, 16
      %v2761 = vadd.s32 %v2631, 16
      %v2762 = vadd.s32 %v2638, 16
      %v2763 = vadd.s32 %v2645, 16
      %v2764 = vadd.s32 %v2652, 16
      %v2765 = vsel %vm2709, %v2737, %v2463
      %v2766 = vsel %vm2710, %v2738, %v2470
      %v2767 = vsel %vm2711, %v2739, %v2477
      %v2768 = vsel %vm2712, %v2740, %v2484
      %v2769 = vsel %vm2713, %v2741, %v2491
      %v2770 = vsel %vm2714, %v2742, %v2498
      %v2771 = vsel %vm2715, %v2743, %v2505
      %v2772 = vsel %vm2716, %v2744, %v2512
      %v2773 = vsel %vm2717, %v2745, %v2519
      %v2774 = vsel %vm2718, %v2746, %v2526
      %v2775 = vsel %vm2719, %v2747, %v2533
      %v2776 = vsel %vm2720, %v2748, %v2540
      %v2777 = vsel %vm2721, %v2749, %v2547
      %v2778 = vsel %vm2722, %v2750, %v2554
      %v2779 = vsel %vm2723, %v2751, %v2561
      %v2780 = vsel %vm2724, %v2752, %v2568
      %v2781 = vsel %vm2725, %v2753, %v2575
      %v2782 = vsel %vm2726, %v2754, %v2582
      %v2783 = vsel %vm2727, %v2755, %v2589
      %v2784 = vsel %vm2728, %v2756, %v2596
      %v2785 = vsel %vm2729, %v2757, %v2603
      %v2786 = vsel %vm2730, %v2758, %v2610
      %v2787 = vsel %vm2731, %v2759, %v2617
      %v2788 = vsel %vm2732, %v2760, %v2624
      %v2789 = vsel %vm2733, %v2761, %v2631
      %v2790 = vsel %vm2734, %v2762, %v2638
      %v2791 = vsel %vm2735, %v2763, %v2645
      %v2792 = vsel %vm2736, %v2764, %v2652
      %vm2793 = vcmp.lt.s32.totalorder %v2765, 14
      %vm2794 = vcmp.lt.s32.totalorder %v2766, 14
      %vm2795 = vcmp.lt.s32.totalorder %v2767, 14
      %vm2796 = vcmp.lt.s32.totalorder %v2768, 14
      %vm2797 = vcmp.lt.s32.totalorder %v2769, 14
      %vm2798 = vcmp.lt.s32.totalorder %v2770, 14
      %vm2799 = vcmp.lt.s32.totalorder %v2771, 14
      %vm2800 = vcmp.lt.s32.totalorder %v2772, 14
      %vm2801 = vcmp.lt.s32.totalorder %v2773, 14
      %vm2802 = vcmp.lt.s32.totalorder %v2774, 14
      %vm2803 = vcmp.lt.s32.totalorder %v2775, 14
      %vm2804 = vcmp.lt.s32.totalorder %v2776, 14
      %vm2805 = vcmp.lt.s32.totalorder %v2777, 14
      %vm2806 = vcmp.lt.s32.totalorder %v2778, 14
      %vm2807 = vcmp.lt.s32.totalorder %v2779, 14
      %vm2808 = vcmp.lt.s32.totalorder %v2780, 14
      %vm2809 = vcmp.lt.s32.totalorder %v2781, 14
      %vm2810 = vcmp.lt.s32.totalorder %v2782, 14
      %vm2811 = vcmp.lt.s32.totalorder %v2783, 14
      %vm2812 = vcmp.lt.s32.totalorder %v2784, 14
      %vm2813 = vcmp.lt.s32.totalorder %v2785, 14
      %vm2814 = vcmp.lt.s32.totalorder %v2786, 14
      %vm2815 = vcmp.lt.s32.totalorder %v2787, 14
      %vm2816 = vcmp.lt.s32.totalorder %v2788, 14
      %vm2817 = vcmp.lt.s32.totalorder %v2789, 14
      %vm2818 = vcmp.lt.s32.totalorder %v2790, 14
      %vm2819 = vcmp.lt.s32.totalorder %v2791, 14
      %vm2820 = vcmp.lt.s32.totalorder %v2792, 14
      %v2821 = vsel %vm2793, 1, 0
      %v2822 = vsel %vm2794, 1, 0
      %v2823 = vsel %vm2795, 1, 0
      %v2824 = vsel %vm2796, 1, 0
      %v2825 = vsel %vm2797, 1, 0
      %v2826 = vsel %vm2798, 1, 0
      %v2827 = vsel %vm2799, 1, 0
      %v2828 = vsel %vm2800, 1, 0
      %v2829 = vsel %vm2801, 1, 0
      %v2830 = vsel %vm2802, 1, 0
      %v2831 = vsel %vm2803, 1, 0
      %v2832 = vsel %vm2804, 1, 0
      %v2833 = vsel %vm2805, 1, 0
      %v2834 = vsel %vm2806, 1, 0
      %v2835 = vsel %vm2807, 1, 0
      %v2836 = vsel %vm2808, 1, 0
      %v2837 = vsel %vm2809, 1, 0
      %v2838 = vsel %vm2810, 1, 0
      %v2839 = vsel %vm2811, 1, 0
      %v2840 = vsel %vm2812, 1, 0
      %v2841 = vsel %vm2813, 1, 0
      %v2842 = vsel %vm2814, 1, 0
      %v2843 = vsel %vm2815, 1, 0
      %v2844 = vsel %vm2816, 1, 0
      %v2845 = vsel %vm2817, 1, 0
      %v2846 = vsel %vm2818, 1, 0
      %v2847 = vsel %vm2819, 1, 0
      %v2848 = vsel %vm2820, 1, 0
      %vm2849 = vcmp.eq.s32.totalorder %v2821, 1
      %vm2850 = vcmp.eq.s32.totalorder %v2822, 1
      %vm2851 = vcmp.eq.s32.totalorder %v2823, 1
      %vm2852 = vcmp.eq.s32.totalorder %v2824, 1
      %vm2853 = vcmp.eq.s32.totalorder %v2825, 1
      %vm2854 = vcmp.eq.s32.totalorder %v2826, 1
      %vm2855 = vcmp.eq.s32.totalorder %v2827, 1
      %vm2856 = vcmp.eq.s32.totalorder %v2828, 1
      %vm2857 = vcmp.eq.s32.totalorder %v2829, 1
      %vm2858 = vcmp.eq.s32.totalorder %v2830, 1
      %vm2859 = vcmp.eq.s32.totalorder %v2831, 1
      %vm2860 = vcmp.eq.s32.totalorder %v2832, 1
      %vm2861 = vcmp.eq.s32.totalorder %v2833, 1
      %vm2862 = vcmp.eq.s32.totalorder %v2834, 1
      %vm2863 = vcmp.eq.s32.totalorder %v2835, 1
      %vm2864 = vcmp.eq.s32.totalorder %v2836, 1
      %vm2865 = vcmp.eq.s32.totalorder %v2837, 1
      %vm2866 = vcmp.eq.s32.totalorder %v2838, 1
      %vm2867 = vcmp.eq.s32.totalorder %v2839, 1
      %vm2868 = vcmp.eq.s32.totalorder %v2840, 1
      %vm2869 = vcmp.eq.s32.totalorder %v2841, 1
      %vm2870 = vcmp.eq.s32.totalorder %v2842, 1
      %vm2871 = vcmp.eq.s32.totalorder %v2843, 1
      %vm2872 = vcmp.eq.s32.totalorder %v2844, 1
      %vm2873 = vcmp.eq.s32.totalorder %v2845, 1
      %vm2874 = vcmp.eq.s32.totalorder %v2846, 1
      %vm2875 = vcmp.eq.s32.totalorder %v2847, 1
      %vm2876 = vcmp.eq.s32.totalorder %v2848, 1
      %v2877 = vsel %vm2849, %v2400, 0.0
      %v2878 = vsel %vm2850, %v2401, 0.0
      %v2879 = vsel %vm2851, %v2402, 0.0
      %v2880 = vsel %vm2852, %v2403, 0.0
      %v2881 = vsel %vm2853, %v2404, 0.0
      %v2882 = vsel %vm2854, %v2405, 0.0
      %v2883 = vsel %vm2855, %v2406, 0.0
      %v2884 = vsel %vm2856, %v2407, 0.0
      %v2885 = vsel %vm2857, %v2408, 0.0
      %v2886 = vsel %vm2858, %v2409, 0.0
      %v2887 = vsel %vm2859, %v2410, 0.0
      %v2888 = vsel %vm2860, %v2411, 0.0
      %v2889 = vsel %vm2861, %v2412, 0.0
      %v2890 = vsel %vm2862, %v2413, 0.0
      %v2891 = vsel %vm2863, %v2414, 0.0
      %v2892 = vsel %vm2864, %v2415, 0.0
      %v2893 = vsel %vm2865, %v2416, 0.0
      %v2894 = vsel %vm2866, %v2417, 0.0
      %v2895 = vsel %vm2867, %v2418, 0.0
      %v2896 = vsel %vm2868, %v2419, 0.0
      %v2897 = vsel %vm2869, %v2420, 0.0
      %v2898 = vsel %vm2870, %v2421, 0.0
      %v2899 = vsel %vm2871, %v2422, 0.0
      %v2900 = vsel %vm2872, %v2423, 0.0
      %v2901 = vsel %vm2873, %v2424, 0.0
      %v2902 = vsel %vm2874, %v2425, 0.0
      %v2903 = vsel %vm2875, %v2426, 0.0
      %v2904 = vsel %vm2876, %v2427, 0.0
      %vm2905 = vcmask 64512
      %2906 = vst.msk [vmem:[%s262] sm:$0xff] %vm2905, %v2877
      %2907 = vst.msk [vmem:[%s262 + $0x8] sm:$0xff] %vm2905, %v2878
      %2908 = vst.msk [vmem:[%s262 + $0x10] sm:$0xff] %vm2905, %v2879
      %2909 = vst.msk [vmem:[%s262 + $0x18] sm:$0xff] %vm2905, %v2880
      %2910 = vst.msk [vmem:[%s262 + $0x20] sm:$0xff] %vm2905, %v2881
      %2911 = vst.msk [vmem:[%s262 + $0x28] sm:$0xff] %vm2905, %v2882
      %2912 = vst.msk [vmem:[%s262 + $0x30] sm:$0xff] %vm2905, %v2883
      %2913 = vst.msk [vmem:[%s262 + $0x38] sm:$0xff] %vm2905, %v2884
      %2914 = vst.msk [vmem:[%s262 + $0x40] sm:$0xff] %vm2905, %v2885
      %2915 = vst.msk [vmem:[%s262 + $0x48] sm:$0xff] %vm2905, %v2886
      %2916 = vst.msk [vmem:[%s262 + $0x50] sm:$0xff] %vm2905, %v2887
      %2917 = vst.msk [vmem:[%s262 + $0x58] sm:$0xff] %vm2905, %v2888
      %2918 = vst.msk [vmem:[%s262 + $0x60] sm:$0xff] %vm2905, %v2889
      %2919 = vst.msk [vmem:[%s262 + $0x68] sm:$0xff] %vm2905, %v2890
      %2920 = vst.msk [vmem:[%s262 + $0x70] sm:$0xff] %vm2905, %v2891
      %2921 = vst.msk [vmem:[%s262 + $0x78] sm:$0xff] %vm2905, %v2892
      %2922 = vst.msk [vmem:[%s262 + $0x80] sm:$0xff] %vm2905, %v2893
      %2923 = vst.msk [vmem:[%s262 + $0x88] sm:$0xff] %vm2905, %v2894
      %2924 = vst.msk [vmem:[%s262 + $0x90] sm:$0xff] %vm2905, %v2895
      %2925 = vst.msk [vmem:[%s262 + $0x98] sm:$0xff] %vm2905, %v2896
      %2926 = vst.msk [vmem:[%s262 + $0xa0] sm:$0xff] %vm2905, %v2897
      %2927 = vst.msk [vmem:[%s262 + $0xa8] sm:$0xff] %vm2905, %v2898
      %2928 = vst.msk [vmem:[%s262 + $0xb0] sm:$0xff] %vm2905, %v2899
      %2929 = vst.msk [vmem:[%s262 + $0xb8] sm:$0xff] %vm2905, %v2900
      %2930 = vst.msk [vmem:[%s262 + $0xc0] sm:$0xff] %vm2905, %v2901
      %2931 = vst.msk [vmem:[%s262 + $0xc8] sm:$0xff] %vm2905, %v2902
      %2932 = vst.msk [vmem:[%s262 + $0xd0] sm:$0xff] %vm2905, %v2903
      %2933 = vst.msk [vmem:[%s262 + $0xd8] sm:$0xff] %vm2905, %v2904
      %2934 = vst.msk [vmem:[%s262 + $0xe0] sm:$0xff] %vm2905, 0.0
      %v2935 = vsel %vm2905, %v2877, 0.0
      %v2936 = vsel %vm2905, %v2878, 0.0
      %v2937 = vadd.f32 %v2935, %v2936
      %v2938 = vsel %vm2905, %v2879, 0.0
      %v2939 = vadd.f32 %v2937, %v2938
      %v2940 = vsel %vm2905, %v2880, 0.0
      %v2941 = vadd.f32 %v2939, %v2940
      %v2942 = vsel %vm2905, %v2881, 0.0
      %v2943 = vadd.f32 %v2941, %v2942
      %v2944 = vsel %vm2905, %v2882, 0.0
      %v2945 = vadd.f32 %v2943, %v2944
      %v2946 = vsel %vm2905, %v2883, 0.0
      %v2947 = vadd.f32 %v2945, %v2946
      %v2948 = vsel %vm2905, %v2884, 0.0
      %v2949 = vadd.f32 %v2947, %v2948
      %v2950 = vsel %vm2905, %v2885, 0.0
      %v2951 = vadd.f32 %v2949, %v2950
      %v2952 = vsel %vm2905, %v2886, 0.0
      %v2953 = vadd.f32 %v2951, %v2952
      %v2954 = vsel %vm2905, %v2887, 0.0
      %v2955 = vadd.f32 %v2953, %v2954
      %v2956 = vsel %vm2905, %v2888, 0.0
      %v2957 = vadd.f32 %v2955, %v2956
      %v2958 = vsel %vm2905, %v2889, 0.0
      %v2959 = vadd.f32 %v2957, %v2958
      %v2960 = vsel %vm2905, %v2890, 0.0
      %v2961 = vadd.f32 %v2959, %v2960
      %v2962 = vsel %vm2905, %v2891, 0.0
      %v2963 = vadd.f32 %v2961, %v2962
      %v2964 = vsel %vm2905, %v2892, 0.0
      %v2965 = vadd.f32 %v2963, %v2964
      %v2966 = vsel %vm2905, %v2893, 0.0
      %v2967 = vadd.f32 %v2965, %v2966
      %v2968 = vsel %vm2905, %v2894, 0.0
      %v2969 = vadd.f32 %v2967, %v2968
      %v2970 = vsel %vm2905, %v2895, 0.0
      %v2971 = vadd.f32 %v2969, %v2970
      %v2972 = vsel %vm2905, %v2896, 0.0
      %v2973 = vadd.f32 %v2971, %v2972
      %v2974 = vsel %vm2905, %v2897, 0.0
      %v2975 = vadd.f32 %v2973, %v2974
      %v2976 = vsel %vm2905, %v2898, 0.0
      %v2977 = vadd.f32 %v2975, %v2976
      %v2978 = vsel %vm2905, %v2899, 0.0
      %v2979 = vadd.f32 %v2977, %v2978
      %v2980 = vsel %vm2905, %v2900, 0.0
      %v2981 = vadd.f32 %v2979, %v2980
      %v2982 = vsel %vm2905, %v2901, 0.0
      %v2983 = vadd.f32 %v2981, %v2982
      %v2984 = vsel %vm2905, %v2902, 0.0
      %v2985 = vadd.f32 %v2983, %v2984
      %v2986 = vsel %vm2905, %v2903, 0.0
      %v2987 = vadd.f32 %v2985, %v2986
      %v2988 = vsel %vm2905, %v2904, 0.0
      %v2989 = vadd.f32 %v2987, %v2988
      %v2990 = vrot.slane %v2989, 4
      %v2991 = vadd.f32 %v2989, %v2990
      %v2992 = vrot.slane %v2991, 2
      %v2993 = vadd.f32 %v2991, %v2992
      %v2994 = vrot.slane %v2993, 1
      %v2995 = vadd.f32 %v2993, %v2994
      %vm2996 = vcmask 57344
      %2997 = vst.msk [vmem:[%s265] sm:$0x1] %vm2996, %v2995
      %v2998 = vmul.f32 %v2877, %v2877
      %v2999 = vmul.f32 %v2878, %v2878
      %v3000 = vmul.f32 %v2879, %v2879
      %v3001 = vmul.f32 %v2880, %v2880
      %v3002 = vmul.f32 %v2881, %v2881
      %v3003 = vmul.f32 %v2882, %v2882
      %v3004 = vmul.f32 %v2883, %v2883
      %v3005 = vmul.f32 %v2884, %v2884
      %v3006 = vmul.f32 %v2885, %v2885
      %v3007 = vmul.f32 %v2886, %v2886
      %v3008 = vmul.f32 %v2887, %v2887
      %v3009 = vmul.f32 %v2888, %v2888
      %v3010 = vmul.f32 %v2889, %v2889
      %v3011 = vmul.f32 %v2890, %v2890
      %v3012 = vmul.f32 %v2891, %v2891
      %v3013 = vmul.f32 %v2892, %v2892
      %v3014 = vmul.f32 %v2893, %v2893
      %v3015 = vmul.f32 %v2894, %v2894
      %v3016 = vmul.f32 %v2895, %v2895
      %v3017 = vmul.f32 %v2896, %v2896
      %v3018 = vmul.f32 %v2897, %v2897
      %v3019 = vmul.f32 %v2898, %v2898
      %v3020 = vmul.f32 %v2899, %v2899
      %v3021 = vmul.f32 %v2900, %v2900
      %v3022 = vmul.f32 %v2901, %v2901
      %v3023 = vmul.f32 %v2902, %v2902
      %v3024 = vmul.f32 %v2903, %v2903
      %v3025 = vmul.f32 %v2904, %v2904
      %v3026 = vsel %vm2905, %v2998, 0.0
      %v3027 = vsel %vm2905, %v2999, 0.0
      %v3028 = vadd.f32 %v3026, %v3027
      %v3029 = vsel %vm2905, %v3000, 0.0
      %v3030 = vadd.f32 %v3028, %v3029
      %v3031 = vsel %vm2905, %v3001, 0.0
      %v3032 = vadd.f32 %v3030, %v3031
      %v3033 = vsel %vm2905, %v3002, 0.0
      %v3034 = vadd.f32 %v3032, %v3033
      %v3035 = vsel %vm2905, %v3003, 0.0
      %v3036 = vadd.f32 %v3034, %v3035
      %v3037 = vsel %vm2905, %v3004, 0.0
      %v3038 = vadd.f32 %v3036, %v3037
      %v3039 = vsel %vm2905, %v3005, 0.0
      %v3040 = vadd.f32 %v3038, %v3039
      %v3041 = vsel %vm2905, %v3006, 0.0
      %v3042 = vadd.f32 %v3040, %v3041
      %v3043 = vsel %vm2905, %v3007, 0.0
      %v3044 = vadd.f32 %v3042, %v3043
      %v3045 = vsel %vm2905, %v3008, 0.0
      %v3046 = vadd.f32 %v3044, %v3045
      %v3047 = vsel %vm2905, %v3009, 0.0
      %v3048 = vadd.f32 %v3046, %v3047
      %v3049 = vsel %vm2905, %v3010, 0.0
      %v3050 = vadd.f32 %v3048, %v3049
      %v3051 = vsel %vm2905, %v3011, 0.0
      %v3052 = vadd.f32 %v3050, %v3051
      %v3053 = vsel %vm2905, %v3012, 0.0
      %v3054 = vadd.f32 %v3052, %v3053
      %v3055 = vsel %vm2905, %v3013, 0.0
      %v3056 = vadd.f32 %v3054, %v3055
      %v3057 = vsel %vm2905, %v3014, 0.0
      %v3058 = vadd.f32 %v3056, %v3057
      %v3059 = vsel %vm2905, %v3015, 0.0
      %v3060 = vadd.f32 %v3058, %v3059
      %v3061 = vsel %vm2905, %v3016, 0.0
      %v3062 = vadd.f32 %v3060, %v3061
      %v3063 = vsel %vm2905, %v3017, 0.0
      %v3064 = vadd.f32 %v3062, %v3063
      %v3065 = vsel %vm2905, %v3018, 0.0
      %v3066 = vadd.f32 %v3064, %v3065
      %v3067 = vsel %vm2905, %v3019, 0.0
      %v3068 = vadd.f32 %v3066, %v3067
      %v3069 = vsel %vm2905, %v3020, 0.0
      %v3070 = vadd.f32 %v3068, %v3069
      %v3071 = vsel %vm2905, %v3021, 0.0
      %v3072 = vadd.f32 %v3070, %v3071
      %v3073 = vsel %vm2905, %v3022, 0.0
      %v3074 = vadd.f32 %v3072, %v3073
      %v3075 = vsel %vm2905, %v3023, 0.0
      %v3076 = vadd.f32 %v3074, %v3075
      %v3077 = vsel %vm2905, %v3024, 0.0
      %v3078 = vadd.f32 %v3076, %v3077
      %v3079 = vsel %vm2905, %v3025, 0.0
      %v3080 = vadd.f32 %v3078, %v3079
      %v3081 = vrot.slane %v3080, 4
      %v3082 = vadd.f32 %v3080, %v3081
      %v3083 = vrot.slane %v3082, 2
      %v3084 = vadd.f32 %v3082, %v3083
      %v3085 = vrot.slane %v3084, 1
      %v3086 = vadd.f32 %v3084, %v3085
      %3087 = vst.msk [vmem:[%s268] sm:$0x1] %vm2996, %v3086
      %p3088 = scmp.lt.s32.totalorder %s18, 1
      %s3089 = scalar_select %p3088, %s18, 1
      %s3090 = smul.addr %s3089, 29
      %s3091 = smul.addr %s3090, 8
      %s3092 = scalar_lea.vmem %s4, %s3091
      %p3093 = scmp.lt.s32.totalorder %s18, 1
      %s3094 = scalar_select %p3093, %s18, 1
      %s3095 = scalar_lea.vmem %s5, %s3094
      %p3096 = scmp.lt.s32.totalorder %s18, 1
      %s3097 = scalar_select %p3096, %s18, 1
      %s3098 = scalar_lea.vmem %s6, %s3097
      // Predicated region
      $region37: #{double_conv.3} parent=35 // pred_check
        %p3099 = pneg %p125
      $region38: #{double_conv.3} parent=35 // pred_check_branch
        %3101 = sbr.rel (%p3099) target = $region40
      $region39: #{double_conv.3} parent=35 // pred_region
        _
      $region40: #{double_conv.3} parent=35 // pred_fallthru
        _
      // Predicated region
      $region41: #{double_conv.3} parent=35 // pred_check
        %p3102 = pneg %p151
      $region42: #{double_conv.3} parent=35 // pred_check_branch
        %3104 = sbr.rel (%p3102) target = $region44
      $region43: #{double_conv.3} parent=35 // pred_region
        _
      $region44: #{double_conv.3} parent=35 // pred_fallthru
        _
      // Predicated region
      $region45: #{double_conv.3} parent=35 // pred_check
        %p3105 = pneg %p177
      $region46: #{double_conv.3} parent=35 // pred_check_branch
        %3107 = sbr.rel (%p3105) target = $region48
      $region47: #{double_conv.3} parent=35 // pred_region
        _
      $region48: #{double_conv.3} parent=35 // pred_fallthru
        _
    $region36: #{double_conv.3} parent=5 // pred_fallthru
      _
    %p3108 = scmp.le.s32.totalorder 2, %s13
    // Predicated region
    $region49: #{double_conv.3} parent=5 // pred_check
      %p3109 = pneg %p3108
    $region50: #{double_conv.3} parent=5 // pred_check_branch
      %3111 = sbr.rel (%p3109) target = $region52
    $region51: #{double_conv.3} parent=5 // pred_region
      %s3112 = ssub.s32 %s13, 2
      // Predicated region
      $region53: #{double_conv.3} parent=51 // pred_check
        %p3113 = pneg %p131
      $region54: #{double_conv.3} parent=51 // pred_check_branch
        %3115 = sbr.rel (%p3113) target = $region56
      $region55: #{double_conv.3} parent=51 // pred_region
        %p3116 = scmp.lt.s32.totalorder %s19, 1
        %s3117 = scalar_select %p3116, %s19, 1
        %s3118 = smul.addr %s3117, 29
        %s3119 = smul.addr %s3118, 8
        %s3120 = scalar_lea.vmem %s4, %s3119
      $region56: #{double_conv.3} parent=51 // pred_fallthru
        _
      // Predicated region
      $region57: #{double_conv.3} parent=51 // pred_check
        %p3121 = pneg %p157
      $region58: #{double_conv.3} parent=51 // pred_check_branch
        %3123 = sbr.rel (%p3121) target = $region60
      $region59: #{double_conv.3} parent=51 // pred_region
        %p3124 = scmp.lt.s32.totalorder %s19, 1
        %s3125 = scalar_select %p3124, %s19, 1
        %s3126 = scalar_lea.vmem %s5, %s3125
      $region60: #{double_conv.3} parent=51 // pred_fallthru
        _
      // Predicated region
      $region61: #{double_conv.3} parent=51 // pred_check
        %p3127 = pneg %p183
      $region62: #{double_conv.3} parent=51 // pred_check_branch
        %3129 = sbr.rel (%p3127) target = $region64
      $region63: #{double_conv.3} parent=51 // pred_region
        %p3130 = scmp.lt.s32.totalorder %s19, 1
        %s3131 = scalar_select %p3130, %s19, 1
        %s3132 = scalar_lea.vmem %s6, %s3131
      $region64: #{double_conv.3} parent=51 // pred_fallthru
        _
    $region52: #{double_conv.3} parent=5 // pred_fallthru
      _
  $region6: #{double_conv.3} parent=0 // loop_footer
    %s17 = sadd.s32 1, %s13
  $region7: #{double_conv.3} parent=0 // loop_footer_branch
    %12 = sbr.rel target = $region3
  $region8: #{double_conv.3} parent=0 // loop_exit
    _

// kernel: double_conv.4
$region0: #{double_conv.4}
  #allocation0 [shape = 'u32[]', space=smem, size = 0x4, offset = 0x4, fixed_abs, tag = 'smem constant byte address 0x4 - core index']
  #allocation1 [shape = 'u32[72,128]{1,0:T(1,128)}', space=vmem, size = 0x9000, scoped, tag = 'internal scratch']
  #allocation2 [shape = 'f32[232,8]{1,0:T(8,128)}', space=vmem, size = 0x1d000, scoped, tag = 'scratch operand']
  %s0 = inlined_call_operand.vmem [shape: f32[2,232,8], index: 0, kind: input, shape index: {}]
  %s1 = inlined_call_operand.vmem [shape: f32[1,8], index: 1, kind: input, shape index: {}]
  %s2 = inlined_call_operand.vmem [shape: f32[1,8], index: 2, kind: input, shape index: {}]
  %s3 = inlined_call_operand.vmem [shape: f32[9,8,8], index: 3, kind: input, shape index: {}]
  %s4 = inlined_call_operand.vmem [shape: f32[2,192,8], index: 4, kind: output, shape index: {0}]
  %s5 = inlined_call_operand.vmem [shape: f32[2,1,8], index: 5, kind: output, shape index: {1}]
  %s6 = inlined_call_operand.vmem [shape: f32[2,1,8], index: 6, kind: output, shape index: {2}]
  %7 = xla_tuple %s4, %s5, %s6
  %s8 = sld [smem:[#allocation0]]
  $region65: #{double_conv.4} parent=0
    _
  %s10 = ssub.s32 1, %s8
  %s11 = scalar_select 0, %s10, %s8
  loop: start=0, step=1, limit=4
  $region2: #{double_conv.4} parent=0 // loop_pre_header
    _
  $region3: #{double_conv.4} parent=0 // loop_header
    %s13 = sphi 0, %s17
    %p14 = scmp.ge.s32.totalorder %s13, 4
    %s23 = sphi 0, %s25
    %s26 = sphi 0, %s23
    %s27 = sphi 0, %s26
    %s43 = sphi 0, %s27
    %s47 = sphi 0, %s47
    %s49 = sphi 0, %s47
    %s50 = sphi 0, %s49
    %s64 = sphi 0, %s50
    %s68 = sphi 0, %s68
    %s70 = sphi 0, %s68
    %s71 = sphi 0, %s70
    %s85 = sphi 0, %s71
    %s89 = sphi 0, %s89
    %s91 = sphi 0, %s89
    %s92 = sphi 0, %s91
    %s106 = sphi 0, %s92
    %s112 = sphi 0, %s114
    %s115 = sphi 0, %s112
    %s116 = sphi 0, %s115
    %s132 = sphi 0, %s116
    %s138 = sphi 0, %s140
    %s141 = sphi 0, %s138
    %s142 = sphi 0, %s141
    %s158 = sphi 0, %s142
    %s164 = sphi 0, %s166
    %s167 = sphi 0, %s164
    %s168 = sphi 0, %s167
    %s184 = sphi 0, %s168
  $region4: #{double_conv.4} parent=0 // loop_header_branch
    %16 = sbr.rel (%p14) target = $region8
  $region5: #{double_conv.4} parent=0 // loop_body
    %s18 = ssub.s32 %s13, 1
    %s19 = ssub.s32 %s13, 2
    %s20 = sadd.s32 %s13, 1
    %s21 = ssub.s32 %s13, %s20
    %p22 = scmp.eq.s32.totalorder %s21, 0
    %s24 = sadd.s32 %s23, 1
    %s25 = scalar_select %p22, %s23, %s24
    %p28 = pneg %p22
    %p29 = scmp.eq.s32.totalorder %s13, 1
    %p30 = por %p28, %p29
    %p31 = scmp.ne.s32.totalorder %s23, %s26
    %p32 = scmp.eq.s32.totalorder %s13, 0
    %p33 = por %p31, %p32
    %p34 = scmp.ne.s32.totalorder %s23, %s26
    %p35 = scmp.eq.s32.totalorder %s18, 1
    %p36 = por %p34, %p35
    %p37 = scmp.ne.s32.totalorder %s26, %s27
    %p38 = scmp.eq.s32.totalorder %s18, 0
    %p39 = por %p37, %p38
    %p40 = scmp.ne.s32.totalorder %s26, %s27
    %p41 = scmp.eq.s32.totalorder %s19, 1
    %p42 = por %p40, %p41
    %p44 = scmp.ne.s32.totalorder %s27, %s43
    %p45 = scmp.eq.s32.totalorder %s19, 0
    %p46 = por %p44, %p45
    %s48 = sadd.s32 %s47, 1
    %p51 = scmp.eq.s32.totalorder %s13, 1
    %p52 = scmp.ne.s32.totalorder %s47, %s49
    %p53 = scmp.eq.s32.totalorder %s13, 0
    %p54 = por %p52, %p53
    %p55 = scmp.ne.s32.totalorder %s47, %s49
    %p56 = scmp.eq.s32.totalorder %s18, 1
    %p57 = por %p55, %p56
    %p58 = scmp.ne.s32.totalorder %s49, %s50
    %p59 = scmp.eq.s32.totalorder %s18, 0
    %p60 = por %p58, %p59
    %p61 = scmp.ne.s32.totalorder %s49, %s50
    %p62 = scmp.eq.s32.totalorder %s19, 1
    %p63 = por %p61, %p62
    %p65 = scmp.ne.s32.totalorder %s50, %s64
    %p66 = scmp.eq.s32.totalorder %s19, 0
    %p67 = por %p65, %p66
    %s69 = sadd.s32 %s68, 1
    %p72 = scmp.eq.s32.totalorder %s13, 1
    %p73 = scmp.ne.s32.totalorder %s68, %s70
    %p74 = scmp.eq.s32.totalorder %s13, 0
    %p75 = por %p73, %p74
    %p76 = scmp.ne.s32.totalorder %s68, %s70
    %p77 = scmp.eq.s32.totalorder %s18, 1
    %p78 = por %p76, %p77
    %p79 = scmp.ne.s32.totalorder %s70, %s71
    %p80 = scmp.eq.s32.totalorder %s18, 0
    %p81 = por %p79, %p80
    %p82 = scmp.ne.s32.totalorder %s70, %s71
    %p83 = scmp.eq.s32.totalorder %s19, 1
    %p84 = por %p82, %p83
    %p86 = scmp.ne.s32.totalorder %s71, %s85
    %p87 = scmp.eq.s32.totalorder %s19, 0
    %p88 = por %p86, %p87
    %s90 = sadd.s32 %s89, 1
    %p93 = scmp.eq.s32.totalorder %s13, 1
    %p94 = scmp.ne.s32.totalorder %s89, %s91
    %p95 = scmp.eq.s32.totalorder %s13, 0
    %p96 = por %p94, %p95
    %p97 = scmp.ne.s32.totalorder %s89, %s91
    %p98 = scmp.eq.s32.totalorder %s18, 1
    %p99 = por %p97, %p98
    %p100 = scmp.ne.s32.totalorder %s91, %s92
    %p101 = scmp.eq.s32.totalorder %s18, 0
    %p102 = por %p100, %p101
    %p103 = scmp.ne.s32.totalorder %s91, %s92
    %p104 = scmp.eq.s32.totalorder %s19, 1
    %p105 = por %p103, %p104
    %p107 = scmp.ne.s32.totalorder %s92, %s106
    %p108 = scmp.eq.s32.totalorder %s19, 0
    %p109 = por %p107, %p108
    %s110 = ssub.s32 %s13, %s20
    %p111 = scmp.eq.s32.totalorder %s110, 0
    %s113 = sadd.s32 %s112, 1
    %s114 = scalar_select %p111, %s112, %s113
    %p117 = pneg %p111
    %p118 = scmp.eq.s32.totalorder %s13, 1
    %p119 = por %p117, %p118
    %p120 = scmp.ne.s32.totalorder %s112, %s115
    %p121 = scmp.eq.s32.totalorder %s13, 0
    %p122 = por %p120, %p121
    %p123 = scmp.ne.s32.totalorder %s112, %s115
    %p124 = scmp.eq.s32.totalorder %s18, 1
    %p125 = por %p123, %p124
    %p126 = scmp.ne.s32.totalorder %s115, %s116
    %p127 = scmp.eq.s32.totalorder %s18, 0
    %p128 = por %p126, %p127
    %p129 = scmp.ne.s32.totalorder %s115, %s116
    %p130 = scmp.eq.s32.totalorder %s19, 1
    %p131 = por %p129, %p130
    %p133 = scmp.ne.s32.totalorder %s116, %s132
    %p134 = scmp.eq.s32.totalorder %s19, 0
    %p135 = por %p133, %p134
    %s136 = ssub.s32 %s13, %s20
    %p137 = scmp.eq.s32.totalorder %s136, 0
    %s139 = sadd.s32 %s138, 1
    %s140 = scalar_select %p137, %s138, %s139
    %p143 = pneg %p137
    %p144 = scmp.eq.s32.totalorder %s13, 1
    %p145 = por %p143, %p144
    %p146 = scmp.ne.s32.totalorder %s138, %s141
    %p147 = scmp.eq.s32.totalorder %s13, 0
    %p148 = por %p146, %p147
    %p149 = scmp.ne.s32.totalorder %s138, %s141
    %p150 = scmp.eq.s32.totalorder %s18, 1
    %p151 = por %p149, %p150
    %p152 = scmp.ne.s32.totalorder %s141, %s142
    %p153 = scmp.eq.s32.totalorder %s18, 0
    %p154 = por %p152, %p153
    %p155 = scmp.ne.s32.totalorder %s141, %s142
    %p156 = scmp.eq.s32.totalorder %s19, 1
    %p157 = por %p155, %p156
    %p159 = scmp.ne.s32.totalorder %s142, %s158
    %p160 = scmp.eq.s32.totalorder %s19, 0
    %p161 = por %p159, %p160
    %s162 = ssub.s32 %s13, %s20
    %p163 = scmp.eq.s32.totalorder %s162, 0
    %s165 = sadd.s32 %s164, 1
    %s166 = scalar_select %p163, %s164, %s165
    %p169 = pneg %p163
    %p170 = scmp.eq.s32.totalorder %s13, 1
    %p171 = por %p169, %p170
    %p172 = scmp.ne.s32.totalorder %s164, %s167
    %p173 = scmp.eq.s32.totalorder %s13, 0
    %p174 = por %p172, %p173
    %p175 = scmp.ne.s32.totalorder %s164, %s167
    %p176 = scmp.eq.s32.totalorder %s18, 1
    %p177 = por %p175, %p176
    %p178 = scmp.ne.s32.totalorder %s167, %s168
    %p179 = scmp.eq.s32.totalorder %s18, 0
    %p180 = por %p178, %p179
    %p181 = scmp.ne.s32.totalorder %s167, %s168
    %p182 = scmp.eq.s32.totalorder %s19, 1
    %p183 = por %p181, %p182
    %p185 = scmp.ne.s32.totalorder %s168, %s184
    %p186 = scmp.eq.s32.totalorder %s19, 0
    %p187 = por %p185, %p186
    %p188 = scmp.le.s32.totalorder 1, %s13
    %p189 = scmp.lt.s32.totalorder %s13, 3
    %p190 = pnand %p188, %p189
    %p191 = pneg %p190
    // Predicated region
    $region9: #{double_conv.4} parent=5 // pred_check
      _
    $region10: #{double_conv.4} parent=5 // pred_check_branch
      %193 = sbr.rel (%p190) target = $region12
    $region11: #{double_conv.4} parent=5 // pred_region
      %s194 = ssub.s32 %s13, 1
      // Predicated region
      $region13: #{double_conv.4} parent=11 // pred_check
        %p195 = pneg %p60
      $region14: #{double_conv.4} parent=11 // pred_check_branch
        %197 = sbr.rel (%p195) target = $region16
      $region15: #{double_conv.4} parent=11 // pred_region
        _
      $region16: #{double_conv.4} parent=11 // pred_fallthru
        _
      // Predicated region
      $region17: #{double_conv.4} parent=11 // pred_check
        %p198 = pneg %p81
      $region18: #{double_conv.4} parent=11 // pred_check_branch
        %200 = sbr.rel (%p198) target = $region20
      $region19: #{double_conv.4} parent=11 // pred_region
        _
      $region20: #{double_conv.4} parent=11 // pred_fallthru
        _
      // Predicated region
      $region21: #{double_conv.4} parent=11 // pred_check
        %p201 = pneg %p102
      $region22: #{double_conv.4} parent=11 // pred_check_branch
        %203 = sbr.rel (%p201) target = $region24
      $region23: #{double_conv.4} parent=11 // pred_region
        _
      $region24: #{double_conv.4} parent=11 // pred_fallthru
        _
    $region12: #{double_conv.4} parent=5 // pred_fallthru
      _
    %p204 = scmp.lt.s32.totalorder %s13, 2
    // Predicated region
    $region25: #{double_conv.4} parent=5 // pred_check
      %p205 = pneg %p204
    $region26: #{double_conv.4} parent=5 // pred_check_branch
      %207 = sbr.rel (%p205) target = $region28
    $region27: #{double_conv.4} parent=5 // pred_region
      // Predicated region
      $region29: #{double_conv.4} parent=27 // pred_check
        %p208 = pneg %p33
      $region30: #{double_conv.4} parent=27 // pred_check_branch
        %210 = sbr.rel (%p208) target = $region32
      $region31: #{double_conv.4} parent=27 // pred_region
        %p211 = scmp.lt.s32.totalorder %s13, 1
        %s212 = scalar_select %p211, %s13, 1
        %s213 = smul.addr %s212, 29
        %s214 = smul.addr %s213, 8
        %s215 = scalar_lea.vmem %s0, %s214
      $region32: #{double_conv.4} parent=27 // pred_fallthru
        _
    $region28: #{double_conv.4} parent=5 // pred_fallthru
      _
    %p216 = scmp.le.s32.totalorder 1, %s13
    %p217 = scmp.lt.s32.totalorder %s13, 3
    %p218 = pnand %p216, %p217
    %p219 = pneg %p218
    // Predicated region
    $region33: #{double_conv.4} parent=5 // pred_check
      _
    $region34: #{double_conv.4} parent=5 // pred_check_branch
      %221 = sbr.rel (%p218) target = $region36
    $region35: #{double_conv.4} parent=5 // pred_region
      %s222 = ssub.s32 %s13, 1
      %p223 = scmp.lt.s32.totalorder %s18, 1
      %s224 = scalar_select %p223, %s18, 1
      %s225 = smul.addr %s224, 29
      %s226 = smul.addr %s225, 8
      %s227 = scalar_lea.vmem %s0, %s226
      %p228 = pneg %p39
      %p229 = pneg %p36
      %p230 = pneg %p60
      %p231 = pneg %p57
      %p232 = pneg %p81
      %p233 = pneg %p78
      %p234 = pneg %p102
      %p235 = pneg %p99
      %p236 = pneg %p128
      %p237 = pneg %p125
      %p238 = scmp.lt.s32.totalorder %s18, 1
      %s239 = scalar_select %p238, %s18, 1
      %s240 = smul.addr %s239, 24
      %s241 = smul.addr %s240, 8
      %s242 = scalar_lea.vmem %s4, %s241
      %p243 = pneg %p154
      %p244 = pneg %p151
      %p245 = scmp.lt.s32.totalorder %s18, 1
      %s246 = scalar_select %p245, %s18, 1
      %s247 = scalar_lea.vmem %s5, %s246
      %p248 = pneg %p180
      %p249 = pneg %p177
      %p250 = scmp.lt.s32.totalorder %s18, 1
      %s251 = scalar_select %p250, %s18, 1
      %s252 = scalar_lea.vmem %s6, %s251
      %p253 = scmp.lt.s32.totalorder %s18, 1
      %s254 = scalar_select %p253, %s18, 1
      %s255 = smul.addr %s254, 29
      %s256 = smul.addr %s255, 8
      %s257 = scalar_lea.vmem %s0, %s256
      %p258 = scmp.lt.s32.totalorder %s18, 1
      %s259 = scalar_select %p258, %s18, 1
      %s260 = smul.addr %s259, 24
      %s261 = smul.addr %s260, 8
      %s262 = scalar_lea.vmem %s4, %s261
      %p263 = scmp.lt.s32.totalorder %s18, 1
      %s264 = scalar_select %p263, %s18, 1
      %s265 = scalar_lea.vmem %s5, %s264
      %p266 = scmp.lt.s32.totalorder %s18, 1
      %s267 = scalar_select %p266, %s18, 1
      %s268 = scalar_lea.vmem %s6, %s267
      %v269 = vld [vmem:[%s257] sm:$0xff]
      %v270 = vld [vmem:[%s257 + $0x8] sm:$0xff]
      %v271 = vld [vmem:[%s257 + $0x10] sm:$0xff]
      %v272 = vld [vmem:[%s257 + $0x18] sm:$0xff]
      %v273 = vld [vmem:[%s257 + $0x20] sm:$0xff]
      %v274 = vld [vmem:[%s257 + $0x28] sm:$0xff]
      %v275 = vld [vmem:[%s257 + $0x30] sm:$0xff]
      %v276 = vld [vmem:[%s257 + $0x38] sm:$0xff]
      %v277 = vld [vmem:[%s257 + $0x40] sm:$0xff]
      %v278 = vld [vmem:[%s257 + $0x48] sm:$0xff]
      %v279 = vld [vmem:[%s257 + $0x50] sm:$0xff]
      %v280 = vld [vmem:[%s257 + $0x58] sm:$0xff]
      %v281 = vld [vmem:[%s257 + $0x60] sm:$0xff]
      %v282 = vld [vmem:[%s257 + $0x68] sm:$0xff]
      %v283 = vld [vmem:[%s257 + $0x70] sm:$0xff]
      %v284 = vld [vmem:[%s257 + $0x78] sm:$0xff]
      %v285 = vld [vmem:[%s257 + $0x80] sm:$0xff]
      %v286 = vld [vmem:[%s257 + $0x88] sm:$0xff]
      %v287 = vld [vmem:[%s257 + $0x90] sm:$0xff]
      %v288 = vld [vmem:[%s257 + $0x98] sm:$0xff]
      %v289 = vld [vmem:[%s257 + $0xa0] sm:$0xff]
      %v290 = vld [vmem:[%s257 + $0xa8] sm:$0xff]
      %v291 = vld [vmem:[%s257 + $0xb0] sm:$0xff]
      %v292 = vld [vmem:[%s257 + $0xb8] sm:$0xff]
      %v293 = vld [vmem:[%s257 + $0xc0] sm:$0xff]
      %v294 = vld [vmem:[%s257 + $0xc8] sm:$0xff]
      %v295 = vld [vmem:[%s257 + $0xd0] sm:$0xff]
      %v296 = vld [vmem:[%s257 + $0xd8] sm:$0xff]
      %v297 = vld [vmem:[%s257 + $0xe0] sm:$0xff]
      %v298 = vld [vmem:[%s1] sm:$0x1]
      %v300 = vperm.slane %v298, 0
      %v302 = vmul.f32 %v269, %v300
      %v303 = vmul.f32 %v270, %v300
      %v304 = vmul.f32 %v271, %v300
      %v305 = vmul.f32 %v272, %v300
      %v306 = vmul.f32 %v273, %v300
      %v307 = vmul.f32 %v274, %v300
      %v308 = vmul.f32 %v275, %v300
      %v309 = vmul.f32 %v276, %v300
      %v310 = vmul.f32 %v277, %v300
      %v311 = vmul.f32 %v278, %v300
      %v312 = vmul.f32 %v279, %v300
      %v313 = vmul.f32 %v280, %v300
      %v314 = vmul.f32 %v281, %v300
      %v315 = vmul.f32 %v282, %v300
      %v316 = vmul.f32 %v283, %v300
      %v317 = vmul.f32 %v284, %v300
      %v318 = vmul.f32 %v285, %v300
      %v319 = vmul.f32 %v286, %v300
      %v320 = vmul.f32 %v287, %v300
      %v321 = vmul.f32 %v288, %v300
      %v322 = vmul.f32 %v289, %v300
      %v323 = vmul.f32 %v290, %v300
      %v324 = vmul.f32 %v291, %v300
      %v325 = vmul.f32 %v292, %v300
      %v326 = vmul.f32 %v293, %v300
      %v327 = vmul.f32 %v294, %v300
      %v328 = vmul.f32 %v295, %v300
      %v329 = vmul.f32 %v296, %v300
      %v330 = vmul.f32 %v297, %v300
      %v331 = vld [vmem:[%s2] sm:$0x1]
      %v333 = vperm.slane %v331, 0
      %v335 = vadd.f32 %v302, %v333
      %v336 = vadd.f32 %v303, %v333
      %v337 = vadd.f32 %v304, %v333
      %v338 = vadd.f32 %v305, %v333
      %v339 = vadd.f32 %v306, %v333
      %v340 = vadd.f32 %v307, %v333
      %v341 = vadd.f32 %v308, %v333
      %v342 = vadd.f32 %v309, %v333
      %v343 = vadd.f32 %v310, %v333
      %v344 = vadd.f32 %v311, %v333
      %v345 = vadd.f32 %v312, %v333
      %v346 = vadd.f32 %v313, %v333
      %v347 = vadd.f32 %v314, %v333
      %v348 = vadd.f32 %v315, %v333
      %v349 = vadd.f32 %v316, %v333
      %v350 = vadd.f32 %v317, %v333
      %v351 = vadd.f32 %v318, %v333
      %v352 = vadd.f32 %v319, %v333
      %v353 = vadd.f32 %v320, %v333
      %v354 = vadd.f32 %v321, %v333
      %v355 = vadd.f32 %v322, %v333
      %v356 = vadd.f32 %v323, %v333
      %v357 = vadd.f32 %v324, %v333
      %v358 = vadd.f32 %v325, %v333
      %v359 = vadd.f32 %v326, %v333
      %v360 = vadd.f32 %v327, %v333
      %v361 = vadd.f32 %v328, %v333
      %v362 = vadd.f32 %v329, %v333
      %v363 = vadd.f32 %v330, %v333
      %v364 = vmax.f32 %v335, 0.0
      %v365 = vmax.f32 %v336, 0.0
      %v366 = vmax.f32 %v337, 0.0
      %v367 = vmax.f32 %v338, 0.0
      %v368 = vmax.f32 %v339, 0.0
      %v369 = vmax.f32 %v340, 0.0
      %v370 = vmax.f32 %v341, 0.0
      %v371 = vmax.f32 %v342, 0.0
      %v372 = vmax.f32 %v343, 0.0
      %v373 = vmax.f32 %v344, 0.0
      %v374 = vmax.f32 %v345, 0.0
      %v375 = vmax.f32 %v346, 0.0
      %v376 = vmax.f32 %v347, 0.0
      %v377 = vmax.f32 %v348, 0.0
      %v378 = vmax.f32 %v349, 0.0
      %v379 = vmax.f32 %v350, 0.0
      %v380 = vmax.f32 %v351, 0.0
      %v381 = vmax.f32 %v352, 0.0
      %v382 = vmax.f32 %v353, 0.0
      %v383 = vmax.f32 %v354, 0.0
      %v384 = vmax.f32 %v355, 0.0
      %v385 = vmax.f32 %v356, 0.0
      %v386 = vmax.f32 %v357, 0.0
      %v387 = vmax.f32 %v358, 0.0
      %v388 = vmax.f32 %v359, 0.0
      %v389 = vmax.f32 %v360, 0.0
      %v390 = vmax.f32 %v361, 0.0
      %v391 = vmax.f32 %v362, 0.0
      %v392 = vmax.f32 %v363, 0.0
      %vm393 = vcmask 64512
      %394 = vst.msk [vmem:[#allocation2] sm:$0xff] %vm393, %v364
      %395 = vst.msk [vmem:[#allocation2 + $0x8] sm:$0xff] %vm393, %v365
      %396 = vst.msk [vmem:[#allocation2 + $0x10] sm:$0xff] %vm393, %v366
      %397 = vst.msk [vmem:[#allocation2 + $0x18] sm:$0xff] %vm393, %v367
      %398 = vst.msk [vmem:[#allocation2 + $0x20] sm:$0xff] %vm393, %v368
      %399 = vst.msk [vmem:[#allocation2 + $0x28] sm:$0xff] %vm393, %v369
      %400 = vst.msk [vmem:[#allocation2 + $0x30] sm:$0xff] %vm393, %v370
      %401 = vst.msk [vmem:[#allocation2 + $0x38] sm:$0xff] %vm393, %v371
      %402 = vst.msk [vmem:[#allocation2 + $0x40] sm:$0xff] %vm393, %v372
      %403 = vst.msk [vmem:[#allocation2 + $0x48] sm:$0xff] %vm393, %v373
      %404 = vst.msk [vmem:[#allocation2 + $0x50] sm:$0xff] %vm393, %v374
      %405 = vst.msk [vmem:[#allocation2 + $0x58] sm:$0xff] %vm393, %v375
      %406 = vst.msk [vmem:[#allocation2 + $0x60] sm:$0xff] %vm393, %v376
      %407 = vst.msk [vmem:[#allocation2 + $0x68] sm:$0xff] %vm393, %v377
      %408 = vst.msk [vmem:[#allocation2 + $0x70] sm:$0xff] %vm393, %v378
      %409 = vst.msk [vmem:[#allocation2 + $0x78] sm:$0xff] %vm393, %v379
      %410 = vst.msk [vmem:[#allocation2 + $0x80] sm:$0xff] %vm393, %v380
      %411 = vst.msk [vmem:[#allocation2 + $0x88] sm:$0xff] %vm393, %v381
      %412 = vst.msk [vmem:[#allocation2 + $0x90] sm:$0xff] %vm393, %v382
      %413 = vst.msk [vmem:[#allocation2 + $0x98] sm:$0xff] %vm393, %v383
      %414 = vst.msk [vmem:[#allocation2 + $0xa0] sm:$0xff] %vm393, %v384
      %415 = vst.msk [vmem:[#allocation2 + $0xa8] sm:$0xff] %vm393, %v385
      %416 = vst.msk [vmem:[#allocation2 + $0xb0] sm:$0xff] %vm393, %v386
      %417 = vst.msk [vmem:[#allocation2 + $0xb8] sm:$0xff] %vm393, %v387
      %418 = vst.msk [vmem:[#allocation2 + $0xc0] sm:$0xff] %vm393, %v388
      %419 = vst.msk [vmem:[#allocation2 + $0xc8] sm:$0xff] %vm393, %v389
      %420 = vst.msk [vmem:[#allocation2 + $0xd0] sm:$0xff] %vm393, %v390
      %421 = vst.msk [vmem:[#allocation2 + $0xd8] sm:$0xff] %vm393, %v391
      %422 = vst.msk [vmem:[#allocation2 + $0xe0] sm:$0xff] %vm393, %v392
      %v423 = vld [vmem:[#allocation2] sm:$0xff]
      %v424 = vld [vmem:[#allocation2 + $0x8] sm:$0xff]
      %v425 = vld [vmem:[#allocation2 + $0x10] sm:$0xff]
      %v426 = vld [vmem:[#allocation2 + $0x18] sm:$0xff]
      %v427 = vld [vmem:[#allocation2 + $0x20] sm:$0xff]
      %v428 = vld [vmem:[#allocation2 + $0x28] sm:$0xff]
      %v429 = vld [vmem:[#allocation2 + $0x30] sm:$0xff]
      %v430 = vld [vmem:[#allocation2 + $0x38] sm:$0xff]
      %v431 = vld [vmem:[#allocation2 + $0x40] sm:$0xff]
      %v432 = vld [vmem:[#allocation2 + $0x48] sm:$0xff]
      %v433 = vld [vmem:[#allocation2 + $0x50] sm:$0xff]
      %v434 = vld [vmem:[#allocation2 + $0x58] sm:$0xff]
      %v435 = vld [vmem:[#allocation2 + $0x60] sm:$0xff]
      %v436 = vld [vmem:[#allocation2 + $0x68] sm:$0xff]
      %v437 = vld [vmem:[#allocation2 + $0x70] sm:$0xff]
      %v438 = vld [vmem:[#allocation2 + $0x78] sm:$0xff]
      %v439 = vld [vmem:[#allocation2 + $0x80] sm:$0xff]
      %v440 = vld [vmem:[#allocation2 + $0x88] sm:$0xff]
      %v441 = vld [vmem:[#allocation2 + $0x90] sm:$0xff]
      %v442 = vld [vmem:[#allocation2 + $0x98] sm:$0xff]
      %v443 = vld [vmem:[#allocation2 + $0xa0] sm:$0xff]
      %v444 = vld [vmem:[#allocation2 + $0xa8] sm:$0xff]
      %v445 = vld [vmem:[#allocation2 + $0xb0] sm:$0xff]
      %v446 = vld [vmem:[#allocation2 + $0xb8] sm:$0xff]
      %v447 = vld [vmem:[%s3] sm:$0xff]
      %v448 = vld [vmem:[#allocation2 + $0x1] sm:$0xff]
      %v449 = vld [vmem:[#allocation2 + $0x9] sm:$0xff]
      %v450 = vld [vmem:[#allocation2 + $0x11] sm:$0xff]
      %v451 = vld [vmem:[#allocation2 + $0x19] sm:$0xff]
      %v452 = vld [vmem:[#allocation2 + $0x21] sm:$0xff]
      %v453 = vld [vmem:[#allocation2 + $0x29] sm:$0xff]
      %v454 = vld [vmem:[#allocation2 + $0x31] sm:$0xff]
      %v455 = vld [vmem:[#allocation2 + $0x39] sm:$0xff]
      %v456 = vld [vmem:[#allocation2 + $0x41] sm:$0xff]
      %v457 = vld [vmem:[#allocation2 + $0x49] sm:$0xff]
      %v458 = vld [vmem:[#allocation2 + $0x51] sm:$0xff]
      %v459 = vld [vmem:[#allocation2 + $0x59] sm:$0xff]
      %v460 = vld [vmem:[#allocation2 + $0x61] sm:$0xff]
      %v461 = vld [vmem:[#allocation2 + $0x69] sm:$0xff]
      %v462 = vld [vmem:[#allocation2 + $0x71] sm:$0xff]
      %v463 = vld [vmem:[#allocation2 + $0x79] sm:$0xff]
      %v464 = vld [vmem:[#allocation2 + $0x81] sm:$0xff]
      %v465 = vld [vmem:[#allocation2 + $0x89] sm:$0xff]
      %v466 = vld [vmem:[#allocation2 + $0x91] sm:$0xff]
      %v467 = vld [vmem:[#allocation2 + $0x99] sm:$0xff]
      %v468 = vld [vmem:[#allocation2 + $0xa1] sm:$0xff]
      %v469 = vld [vmem:[#allocation2 + $0xa9] sm:$0xff]
      %v470 = vld [vmem:[#allocation2 + $0xb1] sm:$0xff]
      %v471 = vld [vmem:[#allocation2 + $0xb9] sm:$0xff]
      %s472 = scalar_lea.vmem %s3, 8
      %v473 = vld [vmem:[%s472] sm:$0xff]
      %v475 = vsel %vm393, %v448, 0
      %v478 = vsel %vm393, %v449, 0
      %v481 = vsel %vm393, %v450, 0
      %v484 = vsel %vm393, %v451, 0
      %v487 = vsel %vm393, %v452, 0
      %v490 = vsel %vm393, %v453, 0
      %v493 = vsel %vm393, %v454, 0
      %v496 = vsel %vm393, %v455, 0
      %v499 = vsel %vm393, %v456, 0
      %v502 = vsel %vm393, %v457, 0
      %v505 = vsel %vm393, %v458, 0
      %v508 = vsel %vm393, %v459, 0
      %v511 = vsel %vm393, %v460, 0
      %v514 = vsel %vm393, %v461, 0
      %v517 = vsel %vm393, %v462, 0
      %v520 = vsel %vm393, %v463, 0
      %v523 = vsel %vm393, %v464, 0
      %v526 = vsel %vm393, %v465, 0
      %v529 = vsel %vm393, %v466, 0
      %v532 = vsel %vm393, %v467, 0
      %v535 = vsel %vm393, %v468, 0
      %v538 = vsel %vm393, %v469, 0
      %v541 = vsel %vm393, %v470, 0
      %v544 = vsel %vm393, %v471, 0
      %546 = vmatpush.msra.mxu0 0.0
      %547 = vmatpush.msra.mxu0 0.0
      %548 = vmatpush.msra.mxu0 0.0
      %549 = vmatpush.msra.mxu0 0.0
      %550 = vmatpush.msra.mxu0 0.0
      %551 = vmatpush.msra.mxu0 0.0
      %552 = vmatpush.msra.mxu0 0.0
      %553 = vmatpush.msra.mxu0 0.0
      %554 = vmatpush.msra.mxu0 0.0
      %555 = vmatpush.msra.mxu0 0.0
      %556 = vmatpush.msra.mxu0 0.0
      %557 = vmatpush.msra.mxu0 0.0
      %558 = vmatpush.msra.mxu0 0.0
      %559 = vmatpush.msra.mxu0 0.0
      %560 = vmatpush.msra.mxu0 0.0
      %561 = vmatpush.msra.mxu0 %v473
      %562 = vmatmul.f32.gmra.mxu0 %v475
      %v563 = vpop.f32.mrf.mxu0
      %v564 = vadd.f32 0.0, %v563
      %565 = vmatmul.f32.gmra.mxu0 %v478
      %v566 = vpop.f32.mrf.mxu0
      %v567 = vadd.f32 0.0, %v566
      %568 = vmatmul.f32.gmra.mxu0 %v481
      %v569 = vpop.f32.mrf.mxu0
      %v570 = vadd.f32 0.0, %v569
      %571 = vmatmul.f32.gmra.mxu0 %v484
      %v572 = vpop.f32.mrf.mxu0
      %v573 = vadd.f32 0.0, %v572
      %574 = vmatmul.f32.gmra.mxu0 %v487
      %v575 = vpop.f32.mrf.mxu0
      %v576 = vadd.f32 0.0, %v575
      %577 = vmatmul.f32.gmra.mxu0 %v490
      %v578 = vpop.f32.mrf.mxu0
      %v579 = vadd.f32 0.0, %v578
      %580 = vmatmul.f32.gmra.mxu0 %v493
      %v581 = vpop.f32.mrf.mxu0
      %v582 = vadd.f32 0.0, %v581
      %583 = vmatmul.f32.gmra.mxu0 %v496
      %v584 = vpop.f32.mrf.mxu0
      %v585 = vadd.f32 0.0, %v584
      %586 = vmatmul.f32.gmra.mxu0 %v499
      %v587 = vpop.f32.mrf.mxu0
      %v588 = vadd.f32 0.0, %v587
      %589 = vmatmul.f32.gmra.mxu0 %v502
      %v590 = vpop.f32.mrf.mxu0
      %v591 = vadd.f32 0.0, %v590
      %592 = vmatmul.f32.gmra.mxu0 %v505
      %v593 = vpop.f32.mrf.mxu0
      %v594 = vadd.f32 0.0, %v593
      %595 = vmatmul.f32.gmra.mxu0 %v508
      %v596 = vpop.f32.mrf.mxu0
      %v597 = vadd.f32 0.0, %v596
      %598 = vmatmul.f32.gmra.mxu0 %v511
      %v599 = vpop.f32.mrf.mxu0
      %v600 = vadd.f32 0.0, %v599
      %601 = vmatmul.f32.gmra.mxu0 %v514
      %v602 = vpop.f32.mrf.mxu0
      %v603 = vadd.f32 0.0, %v602
      %604 = vmatmul.f32.gmra.mxu0 %v517
      %v605 = vpop.f32.mrf.mxu0
      %v606 = vadd.f32 0.0, %v605
      %607 = vmatmul.f32.gmra.mxu0 %v520
      %v608 = vpop.f32.mrf.mxu0
      %v609 = vadd.f32 0.0, %v608
      %610 = vmatmul.f32.gmra.mxu0 %v523
      %v611 = vpop.f32.mrf.mxu0
      %v612 = vadd.f32 0.0, %v611
      %613 = vmatmul.f32.gmra.mxu0 %v526
      %v614 = vpop.f32.mrf.mxu0
      %v615 = vadd.f32 0.0, %v614
      %616 = vmatmul.f32.gmra.mxu0 %v529
      %v617 = vpop.f32.mrf.mxu0
      %v618 = vadd.f32 0.0, %v617
      %619 = vmatmul.f32.gmra.mxu0 %v532
      %v620 = vpop.f32.mrf.mxu0
      %v621 = vadd.f32 0.0, %v620
      %622 = vmatmul.f32.gmra.mxu0 %v535
      %v623 = vpop.f32.mrf.mxu0
      %v624 = vadd.f32 0.0, %v623
      %625 = vmatmul.f32.gmra.mxu0 %v538
      %v626 = vpop.f32.mrf.mxu0
      %v627 = vadd.f32 0.0, %v626
      %628 = vmatmul.f32.gmra.mxu0 %v541
      %v629 = vpop.f32.mrf.mxu0
      %v630 = vadd.f32 0.0, %v629
      %631 = vmatmul.f32.gmra.mxu0 %v544
      %v632 = vpop.f32.mrf.mxu0
      %v633 = vadd.f32 0.0, %v632
      %634 = vdwg.mxu0
      %v636 = vsel %vm393, %v423, 0
      %v639 = vsel %vm393, %v424, 0
      %v642 = vsel %vm393, %v425, 0
      %v645 = vsel %vm393, %v426, 0
      %v648 = vsel %vm393, %v427, 0
      %v651 = vsel %vm393, %v428, 0
      %v654 = vsel %vm393, %v429, 0
      %v657 = vsel %vm393, %v430, 0
      %v660 = vsel %vm393, %v431, 0
      %v663 = vsel %vm393, %v432, 0
      %v666 = vsel %vm393, %v433, 0
      %v669 = vsel %vm393, %v434, 0
      %v672 = vsel %vm393, %v435, 0
      %v675 = vsel %vm393, %v436, 0
      %v678 = vsel %vm393, %v437, 0
      %v681 = vsel %vm393, %v438, 0
      %v684 = vsel %vm393, %v439, 0
      %v687 = vsel %vm393, %v440, 0
      %v690 = vsel %vm393, %v441, 0
      %v693 = vsel %vm393, %v442, 0
      %v696 = vsel %vm393, %v443, 0
      %v699 = vsel %vm393, %v444, 0
      %v702 = vsel %vm393, %v445, 0
      %v705 = vsel %vm393, %v446, 0
      %707 = vmatpush.msra.mxu0 0.0
      %708 = vmatpush.msra.mxu0 0.0
      %709 = vmatpush.msra.mxu0 0.0
      %710 = vmatpush.msra.mxu0 0.0
      %711 = vmatpush.msra.mxu0 0.0
      %712 = vmatpush.msra.mxu0 0.0
      %713 = vmatpush.msra.mxu0 0.0
      %714 = vmatpush.msra.mxu0 0.0
      %715 = vmatpush.msra.mxu0 0.0
      %716 = vmatpush.msra.mxu0 0.0
      %717 = vmatpush.msra.mxu0 0.0
      %718 = vmatpush.msra.mxu0 0.0
      %719 = vmatpush.msra.mxu0 0.0
      %720 = vmatpush.msra.mxu0 0.0
      %721 = vmatpush.msra.mxu0 0.0
      %722 = vmatpush.msra.mxu0 %v447
      %723 = vmatmul.f32.gmra.mxu0 %v636
      %v724 = vpop.f32.mrf.mxu0
      %v725 = vadd.f32 %v564, %v724
      %726 = vmatmul.f32.gmra.mxu0 %v639
      %v727 = vpop.f32.mrf.mxu0
      %v728 = vadd.f32 %v567, %v727
      %729 = vmatmul.f32.gmra.mxu0 %v642
      %v730 = vpop.f32.mrf.mxu0
      %v731 = vadd.f32 %v570, %v730
      %732 = vmatmul.f32.gmra.mxu0 %v645
      %v733 = vpop.f32.mrf.mxu0
      %v734 = vadd.f32 %v573, %v733
      %735 = vmatmul.f32.gmra.mxu0 %v648
      %v736 = vpop.f32.mrf.mxu0
      %v737 = vadd.f32 %v576, %v736
      %738 = vmatmul.f32.gmra.mxu0 %v651
      %v739 = vpop.f32.mrf.mxu0
      %v740 = vadd.f32 %v579, %v739
      %741 = vmatmul.f32.gmra.mxu0 %v654
      %v742 = vpop.f32.mrf.mxu0
      %v743 = vadd.f32 %v582, %v742
      %744 = vmatmul.f32.gmra.mxu0 %v657
      %v745 = vpop.f32.mrf.mxu0
      %v746 = vadd.f32 %v585, %v745
      %747 = vmatmul.f32.gmra.mxu0 %v660
      %v748 = vpop.f32.mrf.mxu0
      %v749 = vadd.f32 %v588, %v748
      %750 = vmatmul.f32.gmra.mxu0 %v663
      %v751 = vpop.f32.mrf.mxu0
      %v752 = vadd.f32 %v591, %v751
      %753 = vmatmul.f32.gmra.mxu0 %v666
      %v754 = vpop.f32.mrf.mxu0
      %v755 = vadd.f32 %v594, %v754
      %756 = vmatmul.f32.gmra.mxu0 %v669
      %v757 = vpop.f32.mrf.mxu0
      %v758 = vadd.f32 %v597, %v757
      %759 = vmatmul.f32.gmra.mxu0 %v672
      %v760 = vpop.f32.mrf.mxu0
      %v761 = vadd.f32 %v600, %v760
      %762 = vmatmul.f32.gmra.mxu0 %v675
      %v763 = vpop.f32.mrf.mxu0
      %v764 = vadd.f32 %v603, %v763
      %765 = vmatmul.f32.gmra.mxu0 %v678
      %v766 = vpop.f32.mrf.mxu0
      %v767 = vadd.f32 %v606, %v766
      %768 = vmatmul.f32.gmra.mxu0 %v681
      %v769 = vpop.f32.mrf.mxu0
      %v770 = vadd.f32 %v609, %v769
      %771 = vmatmul.f32.gmra.mxu0 %v684
      %v772 = vpop.f32.mrf.mxu0
      %v773 = vadd.f32 %v612, %v772
      %774 = vmatmul.f32.gmra.mxu0 %v687
      %v775 = vpop.f32.mrf.mxu0
      %v776 = vadd.f32 %v615, %v775
      %777 = vmatmul.f32.gmra.mxu0 %v690
      %v778 = vpop.f32.mrf.mxu0
      %v779 = vadd.f32 %v618, %v778
      %780 = vmatmul.f32.gmra.mxu0 %v693
      %v781 = vpop.f32.mrf.mxu0
      %v782 = vadd.f32 %v621, %v781
      %783 = vmatmul.f32.gmra.mxu0 %v696
      %v784 = vpop.f32.mrf.mxu0
      %v785 = vadd.f32 %v624, %v784
      %786 = vmatmul.f32.gmra.mxu0 %v699
      %v787 = vpop.f32.mrf.mxu0
      %v788 = vadd.f32 %v627, %v787
      %789 = vmatmul.f32.gmra.mxu0 %v702
      %v790 = vpop.f32.mrf.mxu0
      %v791 = vadd.f32 %v630, %v790
      %792 = vmatmul.f32.gmra.mxu0 %v705
      %v793 = vpop.f32.mrf.mxu0
      %v794 = vadd.f32 %v633, %v793
      %795 = vdwg.mxu0
      %v796 = vld [vmem:[#allocation2 + $0x2] sm:$0xff]
      %v797 = vld [vmem:[#allocation2 + $0xa] sm:$0xff]
      %v798 = vld [vmem:[#allocation2 + $0x12] sm:$0xff]
      %v799 = vld [vmem:[#allocation2 + $0x1a] sm:$0xff]
      %v800 = vld [vmem:[#allocation2 + $0x22] sm:$0xff]
      %v801 = vld [vmem:[#allocation2 + $0x2a] sm:$0xff]
      %v802 = vld [vmem:[#allocation2 + $0x32] sm:$0xff]
      %v803 = vld [vmem:[#allocation2 + $0x3a] sm:$0xff]
      %v804 = vld [vmem:[#allocation2 + $0x42] sm:$0xff]
      %v805 = vld [vmem:[#allocation2 + $0x4a] sm:$0xff]
      %v806 = vld [vmem:[#allocation2 + $0x52] sm:$0xff]
      %v807 = vld [vmem:[#allocation2 + $0x5a] sm:$0xff]
      %v808 = vld [vmem:[#allocation2 + $0x62] sm:$0xff]
      %v809 = vld [vmem:[#allocation2 + $0x6a] sm:$0xff]
      %v810 = vld [vmem:[#allocation2 + $0x72] sm:$0xff]
      %v811 = vld [vmem:[#allocation2 + $0x7a] sm:$0xff]
      %v812 = vld [vmem:[#allocation2 + $0x82] sm:$0xff]
      %v813 = vld [vmem:[#allocation2 + $0x8a] sm:$0xff]
      %v814 = vld [vmem:[#allocation2 + $0x92] sm:$0xff]
      %v815 = vld [vmem:[#allocation2 + $0x9a] sm:$0xff]
      %v816 = vld [vmem:[#allocation2 + $0xa2] sm:$0xff]
      %v817 = vld [vmem:[#allocation2 + $0xaa] sm:$0xff]
      %v818 = vld [vmem:[#allocation2 + $0xb2] sm:$0xff]
      %v819 = vld [vmem:[#allocation2 + $0xba] sm:$0xff]
      %s820 = scalar_lea.vmem %s3, 16
      %v821 = vld [vmem:[%s820] sm:$0xff]
      %v823 = vsel %vm393, %v796, 0
      %v826 = vsel %vm393, %v797, 0
      %v829 = vsel %vm393, %v798, 0
      %v832 = vsel %vm393, %v799, 0
      %v835 = vsel %vm393, %v800, 0
      %v838 = vsel %vm393, %v801, 0
      %v841 = vsel %vm393, %v802, 0
      %v844 = vsel %vm393, %v803, 0
      %v847 = vsel %vm393, %v804, 0
      %v850 = vsel %vm393, %v805, 0
      %v853 = vsel %vm393, %v806, 0
      %v856 = vsel %vm393, %v807, 0
      %v859 = vsel %vm393, %v808, 0
      %v862 = vsel %vm393, %v809, 0
      %v865 = vsel %vm393, %v810, 0
      %v868 = vsel %vm393, %v811, 0
      %v871 = vsel %vm393, %v812, 0
      %v874 = vsel %vm393, %v813, 0
      %v877 = vsel %vm393, %v814, 0
      %v880 = vsel %vm393, %v815, 0
      %v883 = vsel %vm393, %v816, 0
      %v886 = vsel %vm393, %v817, 0
      %v889 = vsel %vm393, %v818, 0
      %v892 = vsel %vm393, %v819, 0
      %894 = vmatpush.msra.mxu0 0.0
      %895 = vmatpush.msra.mxu0 0.0
      %896 = vmatpush.msra.mxu0 0.0
      %897 = vmatpush.msra.mxu0 0.0
      %898 = vmatpush.msra.mxu0 0.0
      %899 = vmatpush.msra.mxu0 0.0
      %900 = vmatpush.msra.mxu0 0.0
      %901 = vmatpush.msra.mxu0 0.0
      %902 = vmatpush.msra.mxu0 0.0
      %903 = vmatpush.msra.mxu0 0.0
      %904 = vmatpush.msra.mxu0 0.0
      %905 = vmatpush.msra.mxu0 0.0
      %906 = vmatpush.msra.mxu0 0.0
      %907 = vmatpush.msra.mxu0 0.0
      %908 = vmatpush.msra.mxu0 0.0
      %909 = vmatpush.msra.mxu0 %v821
      %910 = vmatmul.f32.gmra.mxu0 %v823
      %v911 = vpop.f32.mrf.mxu0
      %v912 = vadd.f32 0.0, %v911
      %913 = vmatmul.f32.gmra.mxu0 %v826
      %v914 = vpop.f32.mrf.mxu0
      %v915 = vadd.f32 0.0, %v914
      %916 = vmatmul.f32.gmra.mxu0 %v829
      %v917 = vpop.f32.mrf.mxu0
      %v918 = vadd.f32 0.0, %v917
      %919 = vmatmul.f32.gmra.mxu0 %v832
      %v920 = vpop.f32.mrf.mxu0
      %v921 = vadd.f32 0.0, %v920
      %922 = vmatmul.f32.gmra.mxu0 %v835
      %v923 = vpop.f32.mrf.mxu0
      %v924 = vadd.f32 0.0, %v923
      %925 = vmatmul.f32.gmra.mxu0 %v838
      %v926 = vpop.f32.mrf.mxu0
      %v927 = vadd.f32 0.0, %v926
      %928 = vmatmul.f32.gmra.mxu0 %v841
      %v929 = vpop.f32.mrf.mxu0
      %v930 = vadd.f32 0.0, %v929
      %931 = vmatmul.f32.gmra.mxu0 %v844
      %v932 = vpop.f32.mrf.mxu0
      %v933 = vadd.f32 0.0, %v932
      %934 = vmatmul.f32.gmra.mxu0 %v847
      %v935 = vpop.f32.mrf.mxu0
      %v936 = vadd.f32 0.0, %v935
      %937 = vmatmul.f32.gmra.mxu0 %v850
      %v938 = vpop.f32.mrf.mxu0
      %v939 = vadd.f32 0.0, %v938
      %940 = vmatmul.f32.gmra.mxu0 %v853
      %v941 = vpop.f32.mrf.mxu0
      %v942 = vadd.f32 0.0, %v941
      %943 = vmatmul.f32.gmra.mxu0 %v856
      %v944 = vpop.f32.mrf.mxu0
      %v945 = vadd.f32 0.0, %v944
      %946 = vmatmul.f32.gmra.mxu0 %v859
      %v947 = vpop.f32.mrf.mxu0
      %v948 = vadd.f32 0.0, %v947
      %949 = vmatmul.f32.gmra.mxu0 %v862
      %v950 = vpop.f32.mrf.mxu0
      %v951 = vadd.f32 0.0, %v950
      %952 = vmatmul.f32.gmra.mxu0 %v865
      %v953 = vpop.f32.mrf.mxu0
      %v954 = vadd.f32 0.0, %v953
      %955 = vmatmul.f32.gmra.mxu0 %v868
      %v956 = vpop.f32.mrf.mxu0
      %v957 = vadd.f32 0.0, %v956
      %958 = vmatmul.f32.gmra.mxu0 %v871
      %v959 = vpop.f32.mrf.mxu0
      %v960 = vadd.f32 0.0, %v959
      %961 = vmatmul.f32.gmra.mxu0 %v874
      %v962 = vpop.f32.mrf.mxu0
      %v963 = vadd.f32 0.0, %v962
      %964 = vmatmul.f32.gmra.mxu0 %v877
      %v965 = vpop.f32.mrf.mxu0
      %v966 = vadd.f32 0.0, %v965
      %967 = vmatmul.f32.gmra.mxu0 %v880
      %v968 = vpop.f32.mrf.mxu0
      %v969 = vadd.f32 0.0, %v968
      %970 = vmatmul.f32.gmra.mxu0 %v883
      %v971 = vpop.f32.mrf.mxu0
      %v972 = vadd.f32 0.0, %v971
      %973 = vmatmul.f32.gmra.mxu0 %v886
      %v974 = vpop.f32.mrf.mxu0
      %v975 = vadd.f32 0.0, %v974
      %976 = vmatmul.f32.gmra.mxu0 %v889
      %v977 = vpop.f32.mrf.mxu0
      %v978 = vadd.f32 0.0, %v977
      %979 = vmatmul.f32.gmra.mxu0 %v892
      %v980 = vpop.f32.mrf.mxu0
      %v981 = vadd.f32 0.0, %v980
      %982 = vdwg.mxu0
      %v983 = vadd.f32 %v725, %v912
      %v984 = vadd.f32 %v728, %v915
      %v985 = vadd.f32 %v731, %v918
      %v986 = vadd.f32 %v734, %v921
      %v987 = vadd.f32 %v737, %v924
      %v988 = vadd.f32 %v740, %v927
      %v989 = vadd.f32 %v743, %v930
      %v990 = vadd.f32 %v746, %v933
      %v991 = vadd.f32 %v749, %v936
      %v992 = vadd.f32 %v752, %v939
      %v993 = vadd.f32 %v755, %v942
      %v994 = vadd.f32 %v758, %v945
      %v995 = vadd.f32 %v761, %v948
      %v996 = vadd.f32 %v764, %v951
      %v997 = vadd.f32 %v767, %v954
      %v998 = vadd.f32 %v770, %v957
      %v999 = vadd.f32 %v773, %v960
      %v1000 = vadd.f32 %v776, %v963
      %v1001 = vadd.f32 %v779, %v966
      %v1002 = vadd.f32 %v782, %v969
      %v1003 = vadd.f32 %v785, %v972
      %v1004 = vadd.f32 %v788, %v975
      %v1005 = vadd.f32 %v791, %v978
      %v1006 = vadd.f32 %v794, %v981
      %v1007 = vld [vmem:[#allocation2 + $0x10] sm:$0xff]
      %v1008 = vld [vmem:[#allocation2 + $0x18] sm:$0xff]
      %v1009 = vld [vmem:[#allocation2 + $0x20] sm:$0xff]
      %v1010 = vld [vmem:[#allocation2 + $0x28] sm:$0xff]
      %v1011 = vld [vmem:[#allocation2 + $0x30] sm:$0xff]
      %v1012 = vld [vmem:[#allocation2 + $0x38] sm:$0xff]
      %v1013 = vld [vmem:[#allocation2 + $0x40] sm:$0xff]
      %v1014 = vld [vmem:[#allocation2 + $0x48] sm:$0xff]
      %v1015 = vld [vmem:[#allocation2 + $0x50] sm:$0xff]
      %v1016 = vld [vmem:[#allocation2 + $0x58] sm:$0xff]
      %v1017 = vld [vmem:[#allocation2 + $0x60] sm:$0xff]
      %v1018 = vld [vmem:[#allocation2 + $0x68] sm:$0xff]
      %v1019 = vld [vmem:[#allocation2 + $0x70] sm:$0xff]
      %v1020 = vld [vmem:[#allocation2 + $0x78] sm:$0xff]
      %v1021 = vld [vmem:[#allocation2 + $0x80] sm:$0xff]
      %v1022 = vld [vmem:[#allocation2 + $0x88] sm:$0xff]
      %v1023 = vld [vmem:[#allocation2 + $0x90] sm:$0xff]
      %v1024 = vld [vmem:[#allocation2 + $0x98] sm:$0xff]
      %v1025 = vld [vmem:[#allocation2 + $0xa0] sm:$0xff]
      %v1026 = vld [vmem:[#allocation2 + $0xa8] sm:$0xff]
      %v1027 = vld [vmem:[#allocation2 + $0xb0] sm:$0xff]
      %v1028 = vld [vmem:[#allocation2 + $0xb8] sm:$0xff]
      %v1029 = vld [vmem:[#allocation2 + $0xc0] sm:$0xff]
      %v1030 = vld [vmem:[#allocation2 + $0xc8] sm:$0xff]
      %s1031 = scalar_lea.vmem %s3, 24
      %v1032 = vld [vmem:[%s1031] sm:$0xff]
      %v1034 = vsel %vm393, %v1007, 0
      %v1037 = vsel %vm393, %v1008, 0
      %v1040 = vsel %vm393, %v1009, 0
      %v1043 = vsel %vm393, %v1010, 0
      %v1046 = vsel %vm393, %v1011, 0
      %v1049 = vsel %vm393, %v1012, 0
      %v1052 = vsel %vm393, %v1013, 0
      %v1055 = vsel %vm393, %v1014, 0
      %v1058 = vsel %vm393, %v1015, 0
      %v1061 = vsel %vm393, %v1016, 0
      %v1064 = vsel %vm393, %v1017, 0
      %v1067 = vsel %vm393, %v1018, 0
      %v1070 = vsel %vm393, %v1019, 0
      %v1073 = vsel %vm393, %v1020, 0
      %v1076 = vsel %vm393, %v1021, 0
      %v1079 = vsel %vm393, %v1022, 0
      %v1082 = vsel %vm393, %v1023, 0
      %v1085 = vsel %vm393, %v1024, 0
      %v1088 = vsel %vm393, %v1025, 0
      %v1091 = vsel %vm393, %v1026, 0
      %v1094 = vsel %vm393, %v1027, 0
      %v1097 = vsel %vm393, %v1028, 0
      %v1100 = vsel %vm393, %v1029, 0
      %v1103 = vsel %vm393, %v1030, 0
      %1105 = vmatpush.msra.mxu0 0.0
      %1106 = vmatpush.msra.mxu0 0.0
      %1107 = vmatpush.msra.mxu0 0.0
      %1108 = vmatpush.msra.mxu0 0.0
      %1109 = vmatpush.msra.mxu0 0.0
      %1110 = vmatpush.msra.mxu0 0.0
      %1111 = vmatpush.msra.mxu0 0.0
      %1112 = vmatpush.msra.mxu0 0.0
      %1113 = vmatpush.msra.mxu0 0.0
      %1114 = vmatpush.msra.mxu0 0.0
      %1115 = vmatpush.msra.mxu0 0.0
      %1116 = vmatpush.msra.mxu0 0.0
      %1117 = vmatpush.msra.mxu0 0.0
      %1118 = vmatpush.msra.mxu0 0.0
      %1119 = vmatpush.msra.mxu0 0.0
      %1120 = vmatpush.msra.mxu0 %v1032
      %1121 = vmatmul.f32.gmra.mxu0 %v1034
      %v1122 = vpop.f32.mrf.mxu0
      %v1123 = vadd.f32 0.0, %v1122
      %1124 = vmatmul.f32.gmra.mxu0 %v1037
      %v1125 = vpop.f32.mrf.mxu0
      %v1126 = vadd.f32 0.0, %v1125
      %1127 = vmatmul.f32.gmra.mxu0 %v1040
      %v1128 = vpop.f32.mrf.mxu0
      %v1129 = vadd.f32 0.0, %v1128
      %1130 = vmatmul.f32.gmra.mxu0 %v1043
      %v1131 = vpop.f32.mrf.mxu0
      %v1132 = vadd.f32 0.0, %v1131
      %1133 = vmatmul.f32.gmra.mxu0 %v1046
      %v1134 = vpop.f32.mrf.mxu0
      %v1135 = vadd.f32 0.0, %v1134
      %1136 = vmatmul.f32.gmra.mxu0 %v1049
      %v1137 = vpop.f32.mrf.mxu0
      %v1138 = vadd.f32 0.0, %v1137
      %1139 = vmatmul.f32.gmra.mxu0 %v1052
      %v1140 = vpop.f32.mrf.mxu0
      %v1141 = vadd.f32 0.0, %v1140
      %1142 = vmatmul.f32.gmra.mxu0 %v1055
      %v1143 = vpop.f32.mrf.mxu0
      %v1144 = vadd.f32 0.0, %v1143
      %1145 = vmatmul.f32.gmra.mxu0 %v1058
      %v1146 = vpop.f32.mrf.mxu0
      %v1147 = vadd.f32 0.0, %v1146
      %1148 = vmatmul.f32.gmra.mxu0 %v1061
      %v1149 = vpop.f32.mrf.mxu0
      %v1150 = vadd.f32 0.0, %v1149
      %1151 = vmatmul.f32.gmra.mxu0 %v1064
      %v1152 = vpop.f32.mrf.mxu0
      %v1153 = vadd.f32 0.0, %v1152
      %1154 = vmatmul.f32.gmra.mxu0 %v1067
      %v1155 = vpop.f32.mrf.mxu0
      %v1156 = vadd.f32 0.0, %v1155
      %1157 = vmatmul.f32.gmra.mxu0 %v1070
      %v1158 = vpop.f32.mrf.mxu0
      %v1159 = vadd.f32 0.0, %v1158
      %1160 = vmatmul.f32.gmra.mxu0 %v1073
      %v1161 = vpop.f32.mrf.mxu0
      %v1162 = vadd.f32 0.0, %v1161
      %1163 = vmatmul.f32.gmra.mxu0 %v1076
      %v1164 = vpop.f32.mrf.mxu0
      %v1165 = vadd.f32 0.0, %v1164
      %1166 = vmatmul.f32.gmra.mxu0 %v1079
      %v1167 = vpop.f32.mrf.mxu0
      %v1168 = vadd.f32 0.0, %v1167
      %1169 = vmatmul.f32.gmra.mxu0 %v1082
      %v1170 = vpop.f32.mrf.mxu0
      %v1171 = vadd.f32 0.0, %v1170
      %1172 = vmatmul.f32.gmra.mxu0 %v1085
      %v1173 = vpop.f32.mrf.mxu0
      %v1174 = vadd.f32 0.0, %v1173
      %1175 = vmatmul.f32.gmra.mxu0 %v1088
      %v1176 = vpop.f32.mrf.mxu0
      %v1177 = vadd.f32 0.0, %v1176
      %1178 = vmatmul.f32.gmra.mxu0 %v1091
      %v1179 = vpop.f32.mrf.mxu0
      %v1180 = vadd.f32 0.0, %v1179
      %1181 = vmatmul.f32.gmra.mxu0 %v1094
      %v1182 = vpop.f32.mrf.mxu0
      %v1183 = vadd.f32 0.0, %v1182
      %1184 = vmatmul.f32.gmra.mxu0 %v1097
      %v1185 = vpop.f32.mrf.mxu0
      %v1186 = vadd.f32 0.0, %v1185
      %1187 = vmatmul.f32.gmra.mxu0 %v1100
      %v1188 = vpop.f32.mrf.mxu0
      %v1189 = vadd.f32 0.0, %v1188
      %1190 = vmatmul.f32.gmra.mxu0 %v1103
      %v1191 = vpop.f32.mrf.mxu0
      %v1192 = vadd.f32 0.0, %v1191
      %1193 = vdwg.mxu0
      %v1194 = vadd.f32 %v983, %v1123
      %v1195 = vadd.f32 %v984, %v1126
      %v1196 = vadd.f32 %v985, %v1129
      %v1197 = vadd.f32 %v986, %v1132
      %v1198 = vadd.f32 %v987, %v1135
      %v1199 = vadd.f32 %v988, %v1138
      %v1200 = vadd.f32 %v989, %v1141
      %v1201 = vadd.f32 %v990, %v1144
      %v1202 = vadd.f32 %v991, %v1147
      %v1203 = vadd.f32 %v992, %v1150
      %v1204 = vadd.f32 %v993, %v1153
      %v1205 = vadd.f32 %v994, %v1156
      %v1206 = vadd.f32 %v995, %v1159
      %v1207 = vadd.f32 %v996, %v1162
      %v1208 = vadd.f32 %v997, %v1165
      %v1209 = vadd.f32 %v998, %v1168
      %v1210 = vadd.f32 %v999, %v1171
      %v1211 = vadd.f32 %v1000, %v1174
      %v1212 = vadd.f32 %v1001, %v1177
      %v1213 = vadd.f32 %v1002, %v1180
      %v1214 = vadd.f32 %v1003, %v1183
      %v1215 = vadd.f32 %v1004, %v1186
      %v1216 = vadd.f32 %v1005, %v1189
      %v1217 = vadd.f32 %v1006, %v1192
      %v1218 = vld [vmem:[#allocation2 + $0x11] sm:$0xff]
      %v1219 = vld [vmem:[#allocation2 + $0x19] sm:$0xff]
      %v1220 = vld [vmem:[#allocation2 + $0x21] sm:$0xff]
      %v1221 = vld [vmem:[#allocation2 + $0x29] sm:$0xff]
      %v1222 = vld [vmem:[#allocation2 + $0x31] sm:$0xff]
      %v1223 = vld [vmem:[#allocation2 + $0x39] sm:$0xff]
      %v1224 = vld [vmem:[#allocation2 + $0x41] sm:$0xff]
      %v1225 = vld [vmem:[#allocation2 + $0x49] sm:$0xff]
      %v1226 = vld [vmem:[#allocation2 + $0x51] sm:$0xff]
      %v1227 = vld [vmem:[#allocation2 + $0x59] sm:$0xff]
      %v1228 = vld [vmem:[#allocation2 + $0x61] sm:$0xff]
      %v1229 = vld [vmem:[#allocation2 + $0x69] sm:$0xff]
      %v1230 = vld [vmem:[#allocation2 + $0x71] sm:$0xff]
      %v1231 = vld [vmem:[#allocation2 + $0x79] sm:$0xff]
      %v1232 = vld [vmem:[#allocation2 + $0x81] sm:$0xff]
      %v1233 = vld [vmem:[#allocation2 + $0x89] sm:$0xff]
      %v1234 = vld [vmem:[#allocation2 + $0x91] sm:$0xff]
      %v1235 = vld [vmem:[#allocation2 + $0x99] sm:$0xff]
      %v1236 = vld [vmem:[#allocation2 + $0xa1] sm:$0xff]
      %v1237 = vld [vmem:[#allocation2 + $0xa9] sm:$0xff]
      %v1238 = vld [vmem:[#allocation2 + $0xb1] sm:$0xff]
      %v1239 = vld [vmem:[#allocation2 + $0xb9] sm:$0xff]
      %v1240 = vld [vmem:[#allocation2 + $0xc1] sm:$0xff]
      %v1241 = vld [vmem:[#allocation2 + $0xc9] sm:$0xff]
      %s1242 = scalar_lea.vmem %s3, 32
      %v1243 = vld [vmem:[%s1242] sm:$0xff]
      %v1245 = vsel %vm393, %v1218, 0
      %v1248 = vsel %vm393, %v1219, 0
      %v1251 = vsel %vm393, %v1220, 0
      %v1254 = vsel %vm393, %v1221, 0
      %v1257 = vsel %vm393, %v1222, 0
      %v1260 = vsel %vm393, %v1223, 0
      %v1263 = vsel %vm393, %v1224, 0
      %v1266 = vsel %vm393, %v1225, 0
      %v1269 = vsel %vm393, %v1226, 0
      %v1272 = vsel %vm393, %v1227, 0
      %v1275 = vsel %vm393, %v1228, 0
      %v1278 = vsel %vm393, %v1229, 0
      %v1281 = vsel %vm393, %v1230, 0
      %v1284 = vsel %vm393, %v1231, 0
      %v1287 = vsel %vm393, %v1232, 0
      %v1290 = vsel %vm393, %v1233, 0
      %v1293 = vsel %vm393, %v1234, 0
      %v1296 = vsel %vm393, %v1235, 0
      %v1299 = vsel %vm393, %v1236, 0
      %v1302 = vsel %vm393, %v1237, 0
      %v1305 = vsel %vm393, %v1238, 0
      %v1308 = vsel %vm393, %v1239, 0
      %v1311 = vsel %vm393, %v1240, 0
      %v1314 = vsel %vm393, %v1241, 0
      %1316 = vmatpush.msra.mxu0 0.0
      %1317 = vmatpush.msra.mxu0 0.0
      %1318 = vmatpush.msra.mxu0 0.0
      %1319 = vmatpush.msra.mxu0 0.0
      %1320 = vmatpush.msra.mxu0 0.0
      %1321 = vmatpush.msra.mxu0 0.0
      %1322 = vmatpush.msra.mxu0 0.0
      %1323 = vmatpush.msra.mxu0 0.0
      %1324 = vmatpush.msra.mxu0 0.0
      %1325 = vmatpush.msra.mxu0 0.0
      %1326 = vmatpush.msra.mxu0 0.0
      %1327 = vmatpush.msra.mxu0 0.0
      %1328 = vmatpush.msra.mxu0 0.0
      %1329 = vmatpush.msra.mxu0 0.0
      %1330 = vmatpush.msra.mxu0 0.0
      %1331 = vmatpush.msra.mxu0 %v1243
      %1332 = vmatmul.f32.gmra.mxu0 %v1245
      %v1333 = vpop.f32.mrf.mxu0
      %v1334 = vadd.f32 0.0, %v1333
      %1335 = vmatmul.f32.gmra.mxu0 %v1248
      %v1336 = vpop.f32.mrf.mxu0
      %v1337 = vadd.f32 0.0, %v1336
      %1338 = vmatmul.f32.gmra.mxu0 %v1251
      %v1339 = vpop.f32.mrf.mxu0
      %v1340 = vadd.f32 0.0, %v1339
      %1341 = vmatmul.f32.gmra.mxu0 %v1254
      %v1342 = vpop.f32.mrf.mxu0
      %v1343 = vadd.f32 0.0, %v1342
      %1344 = vmatmul.f32.gmra.mxu0 %v1257
      %v1345 = vpop.f32.mrf.mxu0
      %v1346 = vadd.f32 0.0, %v1345
      %1347 = vmatmul.f32.gmra.mxu0 %v1260
      %v1348 = vpop.f32.mrf.mxu0
      %v1349 = vadd.f32 0.0, %v1348
      %1350 = vmatmul.f32.gmra.mxu0 %v1263
      %v1351 = vpop.f32.mrf.mxu0
      %v1352 = vadd.f32 0.0, %v1351
      %1353 = vmatmul.f32.gmra.mxu0 %v1266
      %v1354 = vpop.f32.mrf.mxu0
      %v1355 = vadd.f32 0.0, %v1354
      %1356 = vmatmul.f32.gmra.mxu0 %v1269
      %v1357 = vpop.f32.mrf.mxu0
      %v1358 = vadd.f32 0.0, %v1357
      %1359 = vmatmul.f32.gmra.mxu0 %v1272
      %v1360 = vpop.f32.mrf.mxu0
      %v1361 = vadd.f32 0.0, %v1360
      %1362 = vmatmul.f32.gmra.mxu0 %v1275
      %v1363 = vpop.f32.mrf.mxu0
      %v1364 = vadd.f32 0.0, %v1363
      %1365 = vmatmul.f32.gmra.mxu0 %v1278
      %v1366 = vpop.f32.mrf.mxu0
      %v1367 = vadd.f32 0.0, %v1366
      %1368 = vmatmul.f32.gmra.mxu0 %v1281
      %v1369 = vpop.f32.mrf.mxu0
      %v1370 = vadd.f32 0.0, %v1369
      %1371 = vmatmul.f32.gmra.mxu0 %v1284
      %v1372 = vpop.f32.mrf.mxu0
      %v1373 = vadd.f32 0.0, %v1372
      %1374 = vmatmul.f32.gmra.mxu0 %v1287
      %v1375 = vpop.f32.mrf.mxu0
      %v1376 = vadd.f32 0.0, %v1375
      %1377 = vmatmul.f32.gmra.mxu0 %v1290
      %v1378 = vpop.f32.mrf.mxu0
      %v1379 = vadd.f32 0.0, %v1378
      %1380 = vmatmul.f32.gmra.mxu0 %v1293
      %v1381 = vpop.f32.mrf.mxu0
      %v1382 = vadd.f32 0.0, %v1381
      %1383 = vmatmul.f32.gmra.mxu0 %v1296
      %v1384 = vpop.f32.mrf.mxu0
      %v1385 = vadd.f32 0.0, %v1384
      %1386 = vmatmul.f32.gmra.mxu0 %v1299
      %v1387 = vpop.f32.mrf.mxu0
      %v1388 = vadd.f32 0.0, %v1387
      %1389 = vmatmul.f32.gmra.mxu0 %v1302
      %v1390 = vpop.f32.mrf.mxu0
      %v1391 = vadd.f32 0.0, %v1390
      %1392 = vmatmul.f32.gmra.mxu0 %v1305
      %v1393 = vpop.f32.mrf.mxu0
      %v1394 = vadd.f32 0.0, %v1393
      %1395 = vmatmul.f32.gmra.mxu0 %v1308
      %v1396 = vpop.f32.mrf.mxu0
      %v1397 = vadd.f32 0.0, %v1396
      %1398 = vmatmul.f32.gmra.mxu0 %v1311
      %v1399 = vpop.f32.mrf.mxu0
      %v1400 = vadd.f32 0.0, %v1399
      %1401 = vmatmul.f32.gmra.mxu0 %v1314
      %v1402 = vpop.f32.mrf.mxu0
      %v1403 = vadd.f32 0.0, %v1402
      %1404 = vdwg.mxu0
      %v1405 = vadd.f32 %v1194, %v1334
      %v1406 = vadd.f32 %v1195, %v1337
      %v1407 = vadd.f32 %v1196, %v1340
      %v1408 = vadd.f32 %v1197, %v1343
      %v1409 = vadd.f32 %v1198, %v1346
      %v1410 = vadd.f32 %v1199, %v1349
      %v1411 = vadd.f32 %v1200, %v1352
      %v1412 = vadd.f32 %v1201, %v1355
      %v1413 = vadd.f32 %v1202, %v1358
      %v1414 = vadd.f32 %v1203, %v1361
      %v1415 = vadd.f32 %v1204, %v1364
      %v1416 = vadd.f32 %v1205, %v1367
      %v1417 = vadd.f32 %v1206, %v1370
      %v1418 = vadd.f32 %v1207, %v1373
      %v1419 = vadd.f32 %v1208, %v1376
      %v1420 = vadd.f32 %v1209, %v1379
      %v1421 = vadd.f32 %v1210, %v1382
      %v1422 = vadd.f32 %v1211, %v1385
      %v1423 = vadd.f32 %v1212, %v1388
      %v1424 = vadd.f32 %v1213, %v1391
      %v1425 = vadd.f32 %v1214, %v1394
      %v1426 = vadd.f32 %v1215, %v1397
      %v1427 = vadd.f32 %v1216, %v1400
      %v1428 = vadd.f32 %v1217, %v1403
      %v1429 = vld [vmem:[#allocation2 + $0x12] sm:$0xff]
      %v1430 = vld [vmem:[#allocation2 + $0x1a] sm:$0xff]
      %v1431 = vld [vmem:[#allocation2 + $0x22] sm:$0xff]
      %v1432 = vld [vmem:[#allocation2 + $0x2a] sm:$0xff]
      %v1433 = vld [vmem:[#allocation2 + $0x32] sm:$0xff]
      %v1434 = vld [vmem:[#allocation2 + $0x3a] sm:$0xff]
      %v1435 = vld [vmem:[#allocation2 + $0x42] sm:$0xff]
      %v1436 = vld [vmem:[#allocation2 + $0x4a] sm:$0xff]
      %v1437 = vld [vmem:[#allocation2 + $0x52] sm:$0xff]
      %v1438 = vld [vmem:[#allocation2 + $0x5a] sm:$0xff]
      %v1439 = vld [vmem:[#allocation2 + $0x62] sm:$0xff]
      %v1440 = vld [vmem:[#allocation2 + $0x6a] sm:$0xff]
      %v1441 = vld [vmem:[#allocation2 + $0x72] sm:$0xff]
      %v1442 = vld [vmem:[#allocation2 + $0x7a] sm:$0xff]
      %v1443 = vld [vmem:[#allocation2 + $0x82] sm:$0xff]
      %v1444 = vld [vmem:[#allocation2 + $0x8a] sm:$0xff]
      %v1445 = vld [vmem:[#allocation2 + $0x92] sm:$0xff]
      %v1446 = vld [vmem:[#allocation2 + $0x9a] sm:$0xff]
      %v1447 = vld [vmem:[#allocation2 + $0xa2] sm:$0xff]
      %v1448 = vld [vmem:[#allocation2 + $0xaa] sm:$0xff]
      %v1449 = vld [vmem:[#allocation2 + $0xb2] sm:$0xff]
      %v1450 = vld [vmem:[#allocation2 + $0xba] sm:$0xff]
      %v1451 = vld [vmem:[#allocation2 + $0xc2] sm:$0xff]
      %v1452 = vld [vmem:[#allocation2 + $0xca] sm:$0xff]
      %s1453 = scalar_lea.vmem %s3, 40
      %v1454 = vld [vmem:[%s1453] sm:$0xff]
      %v1456 = vsel %vm393, %v1429, 0
      %v1459 = vsel %vm393, %v1430, 0
      %v1462 = vsel %vm393, %v1431, 0
      %v1465 = vsel %vm393, %v1432, 0
      %v1468 = vsel %vm393, %v1433, 0
      %v1471 = vsel %vm393, %v1434, 0
      %v1474 = vsel %vm393, %v1435, 0
      %v1477 = vsel %vm393, %v1436, 0
      %v1480 = vsel %vm393, %v1437, 0
      %v1483 = vsel %vm393, %v1438, 0
      %v1486 = vsel %vm393, %v1439, 0
      %v1489 = vsel %vm393, %v1440, 0
      %v1492 = vsel %vm393, %v1441, 0
      %v1495 = vsel %vm393, %v1442, 0
      %v1498 = vsel %vm393, %v1443, 0
      %v1501 = vsel %vm393, %v1444, 0
      %v1504 = vsel %vm393, %v1445, 0
      %v1507 = vsel %vm393, %v1446, 0
      %v1510 = vsel %vm393, %v1447, 0
      %v1513 = vsel %vm393, %v1448, 0
      %v1516 = vsel %vm393, %v1449, 0
      %v1519 = vsel %vm393, %v1450, 0
      %v1522 = vsel %vm393, %v1451, 0
      %v1525 = vsel %vm393, %v1452, 0
      %1527 = vmatpush.msra.mxu0 0.0
      %1528 = vmatpush.msra.mxu0 0.0
      %1529 = vmatpush.msra.mxu0 0.0
      %1530 = vmatpush.msra.mxu0 0.0
      %1531 = vmatpush.msra.mxu0 0.0
      %1532 = vmatpush.msra.mxu0 0.0
      %1533 = vmatpush.msra.mxu0 0.0
      %1534 = vmatpush.msra.mxu0 0.0
      %1535 = vmatpush.msra.mxu0 0.0
      %1536 = vmatpush.msra.mxu0 0.0
      %1537 = vmatpush.msra.mxu0 0.0
      %1538 = vmatpush.msra.mxu0 0.0
      %1539 = vmatpush.msra.mxu0 0.0
      %1540 = vmatpush.msra.mxu0 0.0
      %1541 = vmatpush.msra.mxu0 0.0
      %1542 = vmatpush.msra.mxu0 %v1454
      %1543 = vmatmul.f32.gmra.mxu0 %v1456
      %v1544 = vpop.f32.mrf.mxu0
      %v1545 = vadd.f32 0.0, %v1544
      %1546 = vmatmul.f32.gmra.mxu0 %v1459
      %v1547 = vpop.f32.mrf.mxu0
      %v1548 = vadd.f32 0.0, %v1547
      %1549 = vmatmul.f32.gmra.mxu0 %v1462
      %v1550 = vpop.f32.mrf.mxu0
      %v1551 = vadd.f32 0.0, %v1550
      %1552 = vmatmul.f32.gmra.mxu0 %v1465
      %v1553 = vpop.f32.mrf.mxu0
      %v1554 = vadd.f32 0.0, %v1553
      %1555 = vmatmul.f32.gmra.mxu0 %v1468
      %v1556 = vpop.f32.mrf.mxu0
      %v1557 = vadd.f32 0.0, %v1556
      %1558 = vmatmul.f32.gmra.mxu0 %v1471
      %v1559 = vpop.f32.mrf.mxu0
      %v1560 = vadd.f32 0.0, %v1559
      %1561 = vmatmul.f32.gmra.mxu0 %v1474
      %v1562 = vpop.f32.mrf.mxu0
      %v1563 = vadd.f32 0.0, %v1562
      %1564 = vmatmul.f32.gmra.mxu0 %v1477
      %v1565 = vpop.f32.mrf.mxu0
      %v1566 = vadd.f32 0.0, %v1565
      %1567 = vmatmul.f32.gmra.mxu0 %v1480
      %v1568 = vpop.f32.mrf.mxu0
      %v1569 = vadd.f32 0.0, %v1568
      %1570 = vmatmul.f32.gmra.mxu0 %v1483
      %v1571 = vpop.f32.mrf.mxu0
      %v1572 = vadd.f32 0.0, %v1571
      %1573 = vmatmul.f32.gmra.mxu0 %v1486
      %v1574 = vpop.f32.mrf.mxu0
      %v1575 = vadd.f32 0.0, %v1574
      %1576 = vmatmul.f32.gmra.mxu0 %v1489
      %v1577 = vpop.f32.mrf.mxu0
      %v1578 = vadd.f32 0.0, %v1577
      %1579 = vmatmul.f32.gmra.mxu0 %v1492
      %v1580 = vpop.f32.mrf.mxu0
      %v1581 = vadd.f32 0.0, %v1580
      %1582 = vmatmul.f32.gmra.mxu0 %v1495
      %v1583 = vpop.f32.mrf.mxu0
      %v1584 = vadd.f32 0.0, %v1583
      %1585 = vmatmul.f32.gmra.mxu0 %v1498
      %v1586 = vpop.f32.mrf.mxu0
      %v1587 = vadd.f32 0.0, %v1586
      %1588 = vmatmul.f32.gmra.mxu0 %v1501
      %v1589 = vpop.f32.mrf.mxu0
      %v1590 = vadd.f32 0.0, %v1589
      %1591 = vmatmul.f32.gmra.mxu0 %v1504
      %v1592 = vpop.f32.mrf.mxu0
      %v1593 = vadd.f32 0.0, %v1592
      %1594 = vmatmul.f32.gmra.mxu0 %v1507
      %v1595 = vpop.f32.mrf.mxu0
      %v1596 = vadd.f32 0.0, %v1595
      %1597 = vmatmul.f32.gmra.mxu0 %v1510
      %v1598 = vpop.f32.mrf.mxu0
      %v1599 = vadd.f32 0.0, %v1598
      %1600 = vmatmul.f32.gmra.mxu0 %v1513
      %v1601 = vpop.f32.mrf.mxu0
      %v1602 = vadd.f32 0.0, %v1601
      %1603 = vmatmul.f32.gmra.mxu0 %v1516
      %v1604 = vpop.f32.mrf.mxu0
      %v1605 = vadd.f32 0.0, %v1604
      %1606 = vmatmul.f32.gmra.mxu0 %v1519
      %v1607 = vpop.f32.mrf.mxu0
      %v1608 = vadd.f32 0.0, %v1607
      %1609 = vmatmul.f32.gmra.mxu0 %v1522
      %v1610 = vpop.f32.mrf.mxu0
      %v1611 = vadd.f32 0.0, %v1610
      %1612 = vmatmul.f32.gmra.mxu0 %v1525
      %v1613 = vpop.f32.mrf.mxu0
      %v1614 = vadd.f32 0.0, %v1613
      %1615 = vdwg.mxu0
      %v1616 = vadd.f32 %v1405, %v1545
      %v1617 = vadd.f32 %v1406, %v1548
      %v1618 = vadd.f32 %v1407, %v1551
      %v1619 = vadd.f32 %v1408, %v1554
      %v1620 = vadd.f32 %v1409, %v1557
      %v1621 = vadd.f32 %v1410, %v1560
      %v1622 = vadd.f32 %v1411, %v1563
      %v1623 = vadd.f32 %v1412, %v1566
      %v1624 = vadd.f32 %v1413, %v1569
      %v1625 = vadd.f32 %v1414, %v1572
      %v1626 = vadd.f32 %v1415, %v1575
      %v1627 = vadd.f32 %v1416, %v1578
      %v1628 = vadd.f32 %v1417, %v1581
      %v1629 = vadd.f32 %v1418, %v1584
      %v1630 = vadd.f32 %v1419, %v1587
      %v1631 = vadd.f32 %v1420, %v1590
      %v1632 = vadd.f32 %v1421, %v1593
      %v1633 = vadd.f32 %v1422, %v1596
      %v1634 = vadd.f32 %v1423, %v1599
      %v1635 = vadd.f32 %v1424, %v1602
      %v1636 = vadd.f32 %v1425, %v1605
      %v1637 = vadd.f32 %v1426, %v1608
      %v1638 = vadd.f32 %v1427, %v1611
      %v1639 = vadd.f32 %v1428, %v1614
      %v1640 = vld [vmem:[#allocation2 + $0x20] sm:$0xff]
      %v1641 = vld [vmem:[#allocation2 + $0x28] sm:$0xff]
      %v1642 = vld [vmem:[#allocation2 + $0x30] sm:$0xff]
      %v1643 = vld [vmem:[#allocation2 + $0x38] sm:$0xff]
      %v1644 = vld [vmem:[#allocation2 + $0x40] sm:$0xff]
      %v1645 = vld [vmem:[#allocation2 + $0x48] sm:$0xff]
      %v1646 = vld [vmem:[#allocation2 + $0x50] sm:$0xff]
      %v1647 = vld [vmem:[#allocation2 + $0x58] sm:$0xff]
      %v1648 = vld [vmem:[#allocation2 + $0x60] sm:$0xff]
      %v1649 = vld [vmem:[#allocation2 + $0x68] sm:$0xff]
      %v1650 = vld [vmem:[#allocation2 + $0x70] sm:$0xff]
      %v1651 = vld [vmem:[#allocation2 + $0x78] sm:$0xff]
      %v1652 = vld [vmem:[#allocation2 + $0x80] sm:$0xff]
      %v1653 = vld [vmem:[#allocation2 + $0x88] sm:$0xff]
      %v1654 = vld [vmem:[#allocation2 + $0x90] sm:$0xff]
      %v1655 = vld [vmem:[#allocation2 + $0x98] sm:$0xff]
      %v1656 = vld [vmem:[#allocation2 + $0xa0] sm:$0xff]
      %v1657 = vld [vmem:[#allocation2 + $0xa8] sm:$0xff]
      %v1658 = vld [vmem:[#allocation2 + $0xb0] sm:$0xff]
      %v1659 = vld [vmem:[#allocation2 + $0xb8] sm:$0xff]
      %v1660 = vld [vmem:[#allocation2 + $0xc0] sm:$0xff]
      %v1661 = vld [vmem:[#allocation2 + $0xc8] sm:$0xff]
      %v1662 = vld [vmem:[#allocation2 + $0xd0] sm:$0xff]
      %v1663 = vld [vmem:[#allocation2 + $0xd8] sm:$0xff]
      %s1664 = scalar_lea.vmem %s3, 48
      %v1665 = vld [vmem:[%s1664] sm:$0xff]
      %v1667 = vsel %vm393, %v1640, 0
      %v1670 = vsel %vm393, %v1641, 0
      %v1673 = vsel %vm393, %v1642, 0
      %v1676 = vsel %vm393, %v1643, 0
      %v1679 = vsel %vm393, %v1644, 0
      %v1682 = vsel %vm393, %v1645, 0
      %v1685 = vsel %vm393, %v1646, 0
      %v1688 = vsel %vm393, %v1647, 0
      %v1691 = vsel %vm393, %v1648, 0
      %v1694 = vsel %vm393, %v1649, 0
      %v1697 = vsel %vm393, %v1650, 0
      %v1700 = vsel %vm393, %v1651, 0
      %v1703 = vsel %vm393, %v1652, 0
      %v1706 = vsel %vm393, %v1653, 0
      %v1709 = vsel %vm393, %v1654, 0
      %v1712 = vsel %vm393, %v1655, 0
      %v1715 = vsel %vm393, %v1656, 0
      %v1718 = vsel %vm393, %v1657, 0
      %v1721 = vsel %vm393, %v1658, 0
      %v1724 = vsel %vm393, %v1659, 0
      %v1727 = vsel %vm393, %v1660, 0
      %v1730 = vsel %vm393, %v1661, 0
      %v1733 = vsel %vm393, %v1662, 0
      %v1736 = vsel %vm393, %v1663, 0
      %1738 = vmatpush.msra.mxu0 0.0
      %1739 = vmatpush.msra.mxu0 0.0
      %1740 = vmatpush.msra.mxu0 0.0
      %1741 = vmatpush.msra.mxu0 0.0
      %1742 = vmatpush.msra.mxu0 0.0
      %1743 = vmatpush.msra.mxu0 0.0
      %1744 = vmatpush.msra.mxu0 0.0
      %1745 = vmatpush.msra.mxu0 0.0
      %1746 = vmatpush.msra.mxu0 0.0
      %1747 = vmatpush.msra.mxu0 0.0
      %1748 = vmatpush.msra.mxu0 0.0
      %1749 = vmatpush.msra.mxu0 0.0
      %1750 = vmatpush.msra.mxu0 0.0
      %1751 = vmatpush.msra.mxu0 0.0
      %1752 = vmatpush.msra.mxu0 0.0
      %1753 = vmatpush.msra.mxu0 %v1665
      %1754 = vmatmul.f32.gmra.mxu0 %v1667
      %v1755 = vpop.f32.mrf.mxu0
      %v1756 = vadd.f32 0.0, %v1755
      %1757 = vmatmul.f32.gmra.mxu0 %v1670
      %v1758 = vpop.f32.mrf.mxu0
      %v1759 = vadd.f32 0.0, %v1758
      %1760 = vmatmul.f32.gmra.mxu0 %v1673
      %v1761 = vpop.f32.mrf.mxu0
      %v1762 = vadd.f32 0.0, %v1761
      %1763 = vmatmul.f32.gmra.mxu0 %v1676
      %v1764 = vpop.f32.mrf.mxu0
      %v1765 = vadd.f32 0.0, %v1764
      %1766 = vmatmul.f32.gmra.mxu0 %v1679
      %v1767 = vpop.f32.mrf.mxu0
      %v1768 = vadd.f32 0.0, %v1767
      %1769 = vmatmul.f32.gmra.mxu0 %v1682
      %v1770 = vpop.f32.mrf.mxu0
      %v1771 = vadd.f32 0.0, %v1770
      %1772 = vmatmul.f32.gmra.mxu0 %v1685
      %v1773 = vpop.f32.mrf.mxu0
      %v1774 = vadd.f32 0.0, %v1773
      %1775 = vmatmul.f32.gmra.mxu0 %v1688
      %v1776 = vpop.f32.mrf.mxu0
      %v1777 = vadd.f32 0.0, %v1776
      %1778 = vmatmul.f32.gmra.mxu0 %v1691
      %v1779 = vpop.f32.mrf.mxu0
      %v1780 = vadd.f32 0.0, %v1779
      %1781 = vmatmul.f32.gmra.mxu0 %v1694
      %v1782 = vpop.f32.mrf.mxu0
      %v1783 = vadd.f32 0.0, %v1782
      %1784 = vmatmul.f32.gmra.mxu0 %v1697
      %v1785 = vpop.f32.mrf.mxu0
      %v1786 = vadd.f32 0.0, %v1785
      %1787 = vmatmul.f32.gmra.mxu0 %v1700
      %v1788 = vpop.f32.mrf.mxu0
      %v1789 = vadd.f32 0.0, %v1788
      %1790 = vmatmul.f32.gmra.mxu0 %v1703
      %v1791 = vpop.f32.mrf.mxu0
      %v1792 = vadd.f32 0.0, %v1791
      %1793 = vmatmul.f32.gmra.mxu0 %v1706
      %v1794 = vpop.f32.mrf.mxu0
      %v1795 = vadd.f32 0.0, %v1794
      %1796 = vmatmul.f32.gmra.mxu0 %v1709
      %v1797 = vpop.f32.mrf.mxu0
      %v1798 = vadd.f32 0.0, %v1797
      %1799 = vmatmul.f32.gmra.mxu0 %v1712
      %v1800 = vpop.f32.mrf.mxu0
      %v1801 = vadd.f32 0.0, %v1800
      %1802 = vmatmul.f32.gmra.mxu0 %v1715
      %v1803 = vpop.f32.mrf.mxu0
      %v1804 = vadd.f32 0.0, %v1803
      %1805 = vmatmul.f32.gmra.mxu0 %v1718
      %v1806 = vpop.f32.mrf.mxu0
      %v1807 = vadd.f32 0.0, %v1806
      %1808 = vmatmul.f32.gmra.mxu0 %v1721
      %v1809 = vpop.f32.mrf.mxu0
      %v1810 = vadd.f32 0.0, %v1809
      %1811 = vmatmul.f32.gmra.mxu0 %v1724
      %v1812 = vpop.f32.mrf.mxu0
      %v1813 = vadd.f32 0.0, %v1812
      %1814 = vmatmul.f32.gmra.mxu0 %v1727
      %v1815 = vpop.f32.mrf.mxu0
      %v1816 = vadd.f32 0.0, %v1815
      %1817 = vmatmul.f32.gmra.mxu0 %v1730
      %v1818 = vpop.f32.mrf.mxu0
      %v1819 = vadd.f32 0.0, %v1818
      %1820 = vmatmul.f32.gmra.mxu0 %v1733
      %v1821 = vpop.f32.mrf.mxu0
      %v1822 = vadd.f32 0.0, %v1821
      %1823 = vmatmul.f32.gmra.mxu0 %v1736
      %v1824 = vpop.f32.mrf.mxu0
      %v1825 = vadd.f32 0.0, %v1824
      %1826 = vdwg.mxu0
      %v1827 = vadd.f32 %v1616, %v1756
      %v1828 = vadd.f32 %v1617, %v1759
      %v1829 = vadd.f32 %v1618, %v1762
      %v1830 = vadd.f32 %v1619, %v1765
      %v1831 = vadd.f32 %v1620, %v1768
      %v1832 = vadd.f32 %v1621, %v1771
      %v1833 = vadd.f32 %v1622, %v1774
      %v1834 = vadd.f32 %v1623, %v1777
      %v1835 = vadd.f32 %v1624, %v1780
      %v1836 = vadd.f32 %v1625, %v1783
      %v1837 = vadd.f32 %v1626, %v1786
      %v1838 = vadd.f32 %v1627, %v1789
      %v1839 = vadd.f32 %v1628, %v1792
      %v1840 = vadd.f32 %v1629, %v1795
      %v1841 = vadd.f32 %v1630, %v1798
      %v1842 = vadd.f32 %v1631, %v1801
      %v1843 = vadd.f32 %v1632, %v1804
      %v1844 = vadd.f32 %v1633, %v1807
      %v1845 = vadd.f32 %v1634, %v1810
      %v1846 = vadd.f32 %v1635, %v1813
      %v1847 = vadd.f32 %v1636, %v1816
      %v1848 = vadd.f32 %v1637, %v1819
      %v1849 = vadd.f32 %v1638, %v1822
      %v1850 = vadd.f32 %v1639, %v1825
      %v1851 = vld [vmem:[#allocation2 + $0x21] sm:$0xff]
      %v1852 = vld [vmem:[#allocation2 + $0x29] sm:$0xff]
      %v1853 = vld [vmem:[#allocation2 + $0x31] sm:$0xff]
      %v1854 = vld [vmem:[#allocation2 + $0x39] sm:$0xff]
      %v1855 = vld [vmem:[#allocation2 + $0x41] sm:$0xff]
      %v1856 = vld [vmem:[#allocation2 + $0x49] sm:$0xff]
      %v1857 = vld [vmem:[#allocation2 + $0x51] sm:$0xff]
      %v1858 = vld [vmem:[#allocation2 + $0x59] sm:$0xff]
      %v1859 = vld [vmem:[#allocation2 + $0x61] sm:$0xff]
      %v1860 = vld [vmem:[#allocation2 + $0x69] sm:$0xff]
      %v1861 = vld [vmem:[#allocation2 + $0x71] sm:$0xff]
      %v1862 = vld [vmem:[#allocation2 + $0x79] sm:$0xff]
      %v1863 = vld [vmem:[#allocation2 + $0x81] sm:$0xff]
      %v1864 = vld [vmem:[#allocation2 + $0x89] sm:$0xff]
      %v1865 = vld [vmem:[#allocation2 + $0x91] sm:$0xff]
      %v1866 = vld [vmem:[#allocation2 + $0x99] sm:$0xff]
      %v1867 = vld [vmem:[#allocation2 + $0xa1] sm:$0xff]
      %v1868 = vld [vmem:[#allocation2 + $0xa9] sm:$0xff]
      %v1869 = vld [vmem:[#allocation2 + $0xb1] sm:$0xff]
      %v1870 = vld [vmem:[#allocation2 + $0xb9] sm:$0xff]
      %v1871 = vld [vmem:[#allocation2 + $0xc1] sm:$0xff]
      %v1872 = vld [vmem:[#allocation2 + $0xc9] sm:$0xff]
      %v1873 = vld [vmem:[#allocation2 + $0xd1] sm:$0xff]
      %v1874 = vld [vmem:[#allocation2 + $0xd9] sm:$0xff]
      %s1875 = scalar_lea.vmem %s3, 56
      %v1876 = vld [vmem:[%s1875] sm:$0xff]
      %v1878 = vsel %vm393, %v1851, 0
      %v1881 = vsel %vm393, %v1852, 0
      %v1884 = vsel %vm393, %v1853, 0
      %v1887 = vsel %vm393, %v1854, 0
      %v1890 = vsel %vm393, %v1855, 0
      %v1893 = vsel %vm393, %v1856, 0
      %v1896 = vsel %vm393, %v1857, 0
      %v1899 = vsel %vm393, %v1858, 0
      %v1902 = vsel %vm393, %v1859, 0
      %v1905 = vsel %vm393, %v1860, 0
      %v1908 = vsel %vm393, %v1861, 0
      %v1911 = vsel %vm393, %v1862, 0
      %v1914 = vsel %vm393, %v1863, 0
      %v1917 = vsel %vm393, %v1864, 0
      %v1920 = vsel %vm393, %v1865, 0
      %v1923 = vsel %vm393, %v1866, 0
      %v1926 = vsel %vm393, %v1867, 0
      %v1929 = vsel %vm393, %v1868, 0
      %v1932 = vsel %vm393, %v1869, 0
      %v1935 = vsel %vm393, %v1870, 0
      %v1938 = vsel %vm393, %v1871, 0
      %v1941 = vsel %vm393, %v1872, 0
      %v1944 = vsel %vm393, %v1873, 0
      %v1947 = vsel %vm393, %v1874, 0
      %1949 = vmatpush.msra.mxu0 0.0
      %1950 = vmatpush.msra.mxu0 0.0
      %1951 = vmatpush.msra.mxu0 0.0
      %1952 = vmatpush.msra.mxu0 0.0
      %1953 = vmatpush.msra.mxu0 0.0
      %1954 = vmatpush.msra.mxu0 0.0
      %1955 = vmatpush.msra.mxu0 0.0
      %1956 = vmatpush.msra.mxu0 0.0
      %1957 = vmatpush.msra.mxu0 0.0
      %1958 = vmatpush.msra.mxu0 0.0
      %1959 = vmatpush.msra.mxu0 0.0
      %1960 = vmatpush.msra.mxu0 0.0
      %1961 = vmatpush.msra.mxu0 0.0
      %1962 = vmatpush.msra.mxu0 0.0
      %1963 = vmatpush.msra.mxu0 0.0
      %1964 = vmatpush.msra.mxu0 %v1876
      %1965 = vmatmul.f32.gmra.mxu0 %v1878
      %v1966 = vpop.f32.mrf.mxu0
      %v1967 = vadd.f32 0.0, %v1966
      %1968 = vmatmul.f32.gmra.mxu0 %v1881
      %v1969 = vpop.f32.mrf.mxu0
      %v1970 = vadd.f32 0.0, %v1969
      %1971 = vmatmul.f32.gmra.mxu0 %v1884
      %v1972 = vpop.f32.mrf.mxu0
      %v1973 = vadd.f32 0.0, %v1972
      %1974 = vmatmul.f32.gmra.mxu0 %v1887
      %v1975 = vpop.f32.mrf.mxu0
      %v1976 = vadd.f32 0.0, %v1975
      %1977 = vmatmul.f32.gmra.mxu0 %v1890
      %v1978 = vpop.f32.mrf.mxu0
      %v1979 = vadd.f32 0.0, %v1978
      %1980 = vmatmul.f32.gmra.mxu0 %v1893
      %v1981 = vpop.f32.mrf.mxu0
      %v1982 = vadd.f32 0.0, %v1981
      %1983 = vmatmul.f32.gmra.mxu0 %v1896
      %v1984 = vpop.f32.mrf.mxu0
      %v1985 = vadd.f32 0.0, %v1984
      %1986 = vmatmul.f32.gmra.mxu0 %v1899
      %v1987 = vpop.f32.mrf.mxu0
      %v1988 = vadd.f32 0.0, %v1987
      %1989 = vmatmul.f32.gmra.mxu0 %v1902
      %v1990 = vpop.f32.mrf.mxu0
      %v1991 = vadd.f32 0.0, %v1990
      %1992 = vmatmul.f32.gmra.mxu0 %v1905
      %v1993 = vpop.f32.mrf.mxu0
      %v1994 = vadd.f32 0.0, %v1993
      %1995 = vmatmul.f32.gmra.mxu0 %v1908
      %v1996 = vpop.f32.mrf.mxu0
      %v1997 = vadd.f32 0.0, %v1996
      %1998 = vmatmul.f32.gmra.mxu0 %v1911
      %v1999 = vpop.f32.mrf.mxu0
      %v2000 = vadd.f32 0.0, %v1999
      %2001 = vmatmul.f32.gmra.mxu0 %v1914
      %v2002 = vpop.f32.mrf.mxu0
      %v2003 = vadd.f32 0.0, %v2002
      %2004 = vmatmul.f32.gmra.mxu0 %v1917
      %v2005 = vpop.f32.mrf.mxu0
      %v2006 = vadd.f32 0.0, %v2005
      %2007 = vmatmul.f32.gmra.mxu0 %v1920
      %v2008 = vpop.f32.mrf.mxu0
      %v2009 = vadd.f32 0.0, %v2008
      %2010 = vmatmul.f32.gmra.mxu0 %v1923
      %v2011 = vpop.f32.mrf.mxu0
      %v2012 = vadd.f32 0.0, %v2011
      %2013 = vmatmul.f32.gmra.mxu0 %v1926
      %v2014 = vpop.f32.mrf.mxu0
      %v2015 = vadd.f32 0.0, %v2014
      %2016 = vmatmul.f32.gmra.mxu0 %v1929
      %v2017 = vpop.f32.mrf.mxu0
      %v2018 = vadd.f32 0.0, %v2017
      %2019 = vmatmul.f32.gmra.mxu0 %v1932
      %v2020 = vpop.f32.mrf.mxu0
      %v2021 = vadd.f32 0.0, %v2020
      %2022 = vmatmul.f32.gmra.mxu0 %v1935
      %v2023 = vpop.f32.mrf.mxu0
      %v2024 = vadd.f32 0.0, %v2023
      %2025 = vmatmul.f32.gmra.mxu0 %v1938
      %v2026 = vpop.f32.mrf.mxu0
      %v2027 = vadd.f32 0.0, %v2026
      %2028 = vmatmul.f32.gmra.mxu0 %v1941
      %v2029 = vpop.f32.mrf.mxu0
      %v2030 = vadd.f32 0.0, %v2029
      %2031 = vmatmul.f32.gmra.mxu0 %v1944
      %v2032 = vpop.f32.mrf.mxu0
      %v2033 = vadd.f32 0.0, %v2032
      %2034 = vmatmul.f32.gmra.mxu0 %v1947
      %v2035 = vpop.f32.mrf.mxu0
      %v2036 = vadd.f32 0.0, %v2035
      %2037 = vdwg.mxu0
      %v2038 = vadd.f32 %v1827, %v1967
      %v2039 = vadd.f32 %v1828, %v1970
      %v2040 = vadd.f32 %v1829, %v1973
      %v2041 = vadd.f32 %v1830, %v1976
      %v2042 = vadd.f32 %v1831, %v1979
      %v2043 = vadd.f32 %v1832, %v1982
      %v2044 = vadd.f32 %v1833, %v1985
      %v2045 = vadd.f32 %v1834, %v1988
      %v2046 = vadd.f32 %v1835, %v1991
      %v2047 = vadd.f32 %v1836, %v1994
      %v2048 = vadd.f32 %v1837, %v1997
      %v2049 = vadd.f32 %v1838, %v2000
      %v2050 = vadd.f32 %v1839, %v2003
      %v2051 = vadd.f32 %v1840, %v2006
      %v2052 = vadd.f32 %v1841, %v2009
      %v2053 = vadd.f32 %v1842, %v2012
      %v2054 = vadd.f32 %v1843, %v2015
      %v2055 = vadd.f32 %v1844, %v2018
      %v2056 = vadd.f32 %v1845, %v2021
      %v2057 = vadd.f32 %v1846, %v2024
      %v2058 = vadd.f32 %v1847, %v2027
      %v2059 = vadd.f32 %v1848, %v2030
      %v2060 = vadd.f32 %v1849, %v2033
      %v2061 = vadd.f32 %v1850, %v2036
      %v2062 = vld [vmem:[#allocation2 + $0x22] sm:$0xff]
      %v2063 = vld [vmem:[#allocation2 + $0x2a] sm:$0xff]
      %v2064 = vld [vmem:[#allocation2 + $0x32] sm:$0xff]
      %v2065 = vld [vmem:[#allocation2 + $0x3a] sm:$0xff]
      %v2066 = vld [vmem:[#allocation2 + $0x42] sm:$0xff]
      %v2067 = vld [vmem:[#allocation2 + $0x4a] sm:$0xff]
      %v2068 = vld [vmem:[#allocation2 + $0x52] sm:$0xff]
      %v2069 = vld [vmem:[#allocation2 + $0x5a] sm:$0xff]
      %v2070 = vld [vmem:[#allocation2 + $0x62] sm:$0xff]
      %v2071 = vld [vmem:[#allocation2 + $0x6a] sm:$0xff]
      %v2072 = vld [vmem:[#allocation2 + $0x72] sm:$0xff]
      %v2073 = vld [vmem:[#allocation2 + $0x7a] sm:$0xff]
      %v2074 = vld [vmem:[#allocation2 + $0x82] sm:$0xff]
      %v2075 = vld [vmem:[#allocation2 + $0x8a] sm:$0xff]
      %v2076 = vld [vmem:[#allocation2 + $0x92] sm:$0xff]
      %v2077 = vld [vmem:[#allocation2 + $0x9a] sm:$0xff]
      %v2078 = vld [vmem:[#allocation2 + $0xa2] sm:$0xff]
      %v2079 = vld [vmem:[#allocation2 + $0xaa] sm:$0xff]
      %v2080 = vld [vmem:[#allocation2 + $0xb2] sm:$0xff]
      %v2081 = vld [vmem:[#allocation2 + $0xba] sm:$0xff]
      %v2082 = vld [vmem:[#allocation2 + $0xc2] sm:$0xff]
      %v2083 = vld [vmem:[#allocation2 + $0xca] sm:$0xff]
      %v2084 = vld [vmem:[#allocation2 + $0xd2] sm:$0xff]
      %v2085 = vld [vmem:[#allocation2 + $0xda] sm:$0xff]
      %s2086 = scalar_lea.vmem %s3, 64
      %v2087 = vld [vmem:[%s2086] sm:$0xff]
      %v2089 = vsel %vm393, %v2062, 0
      %v2092 = vsel %vm393, %v2063, 0
      %v2095 = vsel %vm393, %v2064, 0
      %v2098 = vsel %vm393, %v2065, 0
      %v2101 = vsel %vm393, %v2066, 0
      %v2104 = vsel %vm393, %v2067, 0
      %v2107 = vsel %vm393, %v2068, 0
      %v2110 = vsel %vm393, %v2069, 0
      %v2113 = vsel %vm393, %v2070, 0
      %v2116 = vsel %vm393, %v2071, 0
      %v2119 = vsel %vm393, %v2072, 0
      %v2122 = vsel %vm393, %v2073, 0
      %v2125 = vsel %vm393, %v2074, 0
      %v2128 = vsel %vm393, %v2075, 0
      %v2131 = vsel %vm393, %v2076, 0
      %v2134 = vsel %vm393, %v2077, 0
      %v2137 = vsel %vm393, %v2078, 0
      %v2140 = vsel %vm393, %v2079, 0
      %v2143 = vsel %vm393, %v2080, 0
      %v2146 = vsel %vm393, %v2081, 0
      %v2149 = vsel %vm393, %v2082, 0
      %v2152 = vsel %vm393, %v2083, 0
      %v2155 = vsel %vm393, %v2084, 0
      %v2158 = vsel %vm393, %v2085, 0
      %2160 = vmatpush.msra.mxu0 0.0
      %2161 = vmatpush.msra.mxu0 0.0
      %2162 = vmatpush.msra.mxu0 0.0
      %2163 = vmatpush.msra.mxu0 0.0
      %2164 = vmatpush.msra.mxu0 0.0
      %2165 = vmatpush.msra.mxu0 0.0
      %2166 = vmatpush.msra.mxu0 0.0
      %2167 = vmatpush.msra.mxu0 0.0
      %2168 = vmatpush.msra.mxu0 0.0
      %2169 = vmatpush.msra.mxu0 0.0
      %2170 = vmatpush.msra.mxu0 0.0
      %2171 = vmatpush.msra.mxu0 0.0
      %2172 = vmatpush.msra.mxu0 0.0
      %2173 = vmatpush.msra.mxu0 0.0
      %2174 = vmatpush.msra.mxu0 0.0
      %2175 = vmatpush.msra.mxu0 %v2087
      %2176 = vmatmul.f32.gmra.mxu0 %v2089
      %v2177 = vpop.f32.mrf.mxu0
      %v2178 = vadd.f32 0.0, %v2177
      %2179 = vmatmul.f32.gmra.mxu0 %v2092
      %v2180 = vpop.f32.mrf.mxu0
      %v2181 = vadd.f32 0.0, %v2180
      %2182 = vmatmul.f32.gmra.mxu0 %v2095
      %v2183 = vpop.f32.mrf.mxu0
      %v2184 = vadd.f32 0.0, %v2183
      %2185 = vmatmul.f32.gmra.mxu0 %v2098
      %v2186 = vpop.f32.mrf.mxu0
      %v2187 = vadd.f32 0.0, %v2186
      %2188 = vmatmul.f32.gmra.mxu0 %v2101
      %v2189 = vpop.f32.mrf.mxu0
      %v2190 = vadd.f32 0.0, %v2189
      %2191 = vmatmul.f32.gmra.mxu0 %v2104
      %v2192 = vpop.f32.mrf.mxu0
      %v2193 = vadd.f32 0.0, %v2192
      %2194 = vmatmul.f32.gmra.mxu0 %v2107
      %v2195 = vpop.f32.mrf.mxu0
      %v2196 = vadd.f32 0.0, %v2195
      %2197 = vmatmul.f32.gmra.mxu0 %v2110
      %v2198 = vpop.f32.mrf.mxu0
      %v2199 = vadd.f32 0.0, %v2198
      %2200 = vmatmul.f32.gmra.mxu0 %v2113
      %v2201 = vpop.f32.mrf.mxu0
      %v2202 = vadd.f32 0.0, %v2201
      %2203 = vmatmul.f32.gmra.mxu0 %v2116
      %v2204 = vpop.f32.mrf.mxu0
      %v2205 = vadd.f32 0.0, %v2204
      %2206 = vmatmul.f32.gmra.mxu0 %v2119
      %v2207 = vpop.f32.mrf.mxu0
      %v2208 = vadd.f32 0.0, %v2207
      %2209 = vmatmul.f32.gmra.mxu0 %v2122
      %v2210 = vpop.f32.mrf.mxu0
      %v2211 = vadd.f32 0.0, %v2210
      %2212 = vmatmul.f32.gmra.mxu0 %v2125
      %v2213 = vpop.f32.mrf.mxu0
      %v2214 = vadd.f32 0.0, %v2213
      %2215 = vmatmul.f32.gmra.mxu0 %v2128
      %v2216 = vpop.f32.mrf.mxu0
      %v2217 = vadd.f32 0.0, %v2216
      %2218 = vmatmul.f32.gmra.mxu0 %v2131
      %v2219 = vpop.f32.mrf.mxu0
      %v2220 = vadd.f32 0.0, %v2219
      %2221 = vmatmul.f32.gmra.mxu0 %v2134
      %v2222 = vpop.f32.mrf.mxu0
      %v2223 = vadd.f32 0.0, %v2222
      %2224 = vmatmul.f32.gmra.mxu0 %v2137
      %v2225 = vpop.f32.mrf.mxu0
      %v2226 = vadd.f32 0.0, %v2225
      %2227 = vmatmul.f32.gmra.mxu0 %v2140
      %v2228 = vpop.f32.mrf.mxu0
      %v2229 = vadd.f32 0.0, %v2228
      %2230 = vmatmul.f32.gmra.mxu0 %v2143
      %v2231 = vpop.f32.mrf.mxu0
      %v2232 = vadd.f32 0.0, %v2231
      %2233 = vmatmul.f32.gmra.mxu0 %v2146
      %v2234 = vpop.f32.mrf.mxu0
      %v2235 = vadd.f32 0.0, %v2234
      %2236 = vmatmul.f32.gmra.mxu0 %v2149
      %v2237 = vpop.f32.mrf.mxu0
      %v2238 = vadd.f32 0.0, %v2237
      %2239 = vmatmul.f32.gmra.mxu0 %v2152
      %v2240 = vpop.f32.mrf.mxu0
      %v2241 = vadd.f32 0.0, %v2240
      %2242 = vmatmul.f32.gmra.mxu0 %v2155
      %v2243 = vpop.f32.mrf.mxu0
      %v2244 = vadd.f32 0.0, %v2243
      %2245 = vmatmul.f32.gmra.mxu0 %v2158
      %v2246 = vpop.f32.mrf.mxu0
      %v2247 = vadd.f32 0.0, %v2246
      %2248 = vdwg.mxu0
      %v2249 = vadd.f32 %v2038, %v2178
      %v2250 = vadd.f32 %v2039, %v2181
      %v2251 = vadd.f32 %v2040, %v2184
      %v2252 = vadd.f32 %v2041, %v2187
      %v2253 = vadd.f32 %v2042, %v2190
      %v2254 = vadd.f32 %v2043, %v2193
      %v2255 = vadd.f32 %v2044, %v2196
      %v2256 = vadd.f32 %v2045, %v2199
      %v2257 = vadd.f32 %v2046, %v2202
      %v2258 = vadd.f32 %v2047, %v2205
      %v2259 = vadd.f32 %v2048, %v2208
      %v2260 = vadd.f32 %v2049, %v2211
      %v2261 = vadd.f32 %v2050, %v2214
      %v2262 = vadd.f32 %v2051, %v2217
      %v2263 = vadd.f32 %v2052, %v2220
      %v2264 = vadd.f32 %v2053, %v2223
      %v2265 = vadd.f32 %v2054, %v2226
      %v2266 = vadd.f32 %v2055, %v2229
      %v2267 = vadd.f32 %v2056, %v2232
      %v2268 = vadd.f32 %v2057, %v2235
      %v2269 = vadd.f32 %v2058, %v2238
      %v2270 = vadd.f32 %v2059, %v2241
      %v2271 = vadd.f32 %v2060, %v2244
      %v2272 = vadd.f32 %v2061, %v2247
      %v2273 = vlaneseq
      %v2274 = vshrl.u32 %v2273, 7
      %v2275 = vadd.s32 %v2274, 8
      %v2276 = vadd.s32 %v2274, 16
      %v2277 = vadd.s32 %v2274, 24
      %v2278 = vadd.s32 %v2274, 32
      %v2279 = vadd.s32 %v2274, 40
      %v2280 = vadd.s32 %v2274, 48
      %v2281 = vadd.s32 %v2274, 56
      %v2282 = vadd.s32 %v2274, 64
      %v2283 = vadd.s32 %v2274, 72
      %v2284 = vadd.s32 %v2274, 80
      %v2285 = vadd.s32 %v2274, 88
      %v2286 = vadd.s32 %v2274, 96
      %v2287 = vadd.s32 %v2274, 104
      %v2288 = vadd.s32 %v2274, 112
      %v2289 = vadd.s32 %v2274, 120
      %v2290 = vadd.s32 %v2274, 128
      %v2291 = vadd.s32 %v2274, 136
      %v2292 = vadd.s32 %v2274, 144
      %v2293 = vadd.s32 %v2274, 152
      %v2294 = vadd.s32 %v2274, 160
      %v2295 = vadd.s32 %v2274, 168
      %v2296 = vadd.s32 %v2274, 176
      %v2297 = vadd.s32 %v2274, 184
      %vm2298 = vcmp.lt.s32.totalorder %v2274, 0
      %v2299 = vsub.s32 0, %v2274
      %v2300 = vsel %vm2298, %v2299, %v2274
      %v2301 = vshrl.u32 %v2300, 4
      %v2302 = vand.u32 %v2300, 15
      %v2303 = vsub.s32 0, %v2302
      %v2304 = vsel %vm2298, %v2303, %v2302
      %vm2305 = vcmp.lt.s32.totalorder %v2275, 0
      %v2306 = vsub.s32 0, %v2275
      %v2307 = vsel %vm2305, %v2306, %v2275
      %v2308 = vshrl.u32 %v2307, 4
      %v2309 = vand.u32 %v2307, 15
      %v2310 = vsub.s32 0, %v2309
      %v2311 = vsel %vm2305, %v2310, %v2309
      %vm2312 = vcmp.lt.s32.totalorder %v2276, 0
      %v2313 = vsub.s32 0, %v2276
      %v2314 = vsel %vm2312, %v2313, %v2276
      %v2315 = vshrl.u32 %v2314, 4
      %v2316 = vand.u32 %v2314, 15
      %v2317 = vsub.s32 0, %v2316
      %v2318 = vsel %vm2312, %v2317, %v2316
      %vm2319 = vcmp.lt.s32.totalorder %v2277, 0
      %v2320 = vsub.s32 0, %v2277
      %v2321 = vsel %vm2319, %v2320, %v2277
      %v2322 = vshrl.u32 %v2321, 4
      %v2323 = vand.u32 %v2321, 15
      %v2324 = vsub.s32 0, %v2323
      %v2325 = vsel %vm2319, %v2324, %v2323
      %vm2326 = vcmp.lt.s32.totalorder %v2278, 0
      %v2327 = vsub.s32 0, %v2278
      %v2328 = vsel %vm2326, %v2327, %v2278
      %v2329 = vshrl.u32 %v2328, 4
      %v2330 = vand.u32 %v2328, 15
      %v2331 = vsub.s32 0, %v2330
      %v2332 = vsel %vm2326, %v2331, %v2330
      %vm2333 = vcmp.lt.s32.totalorder %v2279, 0
      %v2334 = vsub.s32 0, %v2279
      %v2335 = vsel %vm2333, %v2334, %v2279
      %v2336 = vshrl.u32 %v2335, 4
      %v2337 = vand.u32 %v2335, 15
      %v2338 = vsub.s32 0, %v2337
      %v2339 = vsel %vm2333, %v2338, %v2337
      %vm2340 = vcmp.lt.s32.totalorder %v2280, 0
      %v2341 = vsub.s32 0, %v2280
      %v2342 = vsel %vm2340, %v2341, %v2280
      %v2343 = vshrl.u32 %v2342, 4
      %v2344 = vand.u32 %v2342, 15
      %v2345 = vsub.s32 0, %v2344
      %v2346 = vsel %vm2340, %v2345, %v2344
      %vm2347 = vcmp.lt.s32.totalorder %v2281, 0
      %v2348 = vsub.s32 0, %v2281
      %v2349 = vsel %vm2347, %v2348, %v2281
      %v2350 = vshrl.u32 %v2349, 4
      %v2351 = vand.u32 %v2349, 15
      %v2352 = vsub.s32 0, %v2351
      %v2353 = vsel %vm2347, %v2352, %v2351
      %vm2354 = vcmp.lt.s32.totalorder %v2282, 0
      %v2355 = vsub.s32 0, %v2282
      %v2356 = vsel %vm2354, %v2355, %v2282
      %v2357 = vshrl.u32 %v2356, 4
      %v2358 = vand.u32 %v2356, 15
      %v2359 = vsub.s32 0, %v2358
      %v2360 = vsel %vm2354, %v2359, %v2358
      %vm2361 = vcmp.lt.s32.totalorder %v2283, 0
      %v2362 = vsub.s32 0, %v2283
      %v2363 = vsel %vm2361, %v2362, %v2283
      %v2364 = vshrl.u32 %v2363, 4
      %v2365 = vand.u32 %v2363, 15
      %v2366 = vsub.s32 0, %v2365
      %v2367 = vsel %vm2361, %v2366, %v2365
      %vm2368 = vcmp.lt.s32.totalorder %v2284, 0
      %v2369 = vsub.s32 0, %v2284
      %v2370 = vsel %vm2368, %v2369, %v2284
      %v2371 = vshrl.u32 %v2370, 4
      %v2372 = vand.u32 %v2370, 15
      %v2373 = vsub.s32 0, %v2372
      %v2374 = vsel %vm2368, %v2373, %v2372
      %vm2375 = vcmp.lt.s32.totalorder %v2285, 0
      %v2376 = vsub.s32 0, %v2285
      %v2377 = vsel %vm2375, %v2376, %v2285
      %v2378 = vshrl.u32 %v2377, 4
      %v2379 = vand.u32 %v2377, 15
      %v2380 = vsub.s32 0, %v2379
      %v2381 = vsel %vm2375, %v2380, %v2379
      %vm2382 = vcmp.lt.s32.totalorder %v2286, 0
      %v2383 = vsub.s32 0, %v2286
      %v2384 = vsel %vm2382, %v2383, %v2286
      %v2385 = vshrl.u32 %v2384, 4
      %v2386 = vand.u32 %v2384, 15
      %v2387 = vsub.s32 0, %v2386
      %v2388 = vsel %vm2382, %v2387, %v2386
      %vm2389 = vcmp.lt.s32.totalorder %v2287, 0
      %v2390 = vsub.s32 0, %v2287
      %v2391 = vsel %vm2389, %v2390, %v2287
      %v2392 = vshrl.u32 %v2391, 4
      %v2393 = vand.u32 %v2391, 15
      %v2394 = vsub.s32 0, %v2393
      %v2395 = vsel %vm2389, %v2394, %v2393
      %vm2396 = vcmp.lt.s32.totalorder %v2288, 0
      %v2397 = vsub.s32 0, %v2288
      %v2398 = vsel %vm2396, %v2397, %v2288
      %v2399 = vshrl.u32 %v2398, 4
      %v2400 = vand.u32 %v2398, 15
      %v2401 = vsub.s32 0, %v2400
      %v2402 = vsel %vm2396, %v2401, %v2400
      %vm2403 = vcmp.lt.s32.totalorder %v2289, 0
      %v2404 = vsub.s32 0, %v2289
      %v2405 = vsel %vm2403, %v2404, %v2289
      %v2406 = vshrl.u32 %v2405, 4
      %v2407 = vand.u32 %v2405, 15
      %v2408 = vsub.s32 0, %v2407
      %v2409 = vsel %vm2403, %v2408, %v2407
      %vm2410 = vcmp.lt.s32.totalorder %v2290, 0
      %v2411 = vsub.s32 0, %v2290
      %v2412 = vsel %vm2410, %v2411, %v2290
      %v2413 = vshrl.u32 %v2412, 4
      %v2414 = vand.u32 %v2412, 15
      %v2415 = vsub.s32 0, %v2414
      %v2416 = vsel %vm2410, %v2415, %v2414
      %vm2417 = vcmp.lt.s32.totalorder %v2291, 0
      %v2418 = vsub.s32 0, %v2291
      %v2419 = vsel %vm2417, %v2418, %v2291
      %v2420 = vshrl.u32 %v2419, 4
      %v2421 = vand.u32 %v2419, 15
      %v2422 = vsub.s32 0, %v2421
      %v2423 = vsel %vm2417, %v2422, %v2421
      %vm2424 = vcmp.lt.s32.totalorder %v2292, 0
      %v2425 = vsub.s32 0, %v2292
      %v2426 = vsel %vm2424, %v2425, %v2292
      %v2427 = vshrl.u32 %v2426, 4
      %v2428 = vand.u32 %v2426, 15
      %v2429 = vsub.s32 0, %v2428
      %v2430 = vsel %vm2424, %v2429, %v2428
      %vm2431 = vcmp.lt.s32.totalorder %v2293, 0
      %v2432 = vsub.s32 0, %v2293
      %v2433 = vsel %vm2431, %v2432, %v2293
      %v2434 = vshrl.u32 %v2433, 4
      %v2435 = vand.u32 %v2433, 15
      %v2436 = vsub.s32 0, %v2435
      %v2437 = vsel %vm2431, %v2436, %v2435
      %vm2438 = vcmp.lt.s32.totalorder %v2294, 0
      %v2439 = vsub.s32 0, %v2294
      %v2440 = vsel %vm2438, %v2439, %v2294
      %v2441 = vshrl.u32 %v2440, 4
      %v2442 = vand.u32 %v2440, 15
      %v2443 = vsub.s32 0, %v2442
      %v2444 = vsel %vm2438, %v2443, %v2442
      %vm2445 = vcmp.lt.s32.totalorder %v2295, 0
      %v2446 = vsub.s32 0, %v2295
      %v2447 = vsel %vm2445, %v2446, %v2295
      %v2448 = vshrl.u32 %v2447, 4
      %v2449 = vand.u32 %v2447, 15
      %v2450 = vsub.s32 0, %v2449
      %v2451 = vsel %vm2445, %v2450, %v2449
      %vm2452 = vcmp.lt.s32.totalorder %v2296, 0
      %v2453 = vsub.s32 0, %v2296
      %v2454 = vsel %vm2452, %v2453, %v2296
      %v2455 = vshrl.u32 %v2454, 4
      %v2456 = vand.u32 %v2454, 15
      %v2457 = vsub.s32 0, %v2456
      %v2458 = vsel %vm2452, %v2457, %v2456
      %vm2459 = vcmp.lt.s32.totalorder %v2297, 0
      %v2460 = vsub.s32 0, %v2297
      %v2461 = vsel %vm2459, %v2460, %v2297
      %v2462 = vshrl.u32 %v2461, 4
      %v2463 = vand.u32 %v2461, 15
      %v2464 = vsub.s32 0, %v2463
      %v2465 = vsel %vm2459, %v2464, %v2463
      %vm2466 = vcmp.ne.s32.totalorder %v2304, 0
      %vm2467 = vcmp.ne.s32.totalorder %v2311, 0
      %vm2468 = vcmp.ne.s32.totalorder %v2318, 0
      %vm2469 = vcmp.ne.s32.totalorder %v2325, 0
      %vm2470 = vcmp.ne.s32.totalorder %v2332, 0
      %vm2471 = vcmp.ne.s32.totalorder %v2339, 0
      %vm2472 = vcmp.ne.s32.totalorder %v2346, 0
      %vm2473 = vcmp.ne.s32.totalorder %v2353, 0
      %vm2474 = vcmp.ne.s32.totalorder %v2360, 0
      %vm2475 = vcmp.ne.s32.totalorder %v2367, 0
      %vm2476 = vcmp.ne.s32.totalorder %v2374, 0
      %vm2477 = vcmp.ne.s32.totalorder %v2381, 0
      %vm2478 = vcmp.ne.s32.totalorder %v2388, 0
      %vm2479 = vcmp.ne.s32.totalorder %v2395, 0
      %vm2480 = vcmp.ne.s32.totalorder %v2402, 0
      %vm2481 = vcmp.ne.s32.totalorder %v2409, 0
      %vm2482 = vcmp.ne.s32.totalorder %v2416, 0
      %vm2483 = vcmp.ne.s32.totalorder %v2423, 0
      %vm2484 = vcmp.ne.s32.totalorder %v2430, 0
      %vm2485 = vcmp.ne.s32.totalorder %v2437, 0
      %vm2486 = vcmp.ne.s32.totalorder %v2444, 0
      %vm2487 = vcmp.ne.s32.totalorder %v2451, 0
      %vm2488 = vcmp.ne.s32.totalorder %v2458, 0
      %vm2489 = vcmp.ne.s32.totalorder %v2465, 0
      %vm2490 = vcmp.lt.s32.totalorder %v2304, 0
      %vm2491 = vcmp.lt.s32.totalorder %v2311, 0
      %vm2492 = vcmp.lt.s32.totalorder %v2318, 0
      %vm2493 = vcmp.lt.s32.totalorder %v2325, 0
      %vm2494 = vcmp.lt.s32.totalorder %v2332, 0
      %vm2495 = vcmp.lt.s32.totalorder %v2339, 0
      %vm2496 = vcmp.lt.s32.totalorder %v2346, 0
      %vm2497 = vcmp.lt.s32.totalorder %v2353, 0
      %vm2498 = vcmp.lt.s32.totalorder %v2360, 0
      %vm2499 = vcmp.lt.s32.totalorder %v2367, 0
      %vm2500 = vcmp.lt.s32.totalorder %v2374, 0
      %vm2501 = vcmp.lt.s32.totalorder %v2381, 0
      %vm2502 = vcmp.lt.s32.totalorder %v2388, 0
      %vm2503 = vcmp.lt.s32.totalorder %v2395, 0
      %vm2504 = vcmp.lt.s32.totalorder %v2402, 0
      %vm2505 = vcmp.lt.s32.totalorder %v2409, 0
      %vm2506 = vcmp.lt.s32.totalorder %v2416, 0
      %vm2507 = vcmp.lt.s32.totalorder %v2423, 0
      %vm2508 = vcmp.lt.s32.totalorder %v2430, 0
      %vm2509 = vcmp.lt.s32.totalorder %v2437, 0
      %vm2510 = vcmp.lt.s32.totalorder %v2444, 0
      %vm2511 = vcmp.lt.s32.totalorder %v2451, 0
      %vm2512 = vcmp.lt.s32.totalorder %v2458, 0
      %vm2513 = vcmp.lt.s32.totalorder %v2465, 0
      %vm2514 = vmand %vm2490, %vm2466
      %vm2515 = vmand %vm2491, %vm2467
      %vm2516 = vmand %vm2492, %vm2468
      %vm2517 = vmand %vm2493, %vm2469
      %vm2518 = vmand %vm2494, %vm2470
      %vm2519 = vmand %vm2495, %vm2471
      %vm2520 = vmand %vm2496, %vm2472
      %vm2521 = vmand %vm2497, %vm2473
      %vm2522 = vmand %vm2498, %vm2474
      %vm2523 = vmand %vm2499, %vm2475
      %vm2524 = vmand %vm2500, %vm2476
      %vm2525 = vmand %vm2501, %vm2477
      %vm2526 = vmand %vm2502, %vm2478
      %vm2527 = vmand %vm2503, %vm2479
      %vm2528 = vmand %vm2504, %vm2480
      %vm2529 = vmand %vm2505, %vm2481
      %vm2530 = vmand %vm2506, %vm2482
      %vm2531 = vmand %vm2507, %vm2483
      %vm2532 = vmand %vm2508, %vm2484
      %vm2533 = vmand %vm2509, %vm2485
      %vm2534 = vmand %vm2510, %vm2486
      %vm2535 = vmand %vm2511, %vm2487
      %vm2536 = vmand %vm2512, %vm2488
      %vm2537 = vmand %vm2513, %vm2489
      %v2538 = vadd.s32 %v2304, 16
      %v2539 = vadd.s32 %v2311, 16
      %v2540 = vadd.s32 %v2318, 16
      %v2541 = vadd.s32 %v2325, 16
      %v2542 = vadd.s32 %v2332, 16
      %v2543 = vadd.s32 %v2339, 16
      %v2544 = vadd.s32 %v2346, 16
      %v2545 = vadd.s32 %v2353, 16
      %v2546 = vadd.s32 %v2360, 16
      %v2547 = vadd.s32 %v2367, 16
      %v2548 = vadd.s32 %v2374, 16
      %v2549 = vadd.s32 %v2381, 16
      %v2550 = vadd.s32 %v2388, 16
      %v2551 = vadd.s32 %v2395, 16
      %v2552 = vadd.s32 %v2402, 16
      %v2553 = vadd.s32 %v2409, 16
      %v2554 = vadd.s32 %v2416, 16
      %v2555 = vadd.s32 %v2423, 16
      %v2556 = vadd.s32 %v2430, 16
      %v2557 = vadd.s32 %v2437, 16
      %v2558 = vadd.s32 %v2444, 16
      %v2559 = vadd.s32 %v2451, 16
      %v2560 = vadd.s32 %v2458, 16
      %v2561 = vadd.s32 %v2465, 16
      %v2562 = vsel %vm2514, %v2538, %v2304
      %v2563 = vsel %vm2515, %v2539, %v2311
      %v2564 = vsel %vm2516, %v2540, %v2318
      %v2565 = vsel %vm2517, %v2541, %v2325
      %v2566 = vsel %vm2518, %v2542, %v2332
      %v2567 = vsel %vm2519, %v2543, %v2339
      %v2568 = vsel %vm2520, %v2544, %v2346
      %v2569 = vsel %vm2521, %v2545, %v2353
      %v2570 = vsel %vm2522, %v2546, %v2360
      %v2571 = vsel %vm2523, %v2547, %v2367
      %v2572 = vsel %vm2524, %v2548, %v2374
      %v2573 = vsel %vm2525, %v2549, %v2381
      %v2574 = vsel %vm2526, %v2550, %v2388
      %v2575 = vsel %vm2527, %v2551, %v2395
      %v2576 = vsel %vm2528, %v2552, %v2402
      %v2577 = vsel %vm2529, %v2553, %v2409
      %v2578 = vsel %vm2530, %v2554, %v2416
      %v2579 = vsel %vm2531, %v2555, %v2423
      %v2580 = vsel %vm2532, %v2556, %v2430
      %v2581 = vsel %vm2533, %v2557, %v2437
      %v2582 = vsel %vm2534, %v2558, %v2444
      %v2583 = vsel %vm2535, %v2559, %v2451
      %v2584 = vsel %vm2536, %v2560, %v2458
      %v2585 = vsel %vm2537, %v2561, %v2465
      %vm2586 = vcmp.lt.s32.totalorder %v2562, 12
      %vm2587 = vcmp.lt.s32.totalorder %v2563, 12
      %vm2588 = vcmp.lt.s32.totalorder %v2564, 12
      %vm2589 = vcmp.lt.s32.totalorder %v2565, 12
      %vm2590 = vcmp.lt.s32.totalorder %v2566, 12
      %vm2591 = vcmp.lt.s32.totalorder %v2567, 12
      %vm2592 = vcmp.lt.s32.totalorder %v2568, 12
      %vm2593 = vcmp.lt.s32.totalorder %v2569, 12
      %vm2594 = vcmp.lt.s32.totalorder %v2570, 12
      %vm2595 = vcmp.lt.s32.totalorder %v2571, 12
      %vm2596 = vcmp.lt.s32.totalorder %v2572, 12
      %vm2597 = vcmp.lt.s32.totalorder %v2573, 12
      %vm2598 = vcmp.lt.s32.totalorder %v2574, 12
      %vm2599 = vcmp.lt.s32.totalorder %v2575, 12
      %vm2600 = vcmp.lt.s32.totalorder %v2576, 12
      %vm2601 = vcmp.lt.s32.totalorder %v2577, 12
      %vm2602 = vcmp.lt.s32.totalorder %v2578, 12
      %vm2603 = vcmp.lt.s32.totalorder %v2579, 12
      %vm2604 = vcmp.lt.s32.totalorder %v2580, 12
      %vm2605 = vcmp.lt.s32.totalorder %v2581, 12
      %vm2606 = vcmp.lt.s32.totalorder %v2582, 12
      %vm2607 = vcmp.lt.s32.totalorder %v2583, 12
      %vm2608 = vcmp.lt.s32.totalorder %v2584, 12
      %vm2609 = vcmp.lt.s32.totalorder %v2585, 12
      %v2610 = vsel %vm2586, 1, 0
      %v2611 = vsel %vm2587, 1, 0
      %v2612 = vsel %vm2588, 1, 0
      %v2613 = vsel %vm2589, 1, 0
      %v2614 = vsel %vm2590, 1, 0
      %v2615 = vsel %vm2591, 1, 0
      %v2616 = vsel %vm2592, 1, 0
      %v2617 = vsel %vm2593, 1, 0
      %v2618 = vsel %vm2594, 1, 0
      %v2619 = vsel %vm2595, 1, 0
      %v2620 = vsel %vm2596, 1, 0
      %v2621 = vsel %vm2597, 1, 0
      %v2622 = vsel %vm2598, 1, 0
      %v2623 = vsel %vm2599, 1, 0
      %v2624 = vsel %vm2600, 1, 0
      %v2625 = vsel %vm2601, 1, 0
      %v2626 = vsel %vm2602, 1, 0
      %v2627 = vsel %vm2603, 1, 0
      %v2628 = vsel %vm2604, 1, 0
      %v2629 = vsel %vm2605, 1, 0
      %v2630 = vsel %vm2606, 1, 0
      %v2631 = vsel %vm2607, 1, 0
      %v2632 = vsel %vm2608, 1, 0
      %v2633 = vsel %vm2609, 1, 0
      %vm2634 = vcmp.eq.s32.totalorder %v2610, 1
      %vm2635 = vcmp.eq.s32.totalorder %v2611, 1
      %vm2636 = vcmp.eq.s32.totalorder %v2612, 1
      %vm2637 = vcmp.eq.s32.totalorder %v2613, 1
      %vm2638 = vcmp.eq.s32.totalorder %v2614, 1
      %vm2639 = vcmp.eq.s32.totalorder %v2615, 1
      %vm2640 = vcmp.eq.s32.totalorder %v2616, 1
      %vm2641 = vcmp.eq.s32.totalorder %v2617, 1
      %vm2642 = vcmp.eq.s32.totalorder %v2618, 1
      %vm2643 = vcmp.eq.s32.totalorder %v2619, 1
      %vm2644 = vcmp.eq.s32.totalorder %v2620, 1
      %vm2645 = vcmp.eq.s32.totalorder %v2621, 1
      %vm2646 = vcmp.eq.s32.totalorder %v2622, 1
      %vm2647 = vcmp.eq.s32.totalorder %v2623, 1
      %vm2648 = vcmp.eq.s32.totalorder %v2624, 1
      %vm2649 = vcmp.eq.s32.totalorder %v2625, 1
      %vm2650 = vcmp.eq.s32.totalorder %v2626, 1
      %vm2651 = vcmp.eq.s32.totalorder %v2627, 1
      %vm2652 = vcmp.eq.s32.totalorder %v2628, 1
      %vm2653 = vcmp.eq.s32.totalorder %v2629, 1
      %vm2654 = vcmp.eq.s32.totalorder %v2630, 1
      %vm2655 = vcmp.eq.s32.totalorder %v2631, 1
      %vm2656 = vcmp.eq.s32.totalorder %v2632, 1
      %vm2657 = vcmp.eq.s32.totalorder %v2633, 1
      %v2658 = vsel %vm2634, %v2249, 0.0
      %v2659 = vsel %vm2635, %v2250, 0.0
      %v2660 = vsel %vm2636, %v2251, 0.0
      %v2661 = vsel %vm2637, %v2252, 0.0
      %v2662 = vsel %vm2638, %v2253, 0.0
      %v2663 = vsel %vm2639, %v2254, 0.0
      %v2664 = vsel %vm2640, %v2255, 0.0
      %v2665 = vsel %vm2641, %v2256, 0.0
      %v2666 = vsel %vm2642, %v2257, 0.0
      %v2667 = vsel %vm2643, %v2258, 0.0
      %v2668 = vsel %vm2644, %v2259, 0.0
      %v2669 = vsel %vm2645, %v2260, 0.0
      %v2670 = vsel %vm2646, %v2261, 0.0
      %v2671 = vsel %vm2647, %v2262, 0.0
      %v2672 = vsel %vm2648, %v2263, 0.0
      %v2673 = vsel %vm2649, %v2264, 0.0
      %v2674 = vsel %vm2650, %v2265, 0.0
      %v2675 = vsel %vm2651, %v2266, 0.0
      %v2676 = vsel %vm2652, %v2267, 0.0
      %v2677 = vsel %vm2653, %v2268, 0.0
      %v2678 = vsel %vm2654, %v2269, 0.0
      %v2679 = vsel %vm2655, %v2270, 0.0
      %v2680 = vsel %vm2656, %v2271, 0.0
      %v2681 = vsel %vm2657, %v2272, 0.0
      %2682 = vst.msk [vmem:[%s262] sm:$0xff] %vm393, %v2658
      %2683 = vst.msk [vmem:[%s262 + $0x8] sm:$0xff] %vm393, %v2659
      %2684 = vst.msk [vmem:[%s262 + $0x10] sm:$0xff] %vm393, %v2660
      %2685 = vst.msk [vmem:[%s262 + $0x18] sm:$0xff] %vm393, %v2661
      %2686 = vst.msk [vmem:[%s262 + $0x20] sm:$0xff] %vm393, %v2662
      %2687 = vst.msk [vmem:[%s262 + $0x28] sm:$0xff] %vm393, %v2663
      %2688 = vst.msk [vmem:[%s262 + $0x30] sm:$0xff] %vm393, %v2664
      %2689 = vst.msk [vmem:[%s262 + $0x38] sm:$0xff] %vm393, %v2665
      %2690 = vst.msk [vmem:[%s262 + $0x40] sm:$0xff] %vm393, %v2666
      %2691 = vst.msk [vmem:[%s262 + $0x48] sm:$0xff] %vm393, %v2667
      %2692 = vst.msk [vmem:[%s262 + $0x50] sm:$0xff] %vm393, %v2668
      %2693 = vst.msk [vmem:[%s262 + $0x58] sm:$0xff] %vm393, %v2669
      %2694 = vst.msk [vmem:[%s262 + $0x60] sm:$0xff] %vm393, %v2670
      %2695 = vst.msk [vmem:[%s262 + $0x68] sm:$0xff] %vm393, %v2671
      %2696 = vst.msk [vmem:[%s262 + $0x70] sm:$0xff] %vm393, %v2672
      %2697 = vst.msk [vmem:[%s262 + $0x78] sm:$0xff] %vm393, %v2673
      %2698 = vst.msk [vmem:[%s262 + $0x80] sm:$0xff] %vm393, %v2674
      %2699 = vst.msk [vmem:[%s262 + $0x88] sm:$0xff] %vm393, %v2675
      %2700 = vst.msk [vmem:[%s262 + $0x90] sm:$0xff] %vm393, %v2676
      %2701 = vst.msk [vmem:[%s262 + $0x98] sm:$0xff] %vm393, %v2677
      %2702 = vst.msk [vmem:[%s262 + $0xa0] sm:$0xff] %vm393, %v2678
      %2703 = vst.msk [vmem:[%s262 + $0xa8] sm:$0xff] %vm393, %v2679
      %2704 = vst.msk [vmem:[%s262 + $0xb0] sm:$0xff] %vm393, %v2680
      %2705 = vst.msk [vmem:[%s262 + $0xb8] sm:$0xff] %vm393, %v2681
      %v2706 = vsel %vm393, %v2658, 0.0
      %v2707 = vsel %vm393, %v2659, 0.0
      %v2708 = vadd.f32 %v2706, %v2707
      %v2709 = vsel %vm393, %v2660, 0.0
      %v2710 = vadd.f32 %v2708, %v2709
      %v2711 = vsel %vm393, %v2661, 0.0
      %v2712 = vadd.f32 %v2710, %v2711
      %v2713 = vsel %vm393, %v2662, 0.0
      %v2714 = vadd.f32 %v2712, %v2713
      %v2715 = vsel %vm393, %v2663, 0.0
      %v2716 = vadd.f32 %v2714, %v2715
      %v2717 = vsel %vm393, %v2664, 0.0
      %v2718 = vadd.f32 %v2716, %v2717
      %v2719 = vsel %vm393, %v2665, 0.0
      %v2720 = vadd.f32 %v2718, %v2719
      %v2721 = vsel %vm393, %v2666, 0.0
      %v2722 = vadd.f32 %v2720, %v2721
      %v2723 = vsel %vm393, %v2667, 0.0
      %v2724 = vadd.f32 %v2722, %v2723
      %v2725 = vsel %vm393, %v2668, 0.0
      %v2726 = vadd.f32 %v2724, %v2725
      %v2727 = vsel %vm393, %v2669, 0.0
      %v2728 = vadd.f32 %v2726, %v2727
      %v2729 = vsel %vm393, %v2670, 0.0
      %v2730 = vadd.f32 %v2728, %v2729
      %v2731 = vsel %vm393, %v2671, 0.0
      %v2732 = vadd.f32 %v2730, %v2731
      %v2733 = vsel %vm393, %v2672, 0.0
      %v2734 = vadd.f32 %v2732, %v2733
      %v2735 = vsel %vm393, %v2673, 0.0
      %v2736 = vadd.f32 %v2734, %v2735
      %v2737 = vsel %vm393, %v2674, 0.0
      %v2738 = vadd.f32 %v2736, %v2737
      %v2739 = vsel %vm393, %v2675, 0.0
      %v2740 = vadd.f32 %v2738, %v2739
      %v2741 = vsel %vm393, %v2676, 0.0
      %v2742 = vadd.f32 %v2740, %v2741
      %v2743 = vsel %vm393, %v2677, 0.0
      %v2744 = vadd.f32 %v2742, %v2743
      %v2745 = vsel %vm393, %v2678, 0.0
      %v2746 = vadd.f32 %v2744, %v2745
      %v2747 = vsel %vm393, %v2679, 0.0
      %v2748 = vadd.f32 %v2746, %v2747
      %v2749 = vsel %vm393, %v2680, 0.0
      %v2750 = vadd.f32 %v2748, %v2749
      %v2751 = vsel %vm393, %v2681, 0.0
      %v2752 = vadd.f32 %v2750, %v2751
      %v2753 = vrot.slane %v2752, 4
      %v2754 = vadd.f32 %v2752, %v2753
      %v2755 = vrot.slane %v2754, 2
      %v2756 = vadd.f32 %v2754, %v2755
      %v2757 = vrot.slane %v2756, 1
      %v2758 = vadd.f32 %v2756, %v2757
      %vm2759 = vcmask 57344
      %2760 = vst.msk [vmem:[%s265] sm:$0x1] %vm2759, %v2758
      %v2761 = vmul.f32 %v2658, %v2658
      %v2762 = vmul.f32 %v2659, %v2659
      %v2763 = vmul.f32 %v2660, %v2660
      %v2764 = vmul.f32 %v2661, %v2661
      %v2765 = vmul.f32 %v2662, %v2662
      %v2766 = vmul.f32 %v2663, %v2663
      %v2767 = vmul.f32 %v2664, %v2664
      %v2768 = vmul.f32 %v2665, %v2665
      %v2769 = vmul.f32 %v2666, %v2666
      %v2770 = vmul.f32 %v2667, %v2667
      %v2771 = vmul.f32 %v2668, %v2668
      %v2772 = vmul.f32 %v2669, %v2669
      %v2773 = vmul.f32 %v2670, %v2670
      %v2774 = vmul.f32 %v2671, %v2671
      %v2775 = vmul.f32 %v2672, %v2672
      %v2776 = vmul.f32 %v2673, %v2673
      %v2777 = vmul.f32 %v2674, %v2674
      %v2778 = vmul.f32 %v2675, %v2675
      %v2779 = vmul.f32 %v2676, %v2676
      %v2780 = vmul.f32 %v2677, %v2677
      %v2781 = vmul.f32 %v2678, %v2678
      %v2782 = vmul.f32 %v2679, %v2679
      %v2783 = vmul.f32 %v2680, %v2680
      %v2784 = vmul.f32 %v2681, %v2681
      %v2785 = vsel %vm393, %v2761, 0.0
      %v2786 = vsel %vm393, %v2762, 0.0
      %v2787 = vadd.f32 %v2785, %v2786
      %v2788 = vsel %vm393, %v2763, 0.0
      %v2789 = vadd.f32 %v2787, %v2788
      %v2790 = vsel %vm393, %v2764, 0.0
      %v2791 = vadd.f32 %v2789, %v2790
      %v2792 = vsel %vm393, %v2765, 0.0
      %v2793 = vadd.f32 %v2791, %v2792
      %v2794 = vsel %vm393, %v2766, 0.0
      %v2795 = vadd.f32 %v2793, %v2794
      %v2796 = vsel %vm393, %v2767, 0.0
      %v2797 = vadd.f32 %v2795, %v2796
      %v2798 = vsel %vm393, %v2768, 0.0
      %v2799 = vadd.f32 %v2797, %v2798
      %v2800 = vsel %vm393, %v2769, 0.0
      %v2801 = vadd.f32 %v2799, %v2800
      %v2802 = vsel %vm393, %v2770, 0.0
      %v2803 = vadd.f32 %v2801, %v2802
      %v2804 = vsel %vm393, %v2771, 0.0
      %v2805 = vadd.f32 %v2803, %v2804
      %v2806 = vsel %vm393, %v2772, 0.0
      %v2807 = vadd.f32 %v2805, %v2806
      %v2808 = vsel %vm393, %v2773, 0.0
      %v2809 = vadd.f32 %v2807, %v2808
      %v2810 = vsel %vm393, %v2774, 0.0
      %v2811 = vadd.f32 %v2809, %v2810
      %v2812 = vsel %vm393, %v2775, 0.0
      %v2813 = vadd.f32 %v2811, %v2812
      %v2814 = vsel %vm393, %v2776, 0.0
      %v2815 = vadd.f32 %v2813, %v2814
      %v2816 = vsel %vm393, %v2777, 0.0
      %v2817 = vadd.f32 %v2815, %v2816
      %v2818 = vsel %vm393, %v2778, 0.0
      %v2819 = vadd.f32 %v2817, %v2818
      %v2820 = vsel %vm393, %v2779, 0.0
      %v2821 = vadd.f32 %v2819, %v2820
      %v2822 = vsel %vm393, %v2780, 0.0
      %v2823 = vadd.f32 %v2821, %v2822
      %v2824 = vsel %vm393, %v2781, 0.0
      %v2825 = vadd.f32 %v2823, %v2824
      %v2826 = vsel %vm393, %v2782, 0.0
      %v2827 = vadd.f32 %v2825, %v2826
      %v2828 = vsel %vm393, %v2783, 0.0
      %v2829 = vadd.f32 %v2827, %v2828
      %v2830 = vsel %vm393, %v2784, 0.0
      %v2831 = vadd.f32 %v2829, %v2830
      %v2832 = vrot.slane %v2831, 4
      %v2833 = vadd.f32 %v2831, %v2832
      %v2834 = vrot.slane %v2833, 2
      %v2835 = vadd.f32 %v2833, %v2834
      %v2836 = vrot.slane %v2835, 1
      %v2837 = vadd.f32 %v2835, %v2836
      %2838 = vst.msk [vmem:[%s268] sm:$0x1] %vm2759, %v2837
      %p2839 = scmp.lt.s32.totalorder %s18, 1
      %s2840 = scalar_select %p2839, %s18, 1
      %s2841 = smul.addr %s2840, 24
      %s2842 = smul.addr %s2841, 8
      %s2843 = scalar_lea.vmem %s4, %s2842
      %p2844 = scmp.lt.s32.totalorder %s18, 1
      %s2845 = scalar_select %p2844, %s18, 1
      %s2846 = scalar_lea.vmem %s5, %s2845
      %p2847 = scmp.lt.s32.totalorder %s18, 1
      %s2848 = scalar_select %p2847, %s18, 1
      %s2849 = scalar_lea.vmem %s6, %s2848
      // Predicated region
      $region37: #{double_conv.4} parent=35 // pred_check
        %p2850 = pneg %p125
      $region38: #{double_conv.4} parent=35 // pred_check_branch
        %2852 = sbr.rel (%p2850) target = $region40
      $region39: #{double_conv.4} parent=35 // pred_region
        _
      $region40: #{double_conv.4} parent=35 // pred_fallthru
        _
      // Predicated region
      $region41: #{double_conv.4} parent=35 // pred_check
        %p2853 = pneg %p151
      $region42: #{double_conv.4} parent=35 // pred_check_branch
        %2855 = sbr.rel (%p2853) target = $region44
      $region43: #{double_conv.4} parent=35 // pred_region
        _
      $region44: #{double_conv.4} parent=35 // pred_fallthru
        _
      // Predicated region
      $region45: #{double_conv.4} parent=35 // pred_check
        %p2856 = pneg %p177
      $region46: #{double_conv.4} parent=35 // pred_check_branch
        %2858 = sbr.rel (%p2856) target = $region48
      $region47: #{double_conv.4} parent=35 // pred_region
        _
      $region48: #{double_conv.4} parent=35 // pred_fallthru
        _
    $region36: #{double_conv.4} parent=5 // pred_fallthru
      _
    %p2859 = scmp.le.s32.totalorder 2, %s13
    // Predicated region
    $region49: #{double_conv.4} parent=5 // pred_check
      %p2860 = pneg %p2859
    $region50: #{double_conv.4} parent=5 // pred_check_branch
      %2862 = sbr.rel (%p2860) target = $region52
    $region51: #{double_conv.4} parent=5 // pred_region
      %s2863 = ssub.s32 %s13, 2
      // Predicated region
      $region53: #{double_conv.4} parent=51 // pred_check
        %p2864 = pneg %p131
      $region54: #{double_conv.4} parent=51 // pred_check_branch
        %2866 = sbr.rel (%p2864) target = $region56
      $region55: #{double_conv.4} parent=51 // pred_region
        %p2867 = scmp.lt.s32.totalorder %s19, 1
        %s2868 = scalar_select %p2867, %s19, 1
        %s2869 = smul.addr %s2868, 24
        %s2870 = smul.addr %s2869, 8
        %s2871 = scalar_lea.vmem %s4, %s2870
      $region56: #{double_conv.4} parent=51 // pred_fallthru
        _
      // Predicated region
      $region57: #{double_conv.4} parent=51 // pred_check
        %p2872 = pneg %p157
      $region58: #{double_conv.4} parent=51 // pred_check_branch
        %2874 = sbr.rel (%p2872) target = $region60
      $region59: #{double_conv.4} parent=51 // pred_region
        %p2875 = scmp.lt.s32.totalorder %s19, 1
        %s2876 = scalar_select %p2875, %s19, 1
        %s2877 = scalar_lea.vmem %s5, %s2876
      $region60: #{double_conv.4} parent=51 // pred_fallthru
        _
      // Predicated region
      $region61: #{double_conv.4} parent=51 // pred_check
        %p2878 = pneg %p183
      $region62: #{double_conv.4} parent=51 // pred_check_branch
        %2880 = sbr.rel (%p2878) target = $region64
      $region63: #{double_conv.4} parent=51 // pred_region
        %p2881 = scmp.lt.s32.totalorder %s19, 1
        %s2882 = scalar_select %p2881, %s19, 1
        %s2883 = scalar_lea.vmem %s6, %s2882
      $region64: #{double_conv.4} parent=51 // pred_fallthru
        _
    $region52: #{double_conv.4} parent=5 // pred_fallthru
      _
  $region6: #{double_conv.4} parent=0 // loop_footer
    %s17 = sadd.s32 1, %s13
  $region7: #{double_conv.4} parent=0 // loop_footer_branch
    %12 = sbr.rel target = $region3
  $region8: #{double_conv.4} parent=0 // loop_exit
    _

</llo_original>
